<compile_context>
chip_gen: v6e
topology: v6e:2x2x1
jax: 0.10.0
libtpu: 0.0.40
codegen_flags: <defaults>
</compile_context>

<pallas_src>
import functools

import jax
import jax.numpy as jnp
from jax.experimental import pallas as pl
from jax.experimental.pallas import tpu as pltpu


def _leaky(v):
    # LeakyReLU(0.01): x if x >= 0 else 0.01 * x
    return jnp.maximum(v, 0.01 * v)


def _pose_regress_kernel(x_ref, w_ref, b_ref, out_ref, *, n_pts, bt):
    m = bt * n_pts
    x = x_ref[...]                                            # (m, 8): 6 real + 2 zero-pad lanes

    # Batch-boundary masks, modulo-free: iota over the point axis of a (bt, n, 1)
    # shape, flattened to (m, 1) (minor dim unchanged -> pure metadata reshape).
    pt = jax.lax.broadcasted_iota(jnp.int32, (bt, n_pts, 1), 1).reshape(m, 1)
    not_first = pt != 0
    not_last = pt != (n_pts - 1)

    def shifted(v):
        # "previous point" / "next point" with zero padding at batch-element edges.
        prev = jnp.where(not_first, pltpu.roll(v, shift=1, axis=0), 0.0)
        nxt = jnp.where(not_last, pltpu.roll(v, shift=m - 1, axis=0), 0.0)
        return prev, nxt

    def mm(a, b):
        return jnp.dot(a, b, preferred_element_type=jnp.float32)

    # --- PoseRefineNetFeat (bn1 InstanceNorm1d exists in __init__ but is unused in forward)
    # conv1 (k=3, pad=1): three tap matmuls, no lane concat.
    p0, n0 = shifted(x)
    x1 = _leaky(mm(p0, w_ref[0:8, 0:16]) + mm(x, w_ref[8:16, 0:16])
                + mm(n0, w_ref[16:24, 0:16]) + b_ref[0:1, 0:16])            # (m, 16)

    # conv2 (k=3, pad=1)
    p1, n1 = shifted(x1)
    x2 = _leaky(mm(p1, w_ref[24:40, 0:32]) + mm(x1, w_ref[40:56, 0:32])
                + mm(n1, w_ref[56:72, 0:32]) + b_ref[1:2, 0:32])            # (m, 32)

    # conv3 (k=1) over [x1 | x2], concat-free split matmul.
    x3 = _leaky(mm(x1, w_ref[72:88, 0:32]) + mm(x2, w_ref[88:120, 0:32])
                + b_ref[2:3, 0:32])                                         # (m, 32)

    # mean over points per batch element (sublane reduction; no pool matrix).
    feat = jnp.mean(x3.reshape(bt, n_pts, 32), axis=1)                      # (bt, 32)

    # fused regression heads: h = [rh | th], then block-diagonal pred_r || pred_t.
    h = _leaky(mm(feat, w_ref[120:152, 0:32]) + b_ref[3:4, 0:32])           # (bt, 32)
    out_ref[...] = mm(h, w_ref[152:184, :]) + b_ref[4:5, :]                 # (bt, 128)


def init_params(key, mode="quat"):
    """Deterministic synthetic parameters with the same shapes as the PyTorch module."""
    r_dim = 4 if mode == "quat" else 6
    ks = jax.random.split(key, 14)

    def u(k, shape, fan_in):
        bound = 1.0 / float(fan_in) ** 0.5
        return jax.random.uniform(k, shape, jnp.float32, -bound, bound)

    return dict(
        w1=u(ks[0], (16, 6, 3), 6 * 3),   b1=u(ks[1], (16,), 6 * 3),
        w2=u(ks[2], (32, 16, 3), 16 * 3), b2=u(ks[3], (32,), 16 * 3),
        w3=u(ks[4], (32, 48, 1), 48),     b3=u(ks[5], (32,), 48),
        wr1=u(ks[6], (16, 32), 32),       br1=u(ks[7], (16,), 32),
        wt1=u(ks[8], (16, 32), 32),       bt1=u(ks[9], (16,), 32),
        wpr=u(ks[10], (r_dim, 16), 16),   bpr=u(ks[11], (r_dim,), 16),
        wpt=u(ks[12], (3, 16), 16),       bpt=u(ks[13], (3,), 16),
    )


def _tpu_vmem_and_cores():
    """Returns (physical VMEM bytes, prefer-multi-step?) with conservative fallbacks."""
    vmem = 64 << 20                 # v7x per-TensorCore VMEM: the tightest budget
    prefer_multi = False
    try:
        vmem = int(pltpu.get_tpu_info().vmem_capacity_bytes)
    except Exception:
        pass
    try:
        kind = jax.devices()[0].device_kind.lower().replace(" ", "")
        # v7x has 2 TensorCores per chip -> want >= 2 parallel grid steps.
        prefer_multi = ("v7" in kind) or ("tpu7" in kind)
    except Exception:
        pass
    return vmem, prefer_multi


def _pick_block_b(b, n, vmem_budget_bytes, prefer_multi_step):
    """Largest batch tile whose per-step VMEM footprint fits the budget.

    Footprint model: ~12 live lane-padded (<=128 lane) f32 slabs per point-row
    (double-buffered x block + conv intermediates) at 512 B each.
    """
    bytes_per_row = 12 * 512
    max_bt = max(1, vmem_budget_bytes // (bytes_per_row * n))
    # legal tiles: divisors of B that are 8-aligned (output block constraint) or B itself
    legal = [d for d in range(1, b + 1) if b % d == 0 and (d == b or d % 8 == 0)]
    fitting = [d for d in legal if d <= max_bt]
    if not fitting:
        return min(legal)                          # smallest legal tile, best effort
    if prefer_multi_step:
        multi = [d for d in fitting if b // d >= 2]
        if multi:
            return max(multi)                      # v7x: keep both TensorCores busy
    return max(fitting)                            # v5e/v6e: one fat step, least overhead


def pose_regress_forward(src, tgt, params, block_b=None):
    """src, tgt: (B, N, 3).  Returns (rx:(B,R), tx:(B,3)) like PoseRegressNet.forward."""
    # PyTorch: x = cat(src.transpose(1,2), tgt.transpose(1,2), dim=1) -> (B, 6, N).
    # In channels-last layout that is simply a channel-axis concat.
    x = jnp.concatenate([src, tgt], axis=-1).astype(jnp.float32)   # (B, N, 6)
    # TODO(synk): the `tgt is None` / non-6-channel passthrough branch of forward()
    # is trivial glue (mean + linears) and is not kernelized here.
    B, N, C = x.shape
    assert C == 6, "kernel implements the 6-channel PoseRefineNetFeat path"
    assert N % 8 == 0, "point count must be 8-aligned (sublane tile)"

    r_dim = params["wpr"].shape[0]

    vmem_bytes, prefer_multi = _tpu_vmem_and_cores()
    if block_b is None:
        BT = _pick_block_b(B, N, vmem_budget_bytes=vmem_bytes // 2,
                           prefer_multi_step=prefer_multi)
    else:
        BT = block_b
    assert B % BT == 0, "batch tile must divide batch"
    assert BT == B or BT % 8 == 0, "batch tile must be 8-aligned (or the full batch)"
    M = BT * N
    vmem_limit = int(min(vmem_bytes, 128 << 20) * 0.9)

    # channels-last flat points slab, zero-padded 6 -> 8 channels so the conv1 tap
    # weight blocks are exactly (8, 16) (8-row aligned slices, zero taps contribute 0).
    x2d = jnp.pad(x.reshape(B * N, 6), ((0, 0), (0, 2)))           # (B*N, 8)

    # ---- pack all weights into one (184, 128) slab; every block 8-row aligned ----
    def tap(w, k):                                   # Conv1d weight (Cout, Cin, K) -> (Cin, Cout)
        return w[:, :, k].T                          # tap k multiplies x[n - 1 + k]

    W = jnp.zeros((184, 128), jnp.float32)
    for k in range(3):                               # conv1 taps: rows 0:8 / 8:16 / 16:24
        W = W.at[8 * k:8 * k + 6, 0:16].set(tap(params["w1"], k))
    for k in range(3):                               # conv2 taps: rows 24:40 / 40:56 / 56:72
        W = W.at[24 + 16 * k:24 + 16 * (k + 1), 0:32].set(tap(params["w2"], k))
    w3 = params["w3"][:, :, 0]                       # (32, 48)
    W = W.at[72:88, 0:32].set(w3[:, 0:16].T)         # conv3 part acting on x1
    W = W.at[88:120, 0:32].set(w3[:, 16:48].T)       # conv3 part acting on x2
    W = W.at[120:152, 0:32].set(                     # fused rh || th head
        jnp.concatenate([params["wr1"].T, params["wt1"].T], axis=1))
    wpred = jnp.zeros((32, 128), jnp.float32)        # block-diagonal pred_r || pred_t
    wpred = wpred.at[0:16, 0:r_dim].set(params["wpr"].T)
    wpred = wpred.at[16:32, r_dim:r_dim + 3].set(params["wpt"].T)
    W = W.at[152:184, :].set(wpred)

    # ---- pack all biases into one (8, 128) slab ----
    Bsl = jnp.zeros((8, 128), jnp.float32)
    Bsl = Bsl.at[0, 0:16].set(params["b1"])
    Bsl = Bsl.at[1, 0:32].set(params["b2"])
    Bsl = Bsl.at[2, 0:32].set(params["b3"])
    Bsl = Bsl.at[3, 0:16].set(params["br1"])
    Bsl = Bsl.at[3, 16:32].set(params["bt1"])
    Bsl = Bsl.at[4, 0:r_dim].set(params["bpr"])
    Bsl = Bsl.at[4, r_dim:r_dim + 3].set(params["bpt"])

    # advisory cost estimate: tiny, latency-bound kernel -> help XLA overlap it.
    flops = (B * N * (3 * 2 * 8 * 16 + 3 * 2 * 16 * 32 + 2 * 16 * 32 + 2 * 32 * 32)
             + B * (2 * 32 * 32 + 2 * 32 * 128))
    bytes_accessed = x2d.size * 4 + W.size * 4 + Bsl.size * 4 + B * 128 * 4
    cost = pl.CostEstimate(flops=flops, transcendentals=0, bytes_accessed=bytes_accessed)

    out = pl.pallas_call(
        functools.partial(_pose_regress_kernel, n_pts=N, bt=BT),
        out_shape=jax.ShapeDtypeStruct((B, 128), jnp.float32),
        grid=(B // BT,),
        in_specs=[
            pl.BlockSpec((M, 8), lambda b: (b, 0)),            # BT batch elems of points
            pl.BlockSpec(W.shape, lambda b: (0, 0)),           # fused weight slab (~92 KB)
            pl.BlockSpec(Bsl.shape, lambda b: (0, 0)),         # fused bias slab (~4 KB)
        ],
        out_specs=pl.BlockSpec((BT, 128), lambda b: (b, 0)),   # per-step, lane-dense output
        compiler_params=pltpu.CompilerParams(
            dimension_semantics=("parallel",),
            vmem_limit_bytes=vmem_limit),
        cost_estimate=cost,
    )(x2d, W, Bsl)

    rx = out[:, :r_dim]
    tx = out[:, r_dim:r_dim + 3]
    return rx, tx


def reference_forward(src, tgt, params):
    """Pure-JAX reference mirroring PoseRegressNet.forward (for validation)."""
    x = jnp.concatenate([src, tgt], axis=-1)            # (B, N, 6)

    def conv3(xin, w, bias):                            # w: (Cout, Cin, 3)
        xp = jnp.pad(xin, ((0, 0), (1, 1), (0, 0)))
        y = (jnp.einsum("bnc,oc->bno", xp[:, :-2], w[:, :, 0])
             + jnp.einsum("bnc,oc->bno", xp[:, 1:-1], w[:, :, 1])
             + jnp.einsum("bnc,oc->bno", xp[:, 2:], w[:, :, 2]) + bias)
        return y

    x1 = _leaky(conv3(x, params["w1"], params["b1"]))
    x2 = _leaky(conv3(x1, params["w2"], params["b2"]))
    pf = jnp.concatenate([x1, x2], axis=-1)
    x3 = _leaky(jnp.einsum("bnc,oc->bno", pf, params["w3"][:, :, 0]) + params["b3"])
    feat = x3.mean(axis=1)                              # (B, 32)
    rh = _leaky(feat @ params["wr1"].T + params["br1"])
    th = _leaky(feat @ params["wt1"].T + params["bt1"])
    rx = rh @ params["wpr"].T + params["bpr"]
    tx = th @ params["wpt"].T + params["bpt"]
    return rx, tx


if __name__ == "__main__":
    key = jax.random.PRNGKey(0)
    k_src, k_tgt, k_par = jax.random.split(key, 3)
    B, N = 16, 64
    src = jax.random.normal(k_src, (B, N, 3), jnp.float32)
    tgt = jax.random.normal(k_tgt, (B, N, 3), jnp.float32)
    params = init_params(k_par, mode="quat")

    rx_ref, tx_ref = reference_forward(src, tgt, params)

    # Multi-step grid path (BT=8 -> grid=(2,)), exercises batch-boundary masks.
    rx, tx = pose_regress_forward(src, tgt, params, block_b=8)
    jax.block_until_ready((rx, tx))

    # Default path (auto tile picker: fat step on v5e/v6e, >=2 steps on v7x).
    rx2, tx2 = pose_regress_forward(src, tgt, params)
    jax.block_until_ready((rx2, tx2))

    assert rx.shape == (B, 4) and tx.shape == (B, 3)
    err = max(float(jnp.max(jnp.abs(rx - rx_ref))),
              float(jnp.max(jnp.abs(tx - tx_ref))),
              float(jnp.max(jnp.abs(rx2 - rx_ref))),
              float(jnp.max(jnp.abs(tx2 - tx_ref))))
    assert err < 1e-3, f"max abs error {err}"
    print("KERNEL_OK")
</pallas_src>

<mosaic_0001>
module attributes {stable_mosaic.version = 11 : i64} {
  func.func @_pose_regress_kernel(%arg0: i32, %arg1: memref<512x8xf32, #tpu.memory_space<vmem>>, %arg2: memref<184x128xf32, #tpu.memory_space<vmem>>, %arg3: memref<8x128xf32, #tpu.memory_space<vmem>>, %arg4: memref<8x128xf32, #tpu.memory_space<vmem>>) attributes {dimension_semantics = [#tpu.dimension_semantics<parallel>], iteration_bounds = array<i64: 2>, scalar_prefetch = 0 : i64, scratch_operands = 0 : i64, tpu.core_type = #tpu.core_type<tc>, window_params = [{transform_indices = @transform_0, window_bounds = array<i64: 512, 8>}, {pipeline_mode = #tpu.pipeline_mode<synchronous>, transform_indices = @transform_1, window_bounds = array<i64: 184, 128>}, {pipeline_mode = #tpu.pipeline_mode<synchronous>, transform_indices = @transform_2, window_bounds = array<i64: 8, 128>}, {transform_indices = @transform_3, window_bounds = array<i64: 8, 128>}]} {
    %c0 = arith.constant 0 : index
    %c0_0 = arith.constant 0 : index
    %0 = vector.load %arg1[%c0, %c0_0] : memref<512x8xf32, #tpu.memory_space<vmem>>, vector<512x8xf32>
    %1 = tpu.iota {dimensions = array<i32: 1>} : vector<8x64x1xi32>
    %2 = vector.shape_cast %1 : vector<8x64x1xi32> to vector<512x1xi32>
    %c0_i32 = arith.constant 0 : i32
    %3 = vector.broadcast %c0_i32 : i32 to vector<512x1xi32>
    %4 = arith.cmpi ne, %2, %3 : vector<512x1xi32>
    %c63_i32 = arith.constant 63 : i32
    %5 = vector.broadcast %c63_i32 : i32 to vector<512x1xi32>
    %6 = arith.cmpi ne, %2, %5 : vector<512x1xi32>
    %c1_i32 = arith.constant 1 : i32
    %7 = tpu.dynamic_rotate %0 by %c1_i32 dim 0 : vector<512x8xf32>, i32 -> vector<512x8xf32>
    %cst = arith.constant 0.000000e+00 : f32
    %8 = vector.shape_cast %4 : vector<512x1xi1> to vector<512x1xi1>
    %9 = vector.broadcast %8 : vector<512x1xi1> to vector<512x8xi1>
    %10 = vector.broadcast %cst : f32 to vector<512x8xf32>
    %11 = arith.select %9, %7, %10 : vector<512x8xi1>, vector<512x8xf32>
    %c511_i32 = arith.constant 511 : i32
    %12 = tpu.dynamic_rotate %0 by %c511_i32 dim 0 : vector<512x8xf32>, i32 -> vector<512x8xf32>
    %cst_1 = arith.constant 0.000000e+00 : f32
    %13 = vector.shape_cast %6 : vector<512x1xi1> to vector<512x1xi1>
    %14 = vector.broadcast %13 : vector<512x1xi1> to vector<512x8xi1>
    %15 = vector.broadcast %cst_1 : f32 to vector<512x8xf32>
    %16 = arith.select %14, %12, %15 : vector<512x8xi1>, vector<512x8xf32>
    %c0_2 = arith.constant 0 : index
    %c0_3 = arith.constant 0 : index
    %17 = vector.load %arg2[%c0_2, %c0_3] : memref<184x128xf32, #tpu.memory_space<vmem>>, vector<8x16xf32>
    %cst_4 = arith.constant dense<0.000000e+00> : vector<512x16xf32>
    %18 = tpu.matmul %11, %17, %cst_4 {dimension_numbers = #tpu.dot_dimension_numbers<[1], [0], [0], [1], [0, 0, 1, 1], [], []>} : vector<512x8xf32>, vector<8x16xf32>, vector<512x16xf32> -> vector<512x16xf32>
    %c8 = arith.constant 8 : index
    %c0_5 = arith.constant 0 : index
    %19 = vector.load %arg2[%c8, %c0_5] : memref<184x128xf32, #tpu.memory_space<vmem>>, vector<8x16xf32>
    %cst_6 = arith.constant dense<0.000000e+00> : vector<512x16xf32>
    %20 = tpu.matmul %0, %19, %cst_6 {dimension_numbers = #tpu.dot_dimension_numbers<[1], [0], [0], [1], [0, 0, 1, 1], [], []>} : vector<512x8xf32>, vector<8x16xf32>, vector<512x16xf32> -> vector<512x16xf32>
    %21 = arith.addf %18, %20 : vector<512x16xf32>
    %c16 = arith.constant 16 : index
    %c0_7 = arith.constant 0 : index
    %22 = vector.load %arg2[%c16, %c0_7] : memref<184x128xf32, #tpu.memory_space<vmem>>, vector<8x16xf32>
    %cst_8 = arith.constant dense<0.000000e+00> : vector<512x16xf32>
    %23 = tpu.matmul %16, %22, %cst_8 {dimension_numbers = #tpu.dot_dimension_numbers<[1], [0], [0], [1], [0, 0, 1, 1], [], []>} : vector<512x8xf32>, vector<8x16xf32>, vector<512x16xf32> -> vector<512x16xf32>
    %24 = arith.addf %21, %23 : vector<512x16xf32>
    %c0_9 = arith.constant 0 : index
    %c0_10 = arith.constant 0 : index
    %25 = vector.load %arg3[%c0_9, %c0_10] : memref<8x128xf32, #tpu.memory_space<vmem>>, vector<1x16xf32>
    %26 = vector.broadcast %25 : vector<1x16xf32> to vector<512x16xf32>
    %27 = arith.addf %24, %26 : vector<512x16xf32>
    %cst_11 = arith.constant 0.00999999977 : f32
    %28 = vector.broadcast %cst_11 : f32 to vector<512x16xf32>
    %29 = arith.mulf %28, %27 : vector<512x16xf32>
    %30 = arith.maximumf %27, %29 : vector<512x16xf32>
    %c1_i32_12 = arith.constant 1 : i32
    %31 = tpu.dynamic_rotate %30 by %c1_i32_12 dim 0 : vector<512x16xf32>, i32 -> vector<512x16xf32>
    %cst_13 = arith.constant 0.000000e+00 : f32
    %32 = vector.shape_cast %4 : vector<512x1xi1> to vector<512x1xi1>
    %33 = vector.broadcast %32 : vector<512x1xi1> to vector<512x16xi1>
    %34 = vector.broadcast %cst_13 : f32 to vector<512x16xf32>
    %35 = arith.select %33, %31, %34 : vector<512x16xi1>, vector<512x16xf32>
    %c511_i32_14 = arith.constant 511 : i32
    %36 = tpu.dynamic_rotate %30 by %c511_i32_14 dim 0 : vector<512x16xf32>, i32 -> vector<512x16xf32>
    %cst_15 = arith.constant 0.000000e+00 : f32
    %37 = vector.shape_cast %6 : vector<512x1xi1> to vector<512x1xi1>
    %38 = vector.broadcast %37 : vector<512x1xi1> to vector<512x16xi1>
    %39 = vector.broadcast %cst_15 : f32 to vector<512x16xf32>
    %40 = arith.select %38, %36, %39 : vector<512x16xi1>, vector<512x16xf32>
    %c24 = arith.constant 24 : index
    %c0_16 = arith.constant 0 : index
    %41 = vector.load %arg2[%c24, %c0_16] : memref<184x128xf32, #tpu.memory_space<vmem>>, vector<16x32xf32>
    %cst_17 = arith.constant dense<0.000000e+00> : vector<512x32xf32>
    %42 = tpu.matmul %35, %41, %cst_17 {dimension_numbers = #tpu.dot_dimension_numbers<[1], [0], [0], [1], [0, 0, 1, 1], [], []>} : vector<512x16xf32>, vector<16x32xf32>, vector<512x32xf32> -> vector<512x32xf32>
    %c40 = arith.constant 40 : index
    %c0_18 = arith.constant 0 : index
    %43 = vector.load %arg2[%c40, %c0_18] : memref<184x128xf32, #tpu.memory_space<vmem>>, vector<16x32xf32>
    %cst_19 = arith.constant dense<0.000000e+00> : vector<512x32xf32>
    %44 = tpu.matmul %30, %43, %cst_19 {dimension_numbers = #tpu.dot_dimension_numbers<[1], [0], [0], [1], [0, 0, 1, 1], [], []>} : vector<512x16xf32>, vector<16x32xf32>, vector<512x32xf32> -> vector<512x32xf32>
    %45 = arith.addf %42, %44 : vector<512x32xf32>
    %c56 = arith.constant 56 : index
    %c0_20 = arith.constant 0 : index
    %46 = vector.load %arg2[%c56, %c0_20] : memref<184x128xf32, #tpu.memory_space<vmem>>, vector<16x32xf32>
    %cst_21 = arith.constant dense<0.000000e+00> : vector<512x32xf32>
    %47 = tpu.matmul %40, %46, %cst_21 {dimension_numbers = #tpu.dot_dimension_numbers<[1], [0], [0], [1], [0, 0, 1, 1], [], []>} : vector<512x16xf32>, vector<16x32xf32>, vector<512x32xf32> -> vector<512x32xf32>
    %48 = arith.addf %45, %47 : vector<512x32xf32>
    %c1 = arith.constant 1 : index
    %c0_22 = arith.constant 0 : index
    %49 = vector.load %arg3[%c1, %c0_22] : memref<8x128xf32, #tpu.memory_space<vmem>>, vector<1x32xf32>
    %50 = vector.broadcast %49 : vector<1x32xf32> to vector<512x32xf32>
    %51 = arith.addf %48, %50 : vector<512x32xf32>
    %cst_23 = arith.constant 0.00999999977 : f32
    %52 = vector.broadcast %cst_23 : f32 to vector<512x32xf32>
    %53 = arith.mulf %52, %51 : vector<512x32xf32>
    %54 = arith.maximumf %51, %53 : vector<512x32xf32>
    %c72 = arith.constant 72 : index
    %c0_24 = arith.constant 0 : index
    %55 = vector.load %arg2[%c72, %c0_24] : memref<184x128xf32, #tpu.memory_space<vmem>>, vector<16x32xf32>
    %cst_25 = arith.constant dense<0.000000e+00> : vector<512x32xf32>
    %56 = tpu.matmul %30, %55, %cst_25 {dimension_numbers = #tpu.dot_dimension_numbers<[1], [0], [0], [1], [0, 0, 1, 1], [], []>} : vector<512x16xf32>, vector<16x32xf32>, vector<512x32xf32> -> vector<512x32xf32>
    %c88 = arith.constant 88 : index
    %c0_26 = arith.constant 0 : index
    %57 = vector.load %arg2[%c88, %c0_26] : memref<184x128xf32, #tpu.memory_space<vmem>>, vector<32x32xf32>
    %cst_27 = arith.constant dense<0.000000e+00> : vector<512x32xf32>
    %58 = tpu.matmul %54, %57, %cst_27 {dimension_numbers = #tpu.dot_dimension_numbers<[1], [0], [0], [1], [0, 0, 1, 1], [], []>} : vector<512x32xf32>, vector<32x32xf32>, vector<512x32xf32> -> vector<512x32xf32>
    %59 = arith.addf %56, %58 : vector<512x32xf32>
    %c2 = arith.constant 2 : index
    %c0_28 = arith.constant 0 : index
    %60 = vector.load %arg3[%c2, %c0_28] : memref<8x128xf32, #tpu.memory_space<vmem>>, vector<1x32xf32>
    %61 = vector.broadcast %60 : vector<1x32xf32> to vector<512x32xf32>
    %62 = arith.addf %59, %61 : vector<512x32xf32>
    %cst_29 = arith.constant 0.00999999977 : f32
    %63 = vector.broadcast %cst_29 : f32 to vector<512x32xf32>
    %64 = arith.mulf %63, %62 : vector<512x32xf32>
    %65 = arith.maximumf %62, %64 : vector<512x32xf32>
    %66 = vector.shape_cast %65 : vector<512x32xf32> to vector<8x64x32xf32>
    %cst_30 = arith.constant dense<0.000000e+00> : vector<8x32xf32>
    %67 = vector.multi_reduction <add>, %66, %cst_30 [1] : vector<8x64x32xf32> to vector<8x32xf32>
    %cst_31 = arith.constant 6.400000e+01 : f32
    %68 = vector.broadcast %cst_31 : f32 to vector<8x32xf32>
    %69 = arith.divf %67, %68 : vector<8x32xf32>
    %c120 = arith.constant 120 : index
    %c0_32 = arith.constant 0 : index
    %70 = vector.load %arg2[%c120, %c0_32] : memref<184x128xf32, #tpu.memory_space<vmem>>, vector<32x32xf32>
    %cst_33 = arith.constant dense<0.000000e+00> : vector<8x32xf32>
    %71 = tpu.matmul %69, %70, %cst_33 {dimension_numbers = #tpu.dot_dimension_numbers<[1], [0], [0], [1], [0, 0, 1, 1], [], []>} : vector<8x32xf32>, vector<32x32xf32>, vector<8x32xf32> -> vector<8x32xf32>
    %c3 = arith.constant 3 : index
    %c0_34 = arith.constant 0 : index
    %72 = vector.load %arg3[%c3, %c0_34] : memref<8x128xf32, #tpu.memory_space<vmem>>, vector<1x32xf32>
    %73 = vector.broadcast %72 : vector<1x32xf32> to vector<8x32xf32>
    %74 = arith.addf %71, %73 : vector<8x32xf32>
    %cst_35 = arith.constant 0.00999999977 : f32
    %75 = vector.broadcast %cst_35 : f32 to vector<8x32xf32>
    %76 = arith.mulf %75, %74 : vector<8x32xf32>
    %77 = arith.maximumf %74, %76 : vector<8x32xf32>
    %c152 = arith.constant 152 : index
    %c0_36 = arith.constant 0 : index
    %78 = vector.load %arg2[%c152, %c0_36] : memref<184x128xf32, #tpu.memory_space<vmem>>, vector<32x128xf32>
    %cst_37 = arith.constant dense<0.000000e+00> : vector<8x128xf32>
    %79 = tpu.matmul %77, %78, %cst_37 {dimension_numbers = #tpu.dot_dimension_numbers<[1], [0], [0], [1], [0, 0, 1, 1], [], []>} : vector<8x32xf32>, vector<32x128xf32>, vector<8x128xf32> -> vector<8x128xf32>
    %c4 = arith.constant 4 : index
    %c0_38 = arith.constant 0 : index
    %80 = vector.load %arg3[%c4, %c0_38] : memref<8x128xf32, #tpu.memory_space<vmem>>, vector<1x128xf32>
    %81 = vector.broadcast %80 : vector<1x128xf32> to vector<8x128xf32>
    %82 = arith.addf %79, %81 : vector<8x128xf32>
    %c0_39 = arith.constant 0 : index
    %c0_40 = arith.constant 0 : index
    %83 = vector.load %arg4[%c0_39, %c0_40] : memref<8x128xf32, #tpu.memory_space<vmem>>, vector<8x128xf32>
    tpu.vector_store %arg4[%c0_39, %c0_40], %82 {strides = array<i32>} : memref<8x128xf32, #tpu.memory_space<vmem>>, vector<8x128xf32>,
    return
  }
  func.func @transform_0(%arg0: i32) -> (i32, i32) {
    %c0_i32 = arith.constant 0 : i32
    %c0_i32_0 = arith.constant 0 : i32
    return %arg0, %c0_i32 : i32, i32
  }
  func.func @transform_1(%arg0: i32) -> (i32, i32) {
    %c0_i32 = arith.constant 0 : i32
    %c0_i32_0 = arith.constant 0 : i32
    %c0_i32_1 = arith.constant 0 : i32
    return %c0_i32, %c0_i32_0 : i32, i32
  }
  func.func @transform_2(%arg0: i32) -> (i32, i32) {
    %c0_i32 = arith.constant 0 : i32
    %c0_i32_0 = arith.constant 0 : i32
    %c0_i32_1 = arith.constant 0 : i32
    return %c0_i32, %c0_i32_0 : i32, i32
  }
  func.func @transform_3(%arg0: i32) -> (i32, i32) {
    %c0_i32 = arith.constant 0 : i32
    %c0_i32_0 = arith.constant 0 : i32
    return %arg0, %c0_i32 : i32, i32
  }
}

</mosaic_0001>

<llo_original>
// kernel: tpu_custom_call.1
$region0: #{tpu_custom_call.1}
  #allocation0 [shape = 'u32[]', space=smem, size = 0x4, offset = 0x4, fixed_abs, tag = 'smem constant byte address 0x4 - core index']
  #allocation1 [shape = 'u32[144,128]{1,0:T(1,128)}', space=vmem, size = 0x12000, scoped, tag = 'internal scratch']
  %s0 = inlined_call_operand.vmem [shape: f32[1024,8], index: 0, kind: input, shape index: {}]
  %s1 = inlined_call_operand.vmem [shape: f32[184,128], index: 1, kind: input, shape index: {}]
  %s2 = inlined_call_operand.vmem [shape: f32[8,128], index: 2, kind: input, shape index: {}]
  %s3 = inlined_call_operand.hbm [shape: f32[16,128], index: 3, kind: output, shape index: {}]
  %s4 = sld [smem:[#allocation0]]
  $region45: #{tpu_custom_call.1} parent=0
    _
  %s6 = ssub.s32 1, %s4
  %s7 = scalar_select 0, %s6, %s4
  $region1: #{tpu_custom_call.1} parent=0
    #allocation2 [shape = 'u8[8192]{0}', space=vmem, size = 0x2000, scoped, tag = 'output window, operand 0']
    #allocation3 [shape = 's32[2]{0}', space=sflag, size = 0x8, scoped, tag = 'scoped memory for tpu_custom_call.1']
    %8 = vsyncpa [#allocation3], 0
    %s9 = scalar_lea.sflag [#allocation3], 1
    %10 = vsyncpa %s9, 0
    loop: start=0, step=1, limit=4
    $region2: #{tpu_custom_call.1} parent=1 // loop_pre_header
      _
    $region3: #{tpu_custom_call.1} parent=1 // loop_header
      %s12 = sphi 0, %s16
      %p13 = scmp.ge.s32.totalorder %s12, 4
      %s22 = sphi 0, %s24
      %s25 = sphi 0, %s22
      %s26 = sphi 0, %s25
      %s42 = sphi 0, %s26
      %s46 = sphi 0, %s46
      %s48 = sphi 0, %s46
      %s49 = sphi 0, %s48
      %s63 = sphi 0, %s49
      %s67 = sphi 0, %s67
      %s69 = sphi 0, %s67
      %s70 = sphi 0, %s69
      %s84 = sphi 0, %s70
      %s90 = sphi 0, %s92
      %s93 = sphi 0, %s90
      %s94 = sphi 0, %s93
      %s110 = sphi 0, %s94
    $region4: #{tpu_custom_call.1} parent=1 // loop_header_branch
      %15 = sbr.rel (%p13) target = $region8
    $region5: #{tpu_custom_call.1} parent=1 // loop_body
      %s17 = ssub.s32 %s12, 1
      %s18 = ssub.s32 %s12, 2
      %s19 = sadd.s32 %s12, 1
      %s20 = ssub.s32 %s12, %s19
      %p21 = scmp.eq.s32.totalorder %s20, 0
      %s23 = sadd.s32 %s22, 1
      %s24 = scalar_select %p21, %s22, %s23
      %p27 = pneg %p21
      %p28 = scmp.eq.s32.totalorder %s12, 1
      %p29 = por %p27, %p28
      %p30 = scmp.ne.s32.totalorder %s22, %s25
      %p31 = scmp.eq.s32.totalorder %s12, 0
      %p32 = por %p30, %p31
      %p33 = scmp.ne.s32.totalorder %s22, %s25
      %p34 = scmp.eq.s32.totalorder %s17, 1
      %p35 = por %p33, %p34
      %p36 = scmp.ne.s32.totalorder %s25, %s26
      %p37 = scmp.eq.s32.totalorder %s17, 0
      %p38 = por %p36, %p37
      %p39 = scmp.ne.s32.totalorder %s25, %s26
      %p40 = scmp.eq.s32.totalorder %s18, 1
      %p41 = por %p39, %p40
      %p43 = scmp.ne.s32.totalorder %s26, %s42
      %p44 = scmp.eq.s32.totalorder %s18, 0
      %p45 = por %p43, %p44
      %s47 = sadd.s32 %s46, 1
      %p50 = scmp.eq.s32.totalorder %s12, 1
      %p51 = scmp.ne.s32.totalorder %s46, %s48
      %p52 = scmp.eq.s32.totalorder %s12, 0
      %p53 = por %p51, %p52
      %p54 = scmp.ne.s32.totalorder %s46, %s48
      %p55 = scmp.eq.s32.totalorder %s17, 1
      %p56 = por %p54, %p55
      %p57 = scmp.ne.s32.totalorder %s48, %s49
      %p58 = scmp.eq.s32.totalorder %s17, 0
      %p59 = por %p57, %p58
      %p60 = scmp.ne.s32.totalorder %s48, %s49
      %p61 = scmp.eq.s32.totalorder %s18, 1
      %p62 = por %p60, %p61
      %p64 = scmp.ne.s32.totalorder %s49, %s63
      %p65 = scmp.eq.s32.totalorder %s18, 0
      %p66 = por %p64, %p65
      %s68 = sadd.s32 %s67, 1
      %p71 = scmp.eq.s32.totalorder %s12, 1
      %p72 = scmp.ne.s32.totalorder %s67, %s69
      %p73 = scmp.eq.s32.totalorder %s12, 0
      %p74 = por %p72, %p73
      %p75 = scmp.ne.s32.totalorder %s67, %s69
      %p76 = scmp.eq.s32.totalorder %s17, 1
      %p77 = por %p75, %p76
      %p78 = scmp.ne.s32.totalorder %s69, %s70
      %p79 = scmp.eq.s32.totalorder %s17, 0
      %p80 = por %p78, %p79
      %p81 = scmp.ne.s32.totalorder %s69, %s70
      %p82 = scmp.eq.s32.totalorder %s18, 1
      %p83 = por %p81, %p82
      %p85 = scmp.ne.s32.totalorder %s70, %s84
      %p86 = scmp.eq.s32.totalorder %s18, 0
      %p87 = por %p85, %p86
      %s88 = ssub.s32 %s12, %s19
      %p89 = scmp.eq.s32.totalorder %s88, 0
      %s91 = sadd.s32 %s90, 1
      %s92 = scalar_select %p89, %s90, %s91
      %p95 = pneg %p89
      %p96 = scmp.eq.s32.totalorder %s12, 1
      %p97 = por %p95, %p96
      %p98 = scmp.ne.s32.totalorder %s90, %s93
      %p99 = scmp.eq.s32.totalorder %s12, 0
      %p100 = por %p98, %p99
      %p101 = scmp.ne.s32.totalorder %s90, %s93
      %p102 = scmp.eq.s32.totalorder %s17, 1
      %p103 = por %p101, %p102
      %p104 = scmp.ne.s32.totalorder %s93, %s94
      %p105 = scmp.eq.s32.totalorder %s17, 0
      %p106 = por %p104, %p105
      %p107 = scmp.ne.s32.totalorder %s93, %s94
      %p108 = scmp.eq.s32.totalorder %s18, 1
      %p109 = por %p107, %p108
      %p111 = scmp.ne.s32.totalorder %s94, %s110
      %p112 = scmp.eq.s32.totalorder %s18, 0
      %p113 = por %p111, %p112
      %p114 = scmp.le.s32.totalorder 1, %s12
      %p115 = scmp.lt.s32.totalorder %s12, 3
      %p116 = pnand %p114, %p115
      %p117 = pneg %p116
      // Predicated region
      $region9: #{tpu_custom_call.1} parent=5 // pred_check
        _
      $region10: #{tpu_custom_call.1} parent=5 // pred_check_branch
        %119 = sbr.rel (%p116) target = $region12
      $region11: #{tpu_custom_call.1} parent=5 // pred_region
        %s120 = ssub.s32 %s12, 1
        // Predicated region
        $region13: #{tpu_custom_call.1} parent=11 // pred_check
          %p121 = pneg %p59
        $region14: #{tpu_custom_call.1} parent=11 // pred_check_branch
          %123 = sbr.rel (%p121) target = $region16
        $region15: #{tpu_custom_call.1} parent=11 // pred_region
          _
        $region16: #{tpu_custom_call.1} parent=11 // pred_fallthru
          _
        // Predicated region
        $region17: #{tpu_custom_call.1} parent=11 // pred_check
          %p124 = pneg %p80
        $region18: #{tpu_custom_call.1} parent=11 // pred_check_branch
          %126 = sbr.rel (%p124) target = $region20
        $region19: #{tpu_custom_call.1} parent=11 // pred_region
          _
        $region20: #{tpu_custom_call.1} parent=11 // pred_fallthru
          _
      $region12: #{tpu_custom_call.1} parent=5 // pred_fallthru
        _
      %p127 = scmp.lt.s32.totalorder %s12, 2
      // Predicated region
      $region21: #{tpu_custom_call.1} parent=5 // pred_check
        %p128 = pneg %p127
      $region22: #{tpu_custom_call.1} parent=5 // pred_check_branch
        %130 = sbr.rel (%p128) target = $region24
      $region23: #{tpu_custom_call.1} parent=5 // pred_region
        // Predicated region
        $region25: #{tpu_custom_call.1} parent=23 // pred_check
          %p131 = pneg %p32
        $region26: #{tpu_custom_call.1} parent=23 // pred_check_branch
          %133 = sbr.rel (%p131) target = $region28
        $region27: #{tpu_custom_call.1} parent=23 // pred_region
          %s134 = smul.u32 64, %s12
          %p135 = scmp.lt.s32.totalorder %s134, 127
          %s136 = scalar_select %p135, %s134, 127
          %s137 = smul.addr %s136, 8
          %s138 = scalar_lea.vmem %s0, %s137
          %s139 = smul.u32 64, %s12
        $region28: #{tpu_custom_call.1} parent=23 // pred_fallthru
          _
      $region24: #{tpu_custom_call.1} parent=5 // pred_fallthru
        _
      %p140 = scmp.le.s32.totalorder 1, %s12
      %p141 = scmp.lt.s32.totalorder %s12, 3
      %p142 = pnand %p140, %p141
      %p143 = pneg %p142
      // Predicated region
      $region29: #{tpu_custom_call.1} parent=5 // pred_check
        _
      $region30: #{tpu_custom_call.1} parent=5 // pred_check_branch
        %145 = sbr.rel (%p142) target = $region32
      $region31: #{tpu_custom_call.1} parent=5 // pred_region
        %s146 = ssub.s32 %s12, 1
        %s147 = smul.u32 64, %s17
        %p148 = scmp.lt.s32.totalorder %s147, 127
        %s149 = scalar_select %p148, %s147, 127
        %s150 = smul.addr %s149, 8
        %s151 = scalar_lea.vmem %s0, %s150
        %p152 = pneg %p38
        %p153 = pneg %p35
        %p154 = pneg %p59
        %p155 = pneg %p56
        %p156 = pneg %p80
        %p157 = pneg %p77
        %p158 = pneg %p106
        %p159 = pneg %p103
        %s160 = sand.u32 %s93, 1
        %s161 = scalar_lea.sflag [#allocation3], %s160
        %s162 = sand.u32 %s93, 1
        %s163 = smul.addr %s162, 8
        %s164 = scalar_lea.vmem [#allocation2], %s163
        %s165 = smul.u32 64, %s17
        %p166 = scmp.lt.s32.totalorder %s165, 127
        %s167 = scalar_select %p166, %s165, 127
        %s168 = smul.addr %s167, 8
        %s169 = scalar_lea.vmem %s0, %s168
        %s170 = smul.u32 64, %s17
        %v171 = vld [vmem:[%s169] sm:$0xff]
        %v172 = vld [vmem:[%s169 + $0x8] sm:$0xff]
        %v173 = vld [vmem:[%s169 + $0x10] sm:$0xff]
        %v174 = vld [vmem:[%s169 + $0x18] sm:$0xff]
        %v175 = vld [vmem:[%s169 + $0x20] sm:$0xff]
        %v176 = vld [vmem:[%s169 + $0x28] sm:$0xff]
        %v177 = vld [vmem:[%s169 + $0x30] sm:$0xff]
        %v178 = vld [vmem:[%s169 + $0x38] sm:$0xff]
        %v179 = vld [vmem:[%s169 + $0x40] sm:$0xff]
        %v180 = vld [vmem:[%s169 + $0x48] sm:$0xff]
        %v181 = vld [vmem:[%s169 + $0x50] sm:$0xff]
        %v182 = vld [vmem:[%s169 + $0x58] sm:$0xff]
        %v183 = vld [vmem:[%s169 + $0x60] sm:$0xff]
        %v184 = vld [vmem:[%s169 + $0x68] sm:$0xff]
        %v185 = vld [vmem:[%s169 + $0x70] sm:$0xff]
        %v186 = vld [vmem:[%s169 + $0x78] sm:$0xff]
        %v187 = vld [vmem:[%s169 + $0x80] sm:$0xff]
        %v188 = vld [vmem:[%s169 + $0x88] sm:$0xff]
        %v189 = vld [vmem:[%s169 + $0x90] sm:$0xff]
        %v190 = vld [vmem:[%s169 + $0x98] sm:$0xff]
        %v191 = vld [vmem:[%s169 + $0xa0] sm:$0xff]
        %v192 = vld [vmem:[%s169 + $0xa8] sm:$0xff]
        %v193 = vld [vmem:[%s169 + $0xb0] sm:$0xff]
        %v194 = vld [vmem:[%s169 + $0xb8] sm:$0xff]
        %v195 = vld [vmem:[%s169 + $0xc0] sm:$0xff]
        %v196 = vld [vmem:[%s169 + $0xc8] sm:$0xff]
        %v197 = vld [vmem:[%s169 + $0xd0] sm:$0xff]
        %v198 = vld [vmem:[%s169 + $0xd8] sm:$0xff]
        %v199 = vld [vmem:[%s169 + $0xe0] sm:$0xff]
        %v200 = vld [vmem:[%s169 + $0xe8] sm:$0xff]
        %v201 = vld [vmem:[%s169 + $0xf0] sm:$0xff]
        %v202 = vld [vmem:[%s169 + $0xf8] sm:$0xff]
        %v203 = vld [vmem:[%s169 + $0x100] sm:$0xff]
        %v204 = vld [vmem:[%s169 + $0x108] sm:$0xff]
        %v205 = vld [vmem:[%s169 + $0x110] sm:$0xff]
        %v206 = vld [vmem:[%s169 + $0x118] sm:$0xff]
        %v207 = vld [vmem:[%s169 + $0x120] sm:$0xff]
        %v208 = vld [vmem:[%s169 + $0x128] sm:$0xff]
        %v209 = vld [vmem:[%s169 + $0x130] sm:$0xff]
        %v210 = vld [vmem:[%s169 + $0x138] sm:$0xff]
        %v211 = vld [vmem:[%s169 + $0x140] sm:$0xff]
        %v212 = vld [vmem:[%s169 + $0x148] sm:$0xff]
        %v213 = vld [vmem:[%s169 + $0x150] sm:$0xff]
        %v214 = vld [vmem:[%s169 + $0x158] sm:$0xff]
        %v215 = vld [vmem:[%s169 + $0x160] sm:$0xff]
        %v216 = vld [vmem:[%s169 + $0x168] sm:$0xff]
        %v217 = vld [vmem:[%s169 + $0x170] sm:$0xff]
        %v218 = vld [vmem:[%s169 + $0x178] sm:$0xff]
        %v219 = vld [vmem:[%s169 + $0x180] sm:$0xff]
        %v220 = vld [vmem:[%s169 + $0x188] sm:$0xff]
        %v221 = vld [vmem:[%s169 + $0x190] sm:$0xff]
        %v222 = vld [vmem:[%s169 + $0x198] sm:$0xff]
        %v223 = vld [vmem:[%s169 + $0x1a0] sm:$0xff]
        %v224 = vld [vmem:[%s169 + $0x1a8] sm:$0xff]
        %v225 = vld [vmem:[%s169 + $0x1b0] sm:$0xff]
        %v226 = vld [vmem:[%s169 + $0x1b8] sm:$0xff]
        %v227 = vld [vmem:[%s169 + $0x1c0] sm:$0xff]
        %v228 = vld [vmem:[%s169 + $0x1c8] sm:$0xff]
        %v229 = vld [vmem:[%s169 + $0x1d0] sm:$0xff]
        %v230 = vld [vmem:[%s169 + $0x1d8] sm:$0xff]
        %v231 = vld [vmem:[%s169 + $0x1e0] sm:$0xff]
        %v232 = vld [vmem:[%s169 + $0x1e8] sm:$0xff]
        %v233 = vld [vmem:[%s169 + $0x1f0] sm:$0xff]
        %v234 = vld [vmem:[%s169 + $0x1f8] sm:$0xff]
        %v235 = vlaneseq
        %v236 = vshrl.u32 %v235, 7
        %v237 = vadd.s32 %v236, 8
        %v238 = vadd.s32 %v236, 16
        %v239 = vadd.s32 %v236, 24
        %v240 = vadd.s32 %v236, 32
        %v241 = vadd.s32 %v236, 40
        %v242 = vadd.s32 %v236, 48
        %v243 = vadd.s32 %v236, 56
        %vm244 = vcmp.ne.s32.totalorder %v236, 0
        %vm245 = vcmp.ne.s32.totalorder %v237, 0
        %vm246 = vcmp.ne.s32.totalorder %v238, 0
        %vm247 = vcmp.ne.s32.totalorder %v239, 0
        %vm248 = vcmp.ne.s32.totalorder %v240, 0
        %vm249 = vcmp.ne.s32.totalorder %v241, 0
        %vm250 = vcmp.ne.s32.totalorder %v242, 0
        %vm251 = vcmp.ne.s32.totalorder %v243, 0
        %vm252 = vcmp.ne.s32.totalorder %v236, 63
        %vm253 = vcmp.ne.s32.totalorder %v237, 63
        %vm254 = vcmp.ne.s32.totalorder %v238, 63
        %vm255 = vcmp.ne.s32.totalorder %v239, 63
        %vm256 = vcmp.ne.s32.totalorder %v240, 63
        %vm257 = vcmp.ne.s32.totalorder %v241, 63
        %vm258 = vcmp.ne.s32.totalorder %v242, 63
        %vm259 = vcmp.ne.s32.totalorder %v243, 63
        %v260 = vrot.slane %v171, 7
        %v261 = vrot.slane %v172, 7
        %v262 = vrot.slane %v173, 7
        %v263 = vrot.slane %v174, 7
        %v264 = vrot.slane %v175, 7
        %v265 = vrot.slane %v176, 7
        %v266 = vrot.slane %v177, 7
        %v267 = vrot.slane %v178, 7
        %v268 = vrot.slane %v179, 7
        %v269 = vrot.slane %v180, 7
        %v270 = vrot.slane %v181, 7
        %v271 = vrot.slane %v182, 7
        %v272 = vrot.slane %v183, 7
        %v273 = vrot.slane %v184, 7
        %v274 = vrot.slane %v185, 7
        %v275 = vrot.slane %v186, 7
        %v276 = vrot.slane %v187, 7
        %v277 = vrot.slane %v188, 7
        %v278 = vrot.slane %v189, 7
        %v279 = vrot.slane %v190, 7
        %v280 = vrot.slane %v191, 7
        %v281 = vrot.slane %v192, 7
        %v282 = vrot.slane %v193, 7
        %v283 = vrot.slane %v194, 7
        %v284 = vrot.slane %v195, 7
        %v285 = vrot.slane %v196, 7
        %v286 = vrot.slane %v197, 7
        %v287 = vrot.slane %v198, 7
        %v288 = vrot.slane %v199, 7
        %v289 = vrot.slane %v200, 7
        %v290 = vrot.slane %v201, 7
        %v291 = vrot.slane %v202, 7
        %v292 = vrot.slane %v203, 7
        %v293 = vrot.slane %v204, 7
        %v294 = vrot.slane %v205, 7
        %v295 = vrot.slane %v206, 7
        %v296 = vrot.slane %v207, 7
        %v297 = vrot.slane %v208, 7
        %v298 = vrot.slane %v209, 7
        %v299 = vrot.slane %v210, 7
        %v300 = vrot.slane %v211, 7
        %v301 = vrot.slane %v212, 7
        %v302 = vrot.slane %v213, 7
        %v303 = vrot.slane %v214, 7
        %v304 = vrot.slane %v215, 7
        %v305 = vrot.slane %v216, 7
        %v306 = vrot.slane %v217, 7
        %v307 = vrot.slane %v218, 7
        %v308 = vrot.slane %v219, 7
        %v309 = vrot.slane %v220, 7
        %v310 = vrot.slane %v221, 7
        %v311 = vrot.slane %v222, 7
        %v312 = vrot.slane %v223, 7
        %v313 = vrot.slane %v224, 7
        %v314 = vrot.slane %v225, 7
        %v315 = vrot.slane %v226, 7
        %v316 = vrot.slane %v227, 7
        %v317 = vrot.slane %v228, 7
        %v318 = vrot.slane %v229, 7
        %v319 = vrot.slane %v230, 7
        %v320 = vrot.slane %v231, 7
        %v321 = vrot.slane %v232, 7
        %v322 = vrot.slane %v233, 7
        %v323 = vrot.slane %v234, 7
        %vm324 = vcmp.lt.s32.totalorder %v236, 1
        %v325 = vsel %vm324, %v322, %v323
        %v326 = vsel %vm324, %v321, %v322
        %v327 = vsel %vm324, %v320, %v321
        %v328 = vsel %vm324, %v319, %v320
        %v329 = vsel %vm324, %v318, %v319
        %v330 = vsel %vm324, %v317, %v318
        %v331 = vsel %vm324, %v316, %v317
        %v332 = vsel %vm324, %v315, %v316
        %v333 = vsel %vm324, %v314, %v315
        %v334 = vsel %vm324, %v313, %v314
        %v335 = vsel %vm324, %v312, %v313
        %v336 = vsel %vm324, %v311, %v312
        %v337 = vsel %vm324, %v310, %v311
        %v338 = vsel %vm324, %v309, %v310
        %v339 = vsel %vm324, %v308, %v309
        %v340 = vsel %vm324, %v307, %v308
        %v341 = vsel %vm324, %v306, %v307
        %v342 = vsel %vm324, %v305, %v306
        %v343 = vsel %vm324, %v304, %v305
        %v344 = vsel %vm324, %v303, %v304
        %v345 = vsel %vm324, %v302, %v303
        %v346 = vsel %vm324, %v301, %v302
        %v347 = vsel %vm324, %v300, %v301
        %v348 = vsel %vm324, %v299, %v300
        %v349 = vsel %vm324, %v298, %v299
        %v350 = vsel %vm324, %v297, %v298
        %v351 = vsel %vm324, %v296, %v297
        %v352 = vsel %vm324, %v295, %v296
        %v353 = vsel %vm324, %v294, %v295
        %v354 = vsel %vm324, %v293, %v294
        %v355 = vsel %vm324, %v292, %v293
        %v356 = vsel %vm324, %v291, %v292
        %v357 = vsel %vm324, %v290, %v291
        %v358 = vsel %vm324, %v289, %v290
        %v359 = vsel %vm324, %v288, %v289
        %v360 = vsel %vm324, %v287, %v288
        %v361 = vsel %vm324, %v286, %v287
        %v362 = vsel %vm324, %v285, %v286
        %v363 = vsel %vm324, %v284, %v285
        %v364 = vsel %vm324, %v283, %v284
        %v365 = vsel %vm324, %v282, %v283
        %v366 = vsel %vm324, %v281, %v282
        %v367 = vsel %vm324, %v280, %v281
        %v368 = vsel %vm324, %v279, %v280
        %v369 = vsel %vm324, %v278, %v279
        %v370 = vsel %vm324, %v277, %v278
        %v371 = vsel %vm324, %v276, %v277
        %v372 = vsel %vm324, %v275, %v276
        %v373 = vsel %vm324, %v274, %v275
        %v374 = vsel %vm324, %v273, %v274
        %v375 = vsel %vm324, %v272, %v273
        %v376 = vsel %vm324, %v271, %v272
        %v377 = vsel %vm324, %v270, %v271
        %v378 = vsel %vm324, %v269, %v270
        %v379 = vsel %vm324, %v268, %v269
        %v380 = vsel %vm324, %v267, %v268
        %v381 = vsel %vm324, %v266, %v267
        %v382 = vsel %vm324, %v265, %v266
        %v383 = vsel %vm324, %v264, %v265
        %v384 = vsel %vm324, %v263, %v264
        %v385 = vsel %vm324, %v262, %v263
        %v386 = vsel %vm324, %v261, %v262
        %v387 = vsel %vm324, %v260, %v261
        %v388 = vsel %vm324, %v323, %v260
        %v389 = vsel %vm244, 1, 0
        %v390 = vsel %vm245, 1, 0
        %v391 = vsel %vm246, 1, 0
        %v392 = vsel %vm247, 1, 0
        %v393 = vsel %vm248, 1, 0
        %v394 = vsel %vm249, 1, 0
        %v395 = vsel %vm250, 1, 0
        %v396 = vsel %vm251, 1, 0
        %vm397 = vcmp.eq.s32.totalorder %v389, 1
        %vm398 = vcmp.eq.s32.totalorder %v390, 1
        %vm399 = vcmp.eq.s32.totalorder %v391, 1
        %vm400 = vcmp.eq.s32.totalorder %v392, 1
        %vm401 = vcmp.eq.s32.totalorder %v393, 1
        %vm402 = vcmp.eq.s32.totalorder %v394, 1
        %vm403 = vcmp.eq.s32.totalorder %v395, 1
        %vm404 = vcmp.eq.s32.totalorder %v396, 1
        %v405 = vsel %vm397, %v388, 0.0
        %v406 = vsel %vm398, %v387, 0.0
        %v407 = vsel %vm399, %v386, 0.0
        %v408 = vsel %vm400, %v385, 0.0
        %v409 = vsel %vm401, %v384, 0.0
        %v410 = vsel %vm402, %v383, 0.0
        %v411 = vsel %vm403, %v382, 0.0
        %v412 = vsel %vm404, %v381, 0.0
        %v413 = vsel %vm397, %v380, 0.0
        %v414 = vsel %vm398, %v379, 0.0
        %v415 = vsel %vm399, %v378, 0.0
        %v416 = vsel %vm400, %v377, 0.0
        %v417 = vsel %vm401, %v376, 0.0
        %v418 = vsel %vm402, %v375, 0.0
        %v419 = vsel %vm403, %v374, 0.0
        %v420 = vsel %vm404, %v373, 0.0
        %v421 = vsel %vm397, %v372, 0.0
        %v422 = vsel %vm398, %v371, 0.0
        %v423 = vsel %vm399, %v370, 0.0
        %v424 = vsel %vm400, %v369, 0.0
        %v425 = vsel %vm401, %v368, 0.0
        %v426 = vsel %vm402, %v367, 0.0
        %v427 = vsel %vm403, %v366, 0.0
        %v428 = vsel %vm404, %v365, 0.0
        %v429 = vsel %vm397, %v364, 0.0
        %v430 = vsel %vm398, %v363, 0.0
        %v431 = vsel %vm399, %v362, 0.0
        %v432 = vsel %vm400, %v361, 0.0
        %v433 = vsel %vm401, %v360, 0.0
        %v434 = vsel %vm402, %v359, 0.0
        %v435 = vsel %vm403, %v358, 0.0
        %v436 = vsel %vm404, %v357, 0.0
        %v437 = vsel %vm397, %v356, 0.0
        %v438 = vsel %vm398, %v355, 0.0
        %v439 = vsel %vm399, %v354, 0.0
        %v440 = vsel %vm400, %v353, 0.0
        %v441 = vsel %vm401, %v352, 0.0
        %v442 = vsel %vm402, %v351, 0.0
        %v443 = vsel %vm403, %v350, 0.0
        %v444 = vsel %vm404, %v349, 0.0
        %v445 = vsel %vm397, %v348, 0.0
        %v446 = vsel %vm398, %v347, 0.0
        %v447 = vsel %vm399, %v346, 0.0
        %v448 = vsel %vm400, %v345, 0.0
        %v449 = vsel %vm401, %v344, 0.0
        %v450 = vsel %vm402, %v343, 0.0
        %v451 = vsel %vm403, %v342, 0.0
        %v452 = vsel %vm404, %v341, 0.0
        %v453 = vsel %vm397, %v340, 0.0
        %v454 = vsel %vm398, %v339, 0.0
        %v455 = vsel %vm399, %v338, 0.0
        %v456 = vsel %vm400, %v337, 0.0
        %v457 = vsel %vm401, %v336, 0.0
        %v458 = vsel %vm402, %v335, 0.0
        %v459 = vsel %vm403, %v334, 0.0
        %v460 = vsel %vm404, %v333, 0.0
        %v461 = vsel %vm397, %v332, 0.0
        %v462 = vsel %vm398, %v331, 0.0
        %v463 = vsel %vm399, %v330, 0.0
        %v464 = vsel %vm400, %v329, 0.0
        %v465 = vsel %vm401, %v328, 0.0
        %v466 = vsel %vm402, %v327, 0.0
        %v467 = vsel %vm403, %v326, 0.0
        %v468 = vsel %vm404, %v325, 0.0
        %v469 = vrot.slane %v171, 1
        %v470 = vrot.slane %v172, 1
        %v471 = vrot.slane %v173, 1
        %v472 = vrot.slane %v174, 1
        %v473 = vrot.slane %v175, 1
        %v474 = vrot.slane %v176, 1
        %v475 = vrot.slane %v177, 1
        %v476 = vrot.slane %v178, 1
        %v477 = vrot.slane %v179, 1
        %v478 = vrot.slane %v180, 1
        %v479 = vrot.slane %v181, 1
        %v480 = vrot.slane %v182, 1
        %v481 = vrot.slane %v183, 1
        %v482 = vrot.slane %v184, 1
        %v483 = vrot.slane %v185, 1
        %v484 = vrot.slane %v186, 1
        %v485 = vrot.slane %v187, 1
        %v486 = vrot.slane %v188, 1
        %v487 = vrot.slane %v189, 1
        %v488 = vrot.slane %v190, 1
        %v489 = vrot.slane %v191, 1
        %v490 = vrot.slane %v192, 1
        %v491 = vrot.slane %v193, 1
        %v492 = vrot.slane %v194, 1
        %v493 = vrot.slane %v195, 1
        %v494 = vrot.slane %v196, 1
        %v495 = vrot.slane %v197, 1
        %v496 = vrot.slane %v198, 1
        %v497 = vrot.slane %v199, 1
        %v498 = vrot.slane %v200, 1
        %v499 = vrot.slane %v201, 1
        %v500 = vrot.slane %v202, 1
        %v501 = vrot.slane %v203, 1
        %v502 = vrot.slane %v204, 1
        %v503 = vrot.slane %v205, 1
        %v504 = vrot.slane %v206, 1
        %v505 = vrot.slane %v207, 1
        %v506 = vrot.slane %v208, 1
        %v507 = vrot.slane %v209, 1
        %v508 = vrot.slane %v210, 1
        %v509 = vrot.slane %v211, 1
        %v510 = vrot.slane %v212, 1
        %v511 = vrot.slane %v213, 1
        %v512 = vrot.slane %v214, 1
        %v513 = vrot.slane %v215, 1
        %v514 = vrot.slane %v216, 1
        %v515 = vrot.slane %v217, 1
        %v516 = vrot.slane %v218, 1
        %v517 = vrot.slane %v219, 1
        %v518 = vrot.slane %v220, 1
        %v519 = vrot.slane %v221, 1
        %v520 = vrot.slane %v222, 1
        %v521 = vrot.slane %v223, 1
        %v522 = vrot.slane %v224, 1
        %v523 = vrot.slane %v225, 1
        %v524 = vrot.slane %v226, 1
        %v525 = vrot.slane %v227, 1
        %v526 = vrot.slane %v228, 1
        %v527 = vrot.slane %v229, 1
        %v528 = vrot.slane %v230, 1
        %v529 = vrot.slane %v231, 1
        %v530 = vrot.slane %v232, 1
        %v531 = vrot.slane %v233, 1
        %v532 = vrot.slane %v234, 1
        %vm533 = vcmp.lt.s32.totalorder %v236, 7
        %v534 = vsel %vm533, %v531, %v532
        %v535 = vsel %vm533, %v530, %v531
        %v536 = vsel %vm533, %v529, %v530
        %v537 = vsel %vm533, %v528, %v529
        %v538 = vsel %vm533, %v527, %v528
        %v539 = vsel %vm533, %v526, %v527
        %v540 = vsel %vm533, %v525, %v526
        %v541 = vsel %vm533, %v524, %v525
        %v542 = vsel %vm533, %v523, %v524
        %v543 = vsel %vm533, %v522, %v523
        %v544 = vsel %vm533, %v521, %v522
        %v545 = vsel %vm533, %v520, %v521
        %v546 = vsel %vm533, %v519, %v520
        %v547 = vsel %vm533, %v518, %v519
        %v548 = vsel %vm533, %v517, %v518
        %v549 = vsel %vm533, %v516, %v517
        %v550 = vsel %vm533, %v515, %v516
        %v551 = vsel %vm533, %v514, %v515
        %v552 = vsel %vm533, %v513, %v514
        %v553 = vsel %vm533, %v512, %v513
        %v554 = vsel %vm533, %v511, %v512
        %v555 = vsel %vm533, %v510, %v511
        %v556 = vsel %vm533, %v509, %v510
        %v557 = vsel %vm533, %v508, %v509
        %v558 = vsel %vm533, %v507, %v508
        %v559 = vsel %vm533, %v506, %v507
        %v560 = vsel %vm533, %v505, %v506
        %v561 = vsel %vm533, %v504, %v505
        %v562 = vsel %vm533, %v503, %v504
        %v563 = vsel %vm533, %v502, %v503
        %v564 = vsel %vm533, %v501, %v502
        %v565 = vsel %vm533, %v500, %v501
        %v566 = vsel %vm533, %v499, %v500
        %v567 = vsel %vm533, %v498, %v499
        %v568 = vsel %vm533, %v497, %v498
        %v569 = vsel %vm533, %v496, %v497
        %v570 = vsel %vm533, %v495, %v496
        %v571 = vsel %vm533, %v494, %v495
        %v572 = vsel %vm533, %v493, %v494
        %v573 = vsel %vm533, %v492, %v493
        %v574 = vsel %vm533, %v491, %v492
        %v575 = vsel %vm533, %v490, %v491
        %v576 = vsel %vm533, %v489, %v490
        %v577 = vsel %vm533, %v488, %v489
        %v578 = vsel %vm533, %v487, %v488
        %v579 = vsel %vm533, %v486, %v487
        %v580 = vsel %vm533, %v485, %v486
        %v581 = vsel %vm533, %v484, %v485
        %v582 = vsel %vm533, %v483, %v484
        %v583 = vsel %vm533, %v482, %v483
        %v584 = vsel %vm533, %v481, %v482
        %v585 = vsel %vm533, %v480, %v481
        %v586 = vsel %vm533, %v479, %v480
        %v587 = vsel %vm533, %v478, %v479
        %v588 = vsel %vm533, %v477, %v478
        %v589 = vsel %vm533, %v476, %v477
        %v590 = vsel %vm533, %v475, %v476
        %v591 = vsel %vm533, %v474, %v475
        %v592 = vsel %vm533, %v473, %v474
        %v593 = vsel %vm533, %v472, %v473
        %v594 = vsel %vm533, %v471, %v472
        %v595 = vsel %vm533, %v470, %v471
        %v596 = vsel %vm533, %v469, %v470
        %v597 = vsel %vm533, %v532, %v469
        %v598 = vsel %vm252, 1, 0
        %v599 = vsel %vm253, 1, 0
        %v600 = vsel %vm254, 1, 0
        %v601 = vsel %vm255, 1, 0
        %v602 = vsel %vm256, 1, 0
        %v603 = vsel %vm257, 1, 0
        %v604 = vsel %vm258, 1, 0
        %v605 = vsel %vm259, 1, 0
        %vm606 = vcmp.eq.s32.totalorder %v598, 1
        %vm607 = vcmp.eq.s32.totalorder %v599, 1
        %vm608 = vcmp.eq.s32.totalorder %v600, 1
        %vm609 = vcmp.eq.s32.totalorder %v601, 1
        %vm610 = vcmp.eq.s32.totalorder %v602, 1
        %vm611 = vcmp.eq.s32.totalorder %v603, 1
        %vm612 = vcmp.eq.s32.totalorder %v604, 1
        %vm613 = vcmp.eq.s32.totalorder %v605, 1
        %v614 = vsel %vm606, %v596, 0.0
        %v615 = vsel %vm607, %v595, 0.0
        %v616 = vsel %vm608, %v594, 0.0
        %v617 = vsel %vm609, %v593, 0.0
        %v618 = vsel %vm610, %v592, 0.0
        %v619 = vsel %vm611, %v591, 0.0
        %v620 = vsel %vm612, %v590, 0.0
        %v621 = vsel %vm613, %v589, 0.0
        %v622 = vsel %vm606, %v588, 0.0
        %v623 = vsel %vm607, %v587, 0.0
        %v624 = vsel %vm608, %v586, 0.0
        %v625 = vsel %vm609, %v585, 0.0
        %v626 = vsel %vm610, %v584, 0.0
        %v627 = vsel %vm611, %v583, 0.0
        %v628 = vsel %vm612, %v582, 0.0
        %v629 = vsel %vm613, %v581, 0.0
        %v630 = vsel %vm606, %v580, 0.0
        %v631 = vsel %vm607, %v579, 0.0
        %v632 = vsel %vm608, %v578, 0.0
        %v633 = vsel %vm609, %v577, 0.0
        %v634 = vsel %vm610, %v576, 0.0
        %v635 = vsel %vm611, %v575, 0.0
        %v636 = vsel %vm612, %v574, 0.0
        %v637 = vsel %vm613, %v573, 0.0
        %v638 = vsel %vm606, %v572, 0.0
        %v639 = vsel %vm607, %v571, 0.0
        %v640 = vsel %vm608, %v570, 0.0
        %v641 = vsel %vm609, %v569, 0.0
        %v642 = vsel %vm610, %v568, 0.0
        %v643 = vsel %vm611, %v567, 0.0
        %v644 = vsel %vm612, %v566, 0.0
        %v645 = vsel %vm613, %v565, 0.0
        %v646 = vsel %vm606, %v564, 0.0
        %v647 = vsel %vm607, %v563, 0.0
        %v648 = vsel %vm608, %v562, 0.0
        %v649 = vsel %vm609, %v561, 0.0
        %v650 = vsel %vm610, %v560, 0.0
        %v651 = vsel %vm611, %v559, 0.0
        %v652 = vsel %vm612, %v558, 0.0
        %v653 = vsel %vm613, %v557, 0.0
        %v654 = vsel %vm606, %v556, 0.0
        %v655 = vsel %vm607, %v555, 0.0
        %v656 = vsel %vm608, %v554, 0.0
        %v657 = vsel %vm609, %v553, 0.0
        %v658 = vsel %vm610, %v552, 0.0
        %v659 = vsel %vm611, %v551, 0.0
        %v660 = vsel %vm612, %v550, 0.0
        %v661 = vsel %vm613, %v549, 0.0
        %v662 = vsel %vm606, %v548, 0.0
        %v663 = vsel %vm607, %v547, 0.0
        %v664 = vsel %vm608, %v546, 0.0
        %v665 = vsel %vm609, %v545, 0.0
        %v666 = vsel %vm610, %v544, 0.0
        %v667 = vsel %vm611, %v543, 0.0
        %v668 = vsel %vm612, %v542, 0.0
        %v669 = vsel %vm613, %v541, 0.0
        %v670 = vsel %vm606, %v540, 0.0
        %v671 = vsel %vm607, %v539, 0.0
        %v672 = vsel %vm608, %v538, 0.0
        %v673 = vsel %vm609, %v537, 0.0
        %v674 = vsel %vm610, %v536, 0.0
        %v675 = vsel %vm611, %v535, 0.0
        %v676 = vsel %vm612, %v534, 0.0
        %v677 = vsel %vm613, %v597, 0.0
        %v678 = vld [vmem:[%s1] sm:$0xff]
        %v679 = vld [vmem:[%s1 + $0x8] sm:$0xff]
        %vm680 = vcmask 64512
        %v682 = vsel %vm680, %v171, 0
        %v685 = vsel %vm680, %v172, 0
        %v688 = vsel %vm680, %v173, 0
        %v691 = vsel %vm680, %v174, 0
        %v694 = vsel %vm680, %v175, 0
        %v697 = vsel %vm680, %v176, 0
        %v700 = vsel %vm680, %v177, 0
        %v703 = vsel %vm680, %v178, 0
        %v706 = vsel %vm680, %v179, 0
        %v709 = vsel %vm680, %v180, 0
        %v712 = vsel %vm680, %v181, 0
        %v715 = vsel %vm680, %v182, 0
        %v718 = vsel %vm680, %v183, 0
        %v721 = vsel %vm680, %v184, 0
        %v724 = vsel %vm680, %v185, 0
        %v727 = vsel %vm680, %v186, 0
        %v730 = vsel %vm680, %v187, 0
        %v733 = vsel %vm680, %v188, 0
        %v736 = vsel %vm680, %v189, 0
        %v739 = vsel %vm680, %v190, 0
        %v742 = vsel %vm680, %v191, 0
        %v745 = vsel %vm680, %v192, 0
        %v748 = vsel %vm680, %v193, 0
        %v751 = vsel %vm680, %v194, 0
        %v754 = vsel %vm680, %v195, 0
        %v757 = vsel %vm680, %v196, 0
        %v760 = vsel %vm680, %v197, 0
        %v763 = vsel %vm680, %v198, 0
        %v766 = vsel %vm680, %v199, 0
        %v769 = vsel %vm680, %v200, 0
        %v772 = vsel %vm680, %v201, 0
        %v775 = vsel %vm680, %v202, 0
        %v778 = vsel %vm680, %v203, 0
        %v781 = vsel %vm680, %v204, 0
        %v784 = vsel %vm680, %v205, 0
        %v787 = vsel %vm680, %v206, 0
        %v790 = vsel %vm680, %v207, 0
        %v793 = vsel %vm680, %v208, 0
        %v796 = vsel %vm680, %v209, 0
        %v799 = vsel %vm680, %v210, 0
        %v802 = vsel %vm680, %v211, 0
        %v805 = vsel %vm680, %v212, 0
        %v808 = vsel %vm680, %v213, 0
        %v811 = vsel %vm680, %v214, 0
        %v814 = vsel %vm680, %v215, 0
        %v817 = vsel %vm680, %v216, 0
        %v820 = vsel %vm680, %v217, 0
        %v823 = vsel %vm680, %v218, 0
        %v826 = vsel %vm680, %v219, 0
        %v829 = vsel %vm680, %v220, 0
        %v832 = vsel %vm680, %v221, 0
        %v835 = vsel %vm680, %v222, 0
        %v838 = vsel %vm680, %v223, 0
        %v841 = vsel %vm680, %v224, 0
        %v844 = vsel %vm680, %v225, 0
        %v847 = vsel %vm680, %v226, 0
        %v850 = vsel %vm680, %v227, 0
        %v853 = vsel %vm680, %v228, 0
        %v856 = vsel %vm680, %v229, 0
        %v859 = vsel %vm680, %v230, 0
        %v862 = vsel %vm680, %v231, 0
        %v865 = vsel %vm680, %v232, 0
        %v868 = vsel %vm680, %v233, 0
        %v871 = vsel %vm680, %v234, 0
        %873 = vmatprep.subr.mxu0 0.0
        %874 = vmatpush1.msra.mxu0 0.0
        %875 = vmatprep.subr.mxu0 0.0
        %876 = vmatpush1.msra.mxu0 0.0
        %877 = vmatprep.subr.mxu0 0.0
        %878 = vmatpush1.msra.mxu0 0.0
        %879 = vmatprep.subr.mxu0 0.0
        %880 = vmatpush1.msra.mxu0 0.0
        %881 = vmatprep.subr.mxu0 0.0
        %882 = vmatpush1.msra.mxu0 0.0
        %883 = vmatprep.subr.mxu0 0.0
        %884 = vmatpush1.msra.mxu0 0.0
        %885 = vmatprep.subr.mxu0 0.0
        %886 = vmatpush1.msra.mxu0 0.0
        %887 = vmatprep.subr.mxu0 0.0
        %888 = vmatpush1.msra.mxu0 0.0
        %889 = vmatprep.subr.mxu0 0.0
        %890 = vmatpush1.msra.mxu0 0.0
        %891 = vmatprep.subr.mxu0 0.0
        %892 = vmatpush1.msra.mxu0 0.0
        %893 = vmatprep.subr.mxu0 0.0
        %894 = vmatpush1.msra.mxu0 0.0
        %895 = vmatprep.subr.mxu0 0.0
        %896 = vmatpush1.msra.mxu0 0.0
        %897 = vmatprep.subr.mxu0 0.0
        %898 = vmatpush1.msra.mxu0 0.0
        %899 = vmatprep.subr.mxu0 0.0
        %900 = vmatpush1.msra.mxu0 0.0
        %901 = vmatprep.subr.mxu0 0.0
        %902 = vmatpush1.msra.mxu0 0.0
        %903 = vmatprep.subr.mxu0 0.0
        %904 = vmatpush1.msra.mxu0 %v679
        %905 = vmatprep.subr.mxu0 0.0
        %906 = vmatpush2.msra.mxu0 0.0
        %907 = vmatprep.subr.mxu0 0.0
        %908 = vmatpush2.msra.mxu0 0.0
        %909 = vmatprep.subr.mxu0 0.0
        %910 = vmatpush2.msra.mxu0 0.0
        %911 = vmatprep.subr.mxu0 0.0
        %912 = vmatpush2.msra.mxu0 0.0
        %913 = vmatprep.subr.mxu0 0.0
        %914 = vmatpush2.msra.mxu0 0.0
        %915 = vmatprep.subr.mxu0 0.0
        %916 = vmatpush2.msra.mxu0 0.0
        %917 = vmatprep.subr.mxu0 0.0
        %918 = vmatpush2.msra.mxu0 0.0
        %919 = vmatprep.subr.mxu0 0.0
        %920 = vmatpush2.msra.mxu0 0.0
        %921 = vmatprep.subr.mxu0 0.0
        %922 = vmatpush2.msra.mxu0 0.0
        %923 = vmatprep.subr.mxu0 0.0
        %924 = vmatpush2.msra.mxu0 0.0
        %925 = vmatprep.subr.mxu0 0.0
        %926 = vmatpush2.msra.mxu0 0.0
        %927 = vmatprep.subr.mxu0 0.0
        %928 = vmatpush2.msra.mxu0 0.0
        %929 = vmatprep.subr.mxu0 0.0
        %930 = vmatpush2.msra.mxu0 0.0
        %931 = vmatprep.subr.mxu0 0.0
        %932 = vmatpush2.msra.mxu0 0.0
        %933 = vmatprep.subr.mxu0 0.0
        %934 = vmatpush2.msra.mxu0 0.0
        %935 = vmatprep.subr.mxu0 0.0
        %936 = vmatpush2.msra.mxu0 0.0
        %937 = vmatprep.mubr.f32.mxu0 0.0
        %938 = vmatmul.mubr.f32.gmra.mxu0 %v682
        %v939 = vpop.f32.mrf.mxu0
        %v940 = vadd.f32 0.0, %v939
        %v941 = vpop.f32.mrf.mxu0
        %942 = vmatprep.mubr.f32.mxu0 0.0
        %943 = vmatmul.mubr.f32.gmra.mxu0 %v685
        %v944 = vpop.f32.mrf.mxu0
        %v945 = vadd.f32 0.0, %v944
        %v946 = vpop.f32.mrf.mxu0
        %947 = vmatprep.mubr.f32.mxu0 0.0
        %948 = vmatmul.mubr.f32.gmra.mxu0 %v688
        %v949 = vpop.f32.mrf.mxu0
        %v950 = vadd.f32 0.0, %v949
        %v951 = vpop.f32.mrf.mxu0
        %952 = vmatprep.mubr.f32.mxu0 0.0
        %953 = vmatmul.mubr.f32.gmra.mxu0 %v691
        %v954 = vpop.f32.mrf.mxu0
        %v955 = vadd.f32 0.0, %v954
        %v956 = vpop.f32.mrf.mxu0
        %957 = vmatprep.mubr.f32.mxu0 0.0
        %958 = vmatmul.mubr.f32.gmra.mxu0 %v694
        %v959 = vpop.f32.mrf.mxu0
        %v960 = vadd.f32 0.0, %v959
        %v961 = vpop.f32.mrf.mxu0
        %962 = vmatprep.mubr.f32.mxu0 0.0
        %963 = vmatmul.mubr.f32.gmra.mxu0 %v697
        %v964 = vpop.f32.mrf.mxu0
        %v965 = vadd.f32 0.0, %v964
        %v966 = vpop.f32.mrf.mxu0
        %967 = vmatprep.mubr.f32.mxu0 0.0
        %968 = vmatmul.mubr.f32.gmra.mxu0 %v700
        %v969 = vpop.f32.mrf.mxu0
        %v970 = vadd.f32 0.0, %v969
        %v971 = vpop.f32.mrf.mxu0
        %972 = vmatprep.mubr.f32.mxu0 0.0
        %973 = vmatmul.mubr.f32.gmra.mxu0 %v703
        %v974 = vpop.f32.mrf.mxu0
        %v975 = vadd.f32 0.0, %v974
        %v976 = vpop.f32.mrf.mxu0
        %977 = vmatprep.mubr.f32.mxu0 0.0
        %978 = vmatmul.mubr.f32.gmra.mxu0 %v706
        %v979 = vpop.f32.mrf.mxu0
        %v980 = vadd.f32 0.0, %v979
        %v981 = vpop.f32.mrf.mxu0
        %982 = vmatprep.mubr.f32.mxu0 0.0
        %983 = vmatmul.mubr.f32.gmra.mxu0 %v709
        %v984 = vpop.f32.mrf.mxu0
        %v985 = vadd.f32 0.0, %v984
        %v986 = vpop.f32.mrf.mxu0
        %987 = vmatprep.mubr.f32.mxu0 0.0
        %988 = vmatmul.mubr.f32.gmra.mxu0 %v712
        %v989 = vpop.f32.mrf.mxu0
        %v990 = vadd.f32 0.0, %v989
        %v991 = vpop.f32.mrf.mxu0
        %992 = vmatprep.mubr.f32.mxu0 0.0
        %993 = vmatmul.mubr.f32.gmra.mxu0 %v715
        %v994 = vpop.f32.mrf.mxu0
        %v995 = vadd.f32 0.0, %v994
        %v996 = vpop.f32.mrf.mxu0
        %997 = vmatprep.mubr.f32.mxu0 0.0
        %998 = vmatmul.mubr.f32.gmra.mxu0 %v718
        %v999 = vpop.f32.mrf.mxu0
        %v1000 = vadd.f32 0.0, %v999
        %v1001 = vpop.f32.mrf.mxu0
        %1002 = vmatprep.mubr.f32.mxu0 0.0
        %1003 = vmatmul.mubr.f32.gmra.mxu0 %v721
        %v1004 = vpop.f32.mrf.mxu0
        %v1005 = vadd.f32 0.0, %v1004
        %v1006 = vpop.f32.mrf.mxu0
        %1007 = vmatprep.mubr.f32.mxu0 0.0
        %1008 = vmatmul.mubr.f32.gmra.mxu0 %v724
        %v1009 = vpop.f32.mrf.mxu0
        %v1010 = vadd.f32 0.0, %v1009
        %v1011 = vpop.f32.mrf.mxu0
        %1012 = vmatprep.mubr.f32.mxu0 0.0
        %1013 = vmatmul.mubr.f32.gmra.mxu0 %v727
        %v1014 = vpop.f32.mrf.mxu0
        %v1015 = vadd.f32 0.0, %v1014
        %v1016 = vpop.f32.mrf.mxu0
        %1017 = vmatprep.mubr.f32.mxu0 0.0
        %1018 = vmatmul.mubr.f32.gmra.mxu0 %v730
        %v1019 = vpop.f32.mrf.mxu0
        %v1020 = vadd.f32 0.0, %v1019
        %v1021 = vpop.f32.mrf.mxu0
        %1022 = vmatprep.mubr.f32.mxu0 0.0
        %1023 = vmatmul.mubr.f32.gmra.mxu0 %v733
        %v1024 = vpop.f32.mrf.mxu0
        %v1025 = vadd.f32 0.0, %v1024
        %v1026 = vpop.f32.mrf.mxu0
        %1027 = vmatprep.mubr.f32.mxu0 0.0
        %1028 = vmatmul.mubr.f32.gmra.mxu0 %v736
        %v1029 = vpop.f32.mrf.mxu0
        %v1030 = vadd.f32 0.0, %v1029
        %v1031 = vpop.f32.mrf.mxu0
        %1032 = vmatprep.mubr.f32.mxu0 0.0
        %1033 = vmatmul.mubr.f32.gmra.mxu0 %v739
        %v1034 = vpop.f32.mrf.mxu0
        %v1035 = vadd.f32 0.0, %v1034
        %v1036 = vpop.f32.mrf.mxu0
        %1037 = vmatprep.mubr.f32.mxu0 0.0
        %1038 = vmatmul.mubr.f32.gmra.mxu0 %v742
        %v1039 = vpop.f32.mrf.mxu0
        %v1040 = vadd.f32 0.0, %v1039
        %v1041 = vpop.f32.mrf.mxu0
        %1042 = vmatprep.mubr.f32.mxu0 0.0
        %1043 = vmatmul.mubr.f32.gmra.mxu0 %v745
        %v1044 = vpop.f32.mrf.mxu0
        %v1045 = vadd.f32 0.0, %v1044
        %v1046 = vpop.f32.mrf.mxu0
        %1047 = vmatprep.mubr.f32.mxu0 0.0
        %1048 = vmatmul.mubr.f32.gmra.mxu0 %v748
        %v1049 = vpop.f32.mrf.mxu0
        %v1050 = vadd.f32 0.0, %v1049
        %v1051 = vpop.f32.mrf.mxu0
        %1052 = vmatprep.mubr.f32.mxu0 0.0
        %1053 = vmatmul.mubr.f32.gmra.mxu0 %v751
        %v1054 = vpop.f32.mrf.mxu0
        %v1055 = vadd.f32 0.0, %v1054
        %v1056 = vpop.f32.mrf.mxu0
        %1057 = vmatprep.mubr.f32.mxu0 0.0
        %1058 = vmatmul.mubr.f32.gmra.mxu0 %v754
        %v1059 = vpop.f32.mrf.mxu0
        %v1060 = vadd.f32 0.0, %v1059
        %v1061 = vpop.f32.mrf.mxu0
        %1062 = vmatprep.mubr.f32.mxu0 0.0
        %1063 = vmatmul.mubr.f32.gmra.mxu0 %v757
        %v1064 = vpop.f32.mrf.mxu0
        %v1065 = vadd.f32 0.0, %v1064
        %v1066 = vpop.f32.mrf.mxu0
        %1067 = vmatprep.mubr.f32.mxu0 0.0
        %1068 = vmatmul.mubr.f32.gmra.mxu0 %v760
        %v1069 = vpop.f32.mrf.mxu0
        %v1070 = vadd.f32 0.0, %v1069
        %v1071 = vpop.f32.mrf.mxu0
        %1072 = vmatprep.mubr.f32.mxu0 0.0
        %1073 = vmatmul.mubr.f32.gmra.mxu0 %v763
        %v1074 = vpop.f32.mrf.mxu0
        %v1075 = vadd.f32 0.0, %v1074
        %v1076 = vpop.f32.mrf.mxu0
        %1077 = vmatprep.mubr.f32.mxu0 0.0
        %1078 = vmatmul.mubr.f32.gmra.mxu0 %v766
        %v1079 = vpop.f32.mrf.mxu0
        %v1080 = vadd.f32 0.0, %v1079
        %v1081 = vpop.f32.mrf.mxu0
        %1082 = vmatprep.mubr.f32.mxu0 0.0
        %1083 = vmatmul.mubr.f32.gmra.mxu0 %v769
        %v1084 = vpop.f32.mrf.mxu0
        %v1085 = vadd.f32 0.0, %v1084
        %v1086 = vpop.f32.mrf.mxu0
        %1087 = vmatprep.mubr.f32.mxu0 0.0
        %1088 = vmatmul.mubr.f32.gmra.mxu0 %v772
        %v1089 = vpop.f32.mrf.mxu0
        %v1090 = vadd.f32 0.0, %v1089
        %v1091 = vpop.f32.mrf.mxu0
        %1092 = vmatprep.mubr.f32.mxu0 0.0
        %1093 = vmatmul.mubr.f32.gmra.mxu0 %v775
        %v1094 = vpop.f32.mrf.mxu0
        %v1095 = vadd.f32 0.0, %v1094
        %v1096 = vpop.f32.mrf.mxu0
        %1097 = vmatprep.mubr.f32.mxu0 0.0
        %1098 = vmatmul.mubr.f32.gmra.mxu0 %v778
        %v1099 = vpop.f32.mrf.mxu0
        %v1100 = vadd.f32 0.0, %v1099
        %v1101 = vpop.f32.mrf.mxu0
        %1102 = vmatprep.mubr.f32.mxu0 0.0
        %1103 = vmatmul.mubr.f32.gmra.mxu0 %v781
        %v1104 = vpop.f32.mrf.mxu0
        %v1105 = vadd.f32 0.0, %v1104
        %v1106 = vpop.f32.mrf.mxu0
        %1107 = vmatprep.mubr.f32.mxu0 0.0
        %1108 = vmatmul.mubr.f32.gmra.mxu0 %v784
        %v1109 = vpop.f32.mrf.mxu0
        %v1110 = vadd.f32 0.0, %v1109
        %v1111 = vpop.f32.mrf.mxu0
        %1112 = vmatprep.mubr.f32.mxu0 0.0
        %1113 = vmatmul.mubr.f32.gmra.mxu0 %v787
        %v1114 = vpop.f32.mrf.mxu0
        %v1115 = vadd.f32 0.0, %v1114
        %v1116 = vpop.f32.mrf.mxu0
        %1117 = vmatprep.mubr.f32.mxu0 0.0
        %1118 = vmatmul.mubr.f32.gmra.mxu0 %v790
        %v1119 = vpop.f32.mrf.mxu0
        %v1120 = vadd.f32 0.0, %v1119
        %v1121 = vpop.f32.mrf.mxu0
        %1122 = vmatprep.mubr.f32.mxu0 0.0
        %1123 = vmatmul.mubr.f32.gmra.mxu0 %v793
        %v1124 = vpop.f32.mrf.mxu0
        %v1125 = vadd.f32 0.0, %v1124
        %v1126 = vpop.f32.mrf.mxu0
        %1127 = vmatprep.mubr.f32.mxu0 0.0
        %1128 = vmatmul.mubr.f32.gmra.mxu0 %v796
        %v1129 = vpop.f32.mrf.mxu0
        %v1130 = vadd.f32 0.0, %v1129
        %v1131 = vpop.f32.mrf.mxu0
        %1132 = vmatprep.mubr.f32.mxu0 0.0
        %1133 = vmatmul.mubr.f32.gmra.mxu0 %v799
        %v1134 = vpop.f32.mrf.mxu0
        %v1135 = vadd.f32 0.0, %v1134
        %v1136 = vpop.f32.mrf.mxu0
        %1137 = vmatprep.mubr.f32.mxu0 0.0
        %1138 = vmatmul.mubr.f32.gmra.mxu0 %v802
        %v1139 = vpop.f32.mrf.mxu0
        %v1140 = vadd.f32 0.0, %v1139
        %v1141 = vpop.f32.mrf.mxu0
        %1142 = vmatprep.mubr.f32.mxu0 0.0
        %1143 = vmatmul.mubr.f32.gmra.mxu0 %v805
        %v1144 = vpop.f32.mrf.mxu0
        %v1145 = vadd.f32 0.0, %v1144
        %v1146 = vpop.f32.mrf.mxu0
        %1147 = vmatprep.mubr.f32.mxu0 0.0
        %1148 = vmatmul.mubr.f32.gmra.mxu0 %v808
        %v1149 = vpop.f32.mrf.mxu0
        %v1150 = vadd.f32 0.0, %v1149
        %v1151 = vpop.f32.mrf.mxu0
        %1152 = vmatprep.mubr.f32.mxu0 0.0
        %1153 = vmatmul.mubr.f32.gmra.mxu0 %v811
        %v1154 = vpop.f32.mrf.mxu0
        %v1155 = vadd.f32 0.0, %v1154
        %v1156 = vpop.f32.mrf.mxu0
        %1157 = vmatprep.mubr.f32.mxu0 0.0
        %1158 = vmatmul.mubr.f32.gmra.mxu0 %v814
        %v1159 = vpop.f32.mrf.mxu0
        %v1160 = vadd.f32 0.0, %v1159
        %v1161 = vpop.f32.mrf.mxu0
        %1162 = vmatprep.mubr.f32.mxu0 0.0
        %1163 = vmatmul.mubr.f32.gmra.mxu0 %v817
        %v1164 = vpop.f32.mrf.mxu0
        %v1165 = vadd.f32 0.0, %v1164
        %v1166 = vpop.f32.mrf.mxu0
        %1167 = vmatprep.mubr.f32.mxu0 0.0
        %1168 = vmatmul.mubr.f32.gmra.mxu0 %v820
        %v1169 = vpop.f32.mrf.mxu0
        %v1170 = vadd.f32 0.0, %v1169
        %v1171 = vpop.f32.mrf.mxu0
        %1172 = vmatprep.mubr.f32.mxu0 0.0
        %1173 = vmatmul.mubr.f32.gmra.mxu0 %v823
        %v1174 = vpop.f32.mrf.mxu0
        %v1175 = vadd.f32 0.0, %v1174
        %v1176 = vpop.f32.mrf.mxu0
        %1177 = vmatprep.mubr.f32.mxu0 0.0
        %1178 = vmatmul.mubr.f32.gmra.mxu0 %v826
        %v1179 = vpop.f32.mrf.mxu0
        %v1180 = vadd.f32 0.0, %v1179
        %v1181 = vpop.f32.mrf.mxu0
        %1182 = vmatprep.mubr.f32.mxu0 0.0
        %1183 = vmatmul.mubr.f32.gmra.mxu0 %v829
        %v1184 = vpop.f32.mrf.mxu0
        %v1185 = vadd.f32 0.0, %v1184
        %v1186 = vpop.f32.mrf.mxu0
        %1187 = vmatprep.mubr.f32.mxu0 0.0
        %1188 = vmatmul.mubr.f32.gmra.mxu0 %v832
        %v1189 = vpop.f32.mrf.mxu0
        %v1190 = vadd.f32 0.0, %v1189
        %v1191 = vpop.f32.mrf.mxu0
        %1192 = vmatprep.mubr.f32.mxu0 0.0
        %1193 = vmatmul.mubr.f32.gmra.mxu0 %v835
        %v1194 = vpop.f32.mrf.mxu0
        %v1195 = vadd.f32 0.0, %v1194
        %v1196 = vpop.f32.mrf.mxu0
        %1197 = vmatprep.mubr.f32.mxu0 0.0
        %1198 = vmatmul.mubr.f32.gmra.mxu0 %v838
        %v1199 = vpop.f32.mrf.mxu0
        %v1200 = vadd.f32 0.0, %v1199
        %v1201 = vpop.f32.mrf.mxu0
        %1202 = vmatprep.mubr.f32.mxu0 0.0
        %1203 = vmatmul.mubr.f32.gmra.mxu0 %v841
        %v1204 = vpop.f32.mrf.mxu0
        %v1205 = vadd.f32 0.0, %v1204
        %v1206 = vpop.f32.mrf.mxu0
        %1207 = vmatprep.mubr.f32.mxu0 0.0
        %1208 = vmatmul.mubr.f32.gmra.mxu0 %v844
        %v1209 = vpop.f32.mrf.mxu0
        %v1210 = vadd.f32 0.0, %v1209
        %v1211 = vpop.f32.mrf.mxu0
        %1212 = vmatprep.mubr.f32.mxu0 0.0
        %1213 = vmatmul.mubr.f32.gmra.mxu0 %v847
        %v1214 = vpop.f32.mrf.mxu0
        %v1215 = vadd.f32 0.0, %v1214
        %v1216 = vpop.f32.mrf.mxu0
        %1217 = vmatprep.mubr.f32.mxu0 0.0
        %1218 = vmatmul.mubr.f32.gmra.mxu0 %v850
        %v1219 = vpop.f32.mrf.mxu0
        %v1220 = vadd.f32 0.0, %v1219
        %v1221 = vpop.f32.mrf.mxu0
        %1222 = vmatprep.mubr.f32.mxu0 0.0
        %1223 = vmatmul.mubr.f32.gmra.mxu0 %v853
        %v1224 = vpop.f32.mrf.mxu0
        %v1225 = vadd.f32 0.0, %v1224
        %v1226 = vpop.f32.mrf.mxu0
        %1227 = vmatprep.mubr.f32.mxu0 0.0
        %1228 = vmatmul.mubr.f32.gmra.mxu0 %v856
        %v1229 = vpop.f32.mrf.mxu0
        %v1230 = vadd.f32 0.0, %v1229
        %v1231 = vpop.f32.mrf.mxu0
        %1232 = vmatprep.mubr.f32.mxu0 0.0
        %1233 = vmatmul.mubr.f32.gmra.mxu0 %v859
        %v1234 = vpop.f32.mrf.mxu0
        %v1235 = vadd.f32 0.0, %v1234
        %v1236 = vpop.f32.mrf.mxu0
        %1237 = vmatprep.mubr.f32.mxu0 0.0
        %1238 = vmatmul.mubr.f32.gmra.mxu0 %v862
        %v1239 = vpop.f32.mrf.mxu0
        %v1240 = vadd.f32 0.0, %v1239
        %v1241 = vpop.f32.mrf.mxu0
        %1242 = vmatprep.mubr.f32.mxu0 0.0
        %1243 = vmatmul.mubr.f32.gmra.mxu0 %v865
        %v1244 = vpop.f32.mrf.mxu0
        %v1245 = vadd.f32 0.0, %v1244
        %v1246 = vpop.f32.mrf.mxu0
        %1247 = vmatprep.mubr.f32.mxu0 0.0
        %1248 = vmatmul.mubr.f32.gmra.mxu0 %v868
        %v1249 = vpop.f32.mrf.mxu0
        %v1250 = vadd.f32 0.0, %v1249
        %v1251 = vpop.f32.mrf.mxu0
        %1252 = vmatprep.mubr.f32.mxu0 0.0
        %1253 = vmatmul.mubr.f32.gmra.mxu0 %v871
        %v1254 = vpop.f32.mrf.mxu0
        %v1255 = vadd.f32 0.0, %v1254
        %v1256 = vpop.f32.mrf.mxu0
        %1257 = vdwg.mxu0
        %v1259 = vsel %vm680, %v405, 0
        %v1262 = vsel %vm680, %v406, 0
        %v1265 = vsel %vm680, %v407, 0
        %v1268 = vsel %vm680, %v408, 0
        %v1271 = vsel %vm680, %v409, 0
        %v1274 = vsel %vm680, %v410, 0
        %v1277 = vsel %vm680, %v411, 0
        %v1280 = vsel %vm680, %v412, 0
        %v1283 = vsel %vm680, %v413, 0
        %v1286 = vsel %vm680, %v414, 0
        %v1289 = vsel %vm680, %v415, 0
        %v1292 = vsel %vm680, %v416, 0
        %v1295 = vsel %vm680, %v417, 0
        %v1298 = vsel %vm680, %v418, 0
        %v1301 = vsel %vm680, %v419, 0
        %v1304 = vsel %vm680, %v420, 0
        %v1307 = vsel %vm680, %v421, 0
        %v1310 = vsel %vm680, %v422, 0
        %v1313 = vsel %vm680, %v423, 0
        %v1316 = vsel %vm680, %v424, 0
        %v1319 = vsel %vm680, %v425, 0
        %v1322 = vsel %vm680, %v426, 0
        %v1325 = vsel %vm680, %v427, 0
        %v1328 = vsel %vm680, %v428, 0
        %v1331 = vsel %vm680, %v429, 0
        %v1334 = vsel %vm680, %v430, 0
        %v1337 = vsel %vm680, %v431, 0
        %v1340 = vsel %vm680, %v432, 0
        %v1343 = vsel %vm680, %v433, 0
        %v1346 = vsel %vm680, %v434, 0
        %v1349 = vsel %vm680, %v435, 0
        %v1352 = vsel %vm680, %v436, 0
        %v1355 = vsel %vm680, %v437, 0
        %v1358 = vsel %vm680, %v438, 0
        %v1361 = vsel %vm680, %v439, 0
        %v1364 = vsel %vm680, %v440, 0
        %v1367 = vsel %vm680, %v441, 0
        %v1370 = vsel %vm680, %v442, 0
        %v1373 = vsel %vm680, %v443, 0
        %v1376 = vsel %vm680, %v444, 0
        %v1379 = vsel %vm680, %v445, 0
        %v1382 = vsel %vm680, %v446, 0
        %v1385 = vsel %vm680, %v447, 0
        %v1388 = vsel %vm680, %v448, 0
        %v1391 = vsel %vm680, %v449, 0
        %v1394 = vsel %vm680, %v450, 0
        %v1397 = vsel %vm680, %v451, 0
        %v1400 = vsel %vm680, %v452, 0
        %v1403 = vsel %vm680, %v453, 0
        %v1406 = vsel %vm680, %v454, 0
        %v1409 = vsel %vm680, %v455, 0
        %v1412 = vsel %vm680, %v456, 0
        %v1415 = vsel %vm680, %v457, 0
        %v1418 = vsel %vm680, %v458, 0
        %v1421 = vsel %vm680, %v459, 0
        %v1424 = vsel %vm680, %v460, 0
        %v1427 = vsel %vm680, %v461, 0
        %v1430 = vsel %vm680, %v462, 0
        %v1433 = vsel %vm680, %v463, 0
        %v1436 = vsel %vm680, %v464, 0
        %v1439 = vsel %vm680, %v465, 0
        %v1442 = vsel %vm680, %v466, 0
        %v1445 = vsel %vm680, %v467, 0
        %v1448 = vsel %vm680, %v468, 0
        %1450 = vmatprep.subr.mxu0 0.0
        %1451 = vmatpush1.msra.mxu0 0.0
        %1452 = vmatprep.subr.mxu0 0.0
        %1453 = vmatpush1.msra.mxu0 0.0
        %1454 = vmatprep.subr.mxu0 0.0
        %1455 = vmatpush1.msra.mxu0 0.0
        %1456 = vmatprep.subr.mxu0 0.0
        %1457 = vmatpush1.msra.mxu0 0.0
        %1458 = vmatprep.subr.mxu0 0.0
        %1459 = vmatpush1.msra.mxu0 0.0
        %1460 = vmatprep.subr.mxu0 0.0
        %1461 = vmatpush1.msra.mxu0 0.0
        %1462 = vmatprep.subr.mxu0 0.0
        %1463 = vmatpush1.msra.mxu0 0.0
        %1464 = vmatprep.subr.mxu0 0.0
        %1465 = vmatpush1.msra.mxu0 0.0
        %1466 = vmatprep.subr.mxu0 0.0
        %1467 = vmatpush1.msra.mxu0 0.0
        %1468 = vmatprep.subr.mxu0 0.0
        %1469 = vmatpush1.msra.mxu0 0.0
        %1470 = vmatprep.subr.mxu0 0.0
        %1471 = vmatpush1.msra.mxu0 0.0
        %1472 = vmatprep.subr.mxu0 0.0
        %1473 = vmatpush1.msra.mxu0 0.0
        %1474 = vmatprep.subr.mxu0 0.0
        %1475 = vmatpush1.msra.mxu0 0.0
        %1476 = vmatprep.subr.mxu0 0.0
        %1477 = vmatpush1.msra.mxu0 0.0
        %1478 = vmatprep.subr.mxu0 0.0
        %1479 = vmatpush1.msra.mxu0 0.0
        %1480 = vmatprep.subr.mxu0 0.0
        %1481 = vmatpush1.msra.mxu0 %v678
        %1482 = vmatprep.subr.mxu0 0.0
        %1483 = vmatpush2.msra.mxu0 0.0
        %1484 = vmatprep.subr.mxu0 0.0
        %1485 = vmatpush2.msra.mxu0 0.0
        %1486 = vmatprep.subr.mxu0 0.0
        %1487 = vmatpush2.msra.mxu0 0.0
        %1488 = vmatprep.subr.mxu0 0.0
        %1489 = vmatpush2.msra.mxu0 0.0
        %1490 = vmatprep.subr.mxu0 0.0
        %1491 = vmatpush2.msra.mxu0 0.0
        %1492 = vmatprep.subr.mxu0 0.0
        %1493 = vmatpush2.msra.mxu0 0.0
        %1494 = vmatprep.subr.mxu0 0.0
        %1495 = vmatpush2.msra.mxu0 0.0
        %1496 = vmatprep.subr.mxu0 0.0
        %1497 = vmatpush2.msra.mxu0 0.0
        %1498 = vmatprep.subr.mxu0 0.0
        %1499 = vmatpush2.msra.mxu0 0.0
        %1500 = vmatprep.subr.mxu0 0.0
        %1501 = vmatpush2.msra.mxu0 0.0
        %1502 = vmatprep.subr.mxu0 0.0
        %1503 = vmatpush2.msra.mxu0 0.0
        %1504 = vmatprep.subr.mxu0 0.0
        %1505 = vmatpush2.msra.mxu0 0.0
        %1506 = vmatprep.subr.mxu0 0.0
        %1507 = vmatpush2.msra.mxu0 0.0
        %1508 = vmatprep.subr.mxu0 0.0
        %1509 = vmatpush2.msra.mxu0 0.0
        %1510 = vmatprep.subr.mxu0 0.0
        %1511 = vmatpush2.msra.mxu0 0.0
        %1512 = vmatprep.subr.mxu0 0.0
        %1513 = vmatpush2.msra.mxu0 0.0
        %1514 = vmatprep.mubr.f32.mxu0 0.0
        %1515 = vmatmul.mubr.f32.gmra.mxu0 %v1259
        %v1516 = vpop.f32.mrf.mxu0
        %v1517 = vadd.f32 %v940, %v1516
        %v1518 = vpop.f32.mrf.mxu0
        %1519 = vmatprep.mubr.f32.mxu0 0.0
        %1520 = vmatmul.mubr.f32.gmra.mxu0 %v1262
        %v1521 = vpop.f32.mrf.mxu0
        %v1522 = vadd.f32 %v945, %v1521
        %v1523 = vpop.f32.mrf.mxu0
        %1524 = vmatprep.mubr.f32.mxu0 0.0
        %1525 = vmatmul.mubr.f32.gmra.mxu0 %v1265
        %v1526 = vpop.f32.mrf.mxu0
        %v1527 = vadd.f32 %v950, %v1526
        %v1528 = vpop.f32.mrf.mxu0
        %1529 = vmatprep.mubr.f32.mxu0 0.0
        %1530 = vmatmul.mubr.f32.gmra.mxu0 %v1268
        %v1531 = vpop.f32.mrf.mxu0
        %v1532 = vadd.f32 %v955, %v1531
        %v1533 = vpop.f32.mrf.mxu0
        %1534 = vmatprep.mubr.f32.mxu0 0.0
        %1535 = vmatmul.mubr.f32.gmra.mxu0 %v1271
        %v1536 = vpop.f32.mrf.mxu0
        %v1537 = vadd.f32 %v960, %v1536
        %v1538 = vpop.f32.mrf.mxu0
        %1539 = vmatprep.mubr.f32.mxu0 0.0
        %1540 = vmatmul.mubr.f32.gmra.mxu0 %v1274
        %v1541 = vpop.f32.mrf.mxu0
        %v1542 = vadd.f32 %v965, %v1541
        %v1543 = vpop.f32.mrf.mxu0
        %1544 = vmatprep.mubr.f32.mxu0 0.0
        %1545 = vmatmul.mubr.f32.gmra.mxu0 %v1277
        %v1546 = vpop.f32.mrf.mxu0
        %v1547 = vadd.f32 %v970, %v1546
        %v1548 = vpop.f32.mrf.mxu0
        %1549 = vmatprep.mubr.f32.mxu0 0.0
        %1550 = vmatmul.mubr.f32.gmra.mxu0 %v1280
        %v1551 = vpop.f32.mrf.mxu0
        %v1552 = vadd.f32 %v975, %v1551
        %v1553 = vpop.f32.mrf.mxu0
        %1554 = vmatprep.mubr.f32.mxu0 0.0
        %1555 = vmatmul.mubr.f32.gmra.mxu0 %v1283
        %v1556 = vpop.f32.mrf.mxu0
        %v1557 = vadd.f32 %v980, %v1556
        %v1558 = vpop.f32.mrf.mxu0
        %1559 = vmatprep.mubr.f32.mxu0 0.0
        %1560 = vmatmul.mubr.f32.gmra.mxu0 %v1286
        %v1561 = vpop.f32.mrf.mxu0
        %v1562 = vadd.f32 %v985, %v1561
        %v1563 = vpop.f32.mrf.mxu0
        %1564 = vmatprep.mubr.f32.mxu0 0.0
        %1565 = vmatmul.mubr.f32.gmra.mxu0 %v1289
        %v1566 = vpop.f32.mrf.mxu0
        %v1567 = vadd.f32 %v990, %v1566
        %v1568 = vpop.f32.mrf.mxu0
        %1569 = vmatprep.mubr.f32.mxu0 0.0
        %1570 = vmatmul.mubr.f32.gmra.mxu0 %v1292
        %v1571 = vpop.f32.mrf.mxu0
        %v1572 = vadd.f32 %v995, %v1571
        %v1573 = vpop.f32.mrf.mxu0
        %1574 = vmatprep.mubr.f32.mxu0 0.0
        %1575 = vmatmul.mubr.f32.gmra.mxu0 %v1295
        %v1576 = vpop.f32.mrf.mxu0
        %v1577 = vadd.f32 %v1000, %v1576
        %v1578 = vpop.f32.mrf.mxu0
        %1579 = vmatprep.mubr.f32.mxu0 0.0
        %1580 = vmatmul.mubr.f32.gmra.mxu0 %v1298
        %v1581 = vpop.f32.mrf.mxu0
        %v1582 = vadd.f32 %v1005, %v1581
        %v1583 = vpop.f32.mrf.mxu0
        %1584 = vmatprep.mubr.f32.mxu0 0.0
        %1585 = vmatmul.mubr.f32.gmra.mxu0 %v1301
        %v1586 = vpop.f32.mrf.mxu0
        %v1587 = vadd.f32 %v1010, %v1586
        %v1588 = vpop.f32.mrf.mxu0
        %1589 = vmatprep.mubr.f32.mxu0 0.0
        %1590 = vmatmul.mubr.f32.gmra.mxu0 %v1304
        %v1591 = vpop.f32.mrf.mxu0
        %v1592 = vadd.f32 %v1015, %v1591
        %v1593 = vpop.f32.mrf.mxu0
        %1594 = vmatprep.mubr.f32.mxu0 0.0
        %1595 = vmatmul.mubr.f32.gmra.mxu0 %v1307
        %v1596 = vpop.f32.mrf.mxu0
        %v1597 = vadd.f32 %v1020, %v1596
        %v1598 = vpop.f32.mrf.mxu0
        %1599 = vmatprep.mubr.f32.mxu0 0.0
        %1600 = vmatmul.mubr.f32.gmra.mxu0 %v1310
        %v1601 = vpop.f32.mrf.mxu0
        %v1602 = vadd.f32 %v1025, %v1601
        %v1603 = vpop.f32.mrf.mxu0
        %1604 = vmatprep.mubr.f32.mxu0 0.0
        %1605 = vmatmul.mubr.f32.gmra.mxu0 %v1313
        %v1606 = vpop.f32.mrf.mxu0
        %v1607 = vadd.f32 %v1030, %v1606
        %v1608 = vpop.f32.mrf.mxu0
        %1609 = vmatprep.mubr.f32.mxu0 0.0
        %1610 = vmatmul.mubr.f32.gmra.mxu0 %v1316
        %v1611 = vpop.f32.mrf.mxu0
        %v1612 = vadd.f32 %v1035, %v1611
        %v1613 = vpop.f32.mrf.mxu0
        %1614 = vmatprep.mubr.f32.mxu0 0.0
        %1615 = vmatmul.mubr.f32.gmra.mxu0 %v1319
        %v1616 = vpop.f32.mrf.mxu0
        %v1617 = vadd.f32 %v1040, %v1616
        %v1618 = vpop.f32.mrf.mxu0
        %1619 = vmatprep.mubr.f32.mxu0 0.0
        %1620 = vmatmul.mubr.f32.gmra.mxu0 %v1322
        %v1621 = vpop.f32.mrf.mxu0
        %v1622 = vadd.f32 %v1045, %v1621
        %v1623 = vpop.f32.mrf.mxu0
        %1624 = vmatprep.mubr.f32.mxu0 0.0
        %1625 = vmatmul.mubr.f32.gmra.mxu0 %v1325
        %v1626 = vpop.f32.mrf.mxu0
        %v1627 = vadd.f32 %v1050, %v1626
        %v1628 = vpop.f32.mrf.mxu0
        %1629 = vmatprep.mubr.f32.mxu0 0.0
        %1630 = vmatmul.mubr.f32.gmra.mxu0 %v1328
        %v1631 = vpop.f32.mrf.mxu0
        %v1632 = vadd.f32 %v1055, %v1631
        %v1633 = vpop.f32.mrf.mxu0
        %1634 = vmatprep.mubr.f32.mxu0 0.0
        %1635 = vmatmul.mubr.f32.gmra.mxu0 %v1331
        %v1636 = vpop.f32.mrf.mxu0
        %v1637 = vadd.f32 %v1060, %v1636
        %v1638 = vpop.f32.mrf.mxu0
        %1639 = vmatprep.mubr.f32.mxu0 0.0
        %1640 = vmatmul.mubr.f32.gmra.mxu0 %v1334
        %v1641 = vpop.f32.mrf.mxu0
        %v1642 = vadd.f32 %v1065, %v1641
        %v1643 = vpop.f32.mrf.mxu0
        %1644 = vmatprep.mubr.f32.mxu0 0.0
        %1645 = vmatmul.mubr.f32.gmra.mxu0 %v1337
        %v1646 = vpop.f32.mrf.mxu0
        %v1647 = vadd.f32 %v1070, %v1646
        %v1648 = vpop.f32.mrf.mxu0
        %1649 = vmatprep.mubr.f32.mxu0 0.0
        %1650 = vmatmul.mubr.f32.gmra.mxu0 %v1340
        %v1651 = vpop.f32.mrf.mxu0
        %v1652 = vadd.f32 %v1075, %v1651
        %v1653 = vpop.f32.mrf.mxu0
        %1654 = vmatprep.mubr.f32.mxu0 0.0
        %1655 = vmatmul.mubr.f32.gmra.mxu0 %v1343
        %v1656 = vpop.f32.mrf.mxu0
        %v1657 = vadd.f32 %v1080, %v1656
        %v1658 = vpop.f32.mrf.mxu0
        %1659 = vmatprep.mubr.f32.mxu0 0.0
        %1660 = vmatmul.mubr.f32.gmra.mxu0 %v1346
        %v1661 = vpop.f32.mrf.mxu0
        %v1662 = vadd.f32 %v1085, %v1661
        %v1663 = vpop.f32.mrf.mxu0
        %1664 = vmatprep.mubr.f32.mxu0 0.0
        %1665 = vmatmul.mubr.f32.gmra.mxu0 %v1349
        %v1666 = vpop.f32.mrf.mxu0
        %v1667 = vadd.f32 %v1090, %v1666
        %v1668 = vpop.f32.mrf.mxu0
        %1669 = vmatprep.mubr.f32.mxu0 0.0
        %1670 = vmatmul.mubr.f32.gmra.mxu0 %v1352
        %v1671 = vpop.f32.mrf.mxu0
        %v1672 = vadd.f32 %v1095, %v1671
        %v1673 = vpop.f32.mrf.mxu0
        %1674 = vmatprep.mubr.f32.mxu0 0.0
        %1675 = vmatmul.mubr.f32.gmra.mxu0 %v1355
        %v1676 = vpop.f32.mrf.mxu0
        %v1677 = vadd.f32 %v1100, %v1676
        %v1678 = vpop.f32.mrf.mxu0
        %1679 = vmatprep.mubr.f32.mxu0 0.0
        %1680 = vmatmul.mubr.f32.gmra.mxu0 %v1358
        %v1681 = vpop.f32.mrf.mxu0
        %v1682 = vadd.f32 %v1105, %v1681
        %v1683 = vpop.f32.mrf.mxu0
        %1684 = vmatprep.mubr.f32.mxu0 0.0
        %1685 = vmatmul.mubr.f32.gmra.mxu0 %v1361
        %v1686 = vpop.f32.mrf.mxu0
        %v1687 = vadd.f32 %v1110, %v1686
        %v1688 = vpop.f32.mrf.mxu0
        %1689 = vmatprep.mubr.f32.mxu0 0.0
        %1690 = vmatmul.mubr.f32.gmra.mxu0 %v1364
        %v1691 = vpop.f32.mrf.mxu0
        %v1692 = vadd.f32 %v1115, %v1691
        %v1693 = vpop.f32.mrf.mxu0
        %1694 = vmatprep.mubr.f32.mxu0 0.0
        %1695 = vmatmul.mubr.f32.gmra.mxu0 %v1367
        %v1696 = vpop.f32.mrf.mxu0
        %v1697 = vadd.f32 %v1120, %v1696
        %v1698 = vpop.f32.mrf.mxu0
        %1699 = vmatprep.mubr.f32.mxu0 0.0
        %1700 = vmatmul.mubr.f32.gmra.mxu0 %v1370
        %v1701 = vpop.f32.mrf.mxu0
        %v1702 = vadd.f32 %v1125, %v1701
        %v1703 = vpop.f32.mrf.mxu0
        %1704 = vmatprep.mubr.f32.mxu0 0.0
        %1705 = vmatmul.mubr.f32.gmra.mxu0 %v1373
        %v1706 = vpop.f32.mrf.mxu0
        %v1707 = vadd.f32 %v1130, %v1706
        %v1708 = vpop.f32.mrf.mxu0
        %1709 = vmatprep.mubr.f32.mxu0 0.0
        %1710 = vmatmul.mubr.f32.gmra.mxu0 %v1376
        %v1711 = vpop.f32.mrf.mxu0
        %v1712 = vadd.f32 %v1135, %v1711
        %v1713 = vpop.f32.mrf.mxu0
        %1714 = vmatprep.mubr.f32.mxu0 0.0
        %1715 = vmatmul.mubr.f32.gmra.mxu0 %v1379
        %v1716 = vpop.f32.mrf.mxu0
        %v1717 = vadd.f32 %v1140, %v1716
        %v1718 = vpop.f32.mrf.mxu0
        %1719 = vmatprep.mubr.f32.mxu0 0.0
        %1720 = vmatmul.mubr.f32.gmra.mxu0 %v1382
        %v1721 = vpop.f32.mrf.mxu0
        %v1722 = vadd.f32 %v1145, %v1721
        %v1723 = vpop.f32.mrf.mxu0
        %1724 = vmatprep.mubr.f32.mxu0 0.0
        %1725 = vmatmul.mubr.f32.gmra.mxu0 %v1385
        %v1726 = vpop.f32.mrf.mxu0
        %v1727 = vadd.f32 %v1150, %v1726
        %v1728 = vpop.f32.mrf.mxu0
        %1729 = vmatprep.mubr.f32.mxu0 0.0
        %1730 = vmatmul.mubr.f32.gmra.mxu0 %v1388
        %v1731 = vpop.f32.mrf.mxu0
        %v1732 = vadd.f32 %v1155, %v1731
        %v1733 = vpop.f32.mrf.mxu0
        %1734 = vmatprep.mubr.f32.mxu0 0.0
        %1735 = vmatmul.mubr.f32.gmra.mxu0 %v1391
        %v1736 = vpop.f32.mrf.mxu0
        %v1737 = vadd.f32 %v1160, %v1736
        %v1738 = vpop.f32.mrf.mxu0
        %1739 = vmatprep.mubr.f32.mxu0 0.0
        %1740 = vmatmul.mubr.f32.gmra.mxu0 %v1394
        %v1741 = vpop.f32.mrf.mxu0
        %v1742 = vadd.f32 %v1165, %v1741
        %v1743 = vpop.f32.mrf.mxu0
        %1744 = vmatprep.mubr.f32.mxu0 0.0
        %1745 = vmatmul.mubr.f32.gmra.mxu0 %v1397
        %v1746 = vpop.f32.mrf.mxu0
        %v1747 = vadd.f32 %v1170, %v1746
        %v1748 = vpop.f32.mrf.mxu0
        %1749 = vmatprep.mubr.f32.mxu0 0.0
        %1750 = vmatmul.mubr.f32.gmra.mxu0 %v1400
        %v1751 = vpop.f32.mrf.mxu0
        %v1752 = vadd.f32 %v1175, %v1751
        %v1753 = vpop.f32.mrf.mxu0
        %1754 = vmatprep.mubr.f32.mxu0 0.0
        %1755 = vmatmul.mubr.f32.gmra.mxu0 %v1403
        %v1756 = vpop.f32.mrf.mxu0
        %v1757 = vadd.f32 %v1180, %v1756
        %v1758 = vpop.f32.mrf.mxu0
        %1759 = vmatprep.mubr.f32.mxu0 0.0
        %1760 = vmatmul.mubr.f32.gmra.mxu0 %v1406
        %v1761 = vpop.f32.mrf.mxu0
        %v1762 = vadd.f32 %v1185, %v1761
        %v1763 = vpop.f32.mrf.mxu0
        %1764 = vmatprep.mubr.f32.mxu0 0.0
        %1765 = vmatmul.mubr.f32.gmra.mxu0 %v1409
        %v1766 = vpop.f32.mrf.mxu0
        %v1767 = vadd.f32 %v1190, %v1766
        %v1768 = vpop.f32.mrf.mxu0
        %1769 = vmatprep.mubr.f32.mxu0 0.0
        %1770 = vmatmul.mubr.f32.gmra.mxu0 %v1412
        %v1771 = vpop.f32.mrf.mxu0
        %v1772 = vadd.f32 %v1195, %v1771
        %v1773 = vpop.f32.mrf.mxu0
        %1774 = vmatprep.mubr.f32.mxu0 0.0
        %1775 = vmatmul.mubr.f32.gmra.mxu0 %v1415
        %v1776 = vpop.f32.mrf.mxu0
        %v1777 = vadd.f32 %v1200, %v1776
        %v1778 = vpop.f32.mrf.mxu0
        %1779 = vmatprep.mubr.f32.mxu0 0.0
        %1780 = vmatmul.mubr.f32.gmra.mxu0 %v1418
        %v1781 = vpop.f32.mrf.mxu0
        %v1782 = vadd.f32 %v1205, %v1781
        %v1783 = vpop.f32.mrf.mxu0
        %1784 = vmatprep.mubr.f32.mxu0 0.0
        %1785 = vmatmul.mubr.f32.gmra.mxu0 %v1421
        %v1786 = vpop.f32.mrf.mxu0
        %v1787 = vadd.f32 %v1210, %v1786
        %v1788 = vpop.f32.mrf.mxu0
        %1789 = vmatprep.mubr.f32.mxu0 0.0
        %1790 = vmatmul.mubr.f32.gmra.mxu0 %v1424
        %v1791 = vpop.f32.mrf.mxu0
        %v1792 = vadd.f32 %v1215, %v1791
        %v1793 = vpop.f32.mrf.mxu0
        %1794 = vmatprep.mubr.f32.mxu0 0.0
        %1795 = vmatmul.mubr.f32.gmra.mxu0 %v1427
        %v1796 = vpop.f32.mrf.mxu0
        %v1797 = vadd.f32 %v1220, %v1796
        %v1798 = vpop.f32.mrf.mxu0
        %1799 = vmatprep.mubr.f32.mxu0 0.0
        %1800 = vmatmul.mubr.f32.gmra.mxu0 %v1430
        %v1801 = vpop.f32.mrf.mxu0
        %v1802 = vadd.f32 %v1225, %v1801
        %v1803 = vpop.f32.mrf.mxu0
        %1804 = vmatprep.mubr.f32.mxu0 0.0
        %1805 = vmatmul.mubr.f32.gmra.mxu0 %v1433
        %v1806 = vpop.f32.mrf.mxu0
        %v1807 = vadd.f32 %v1230, %v1806
        %v1808 = vpop.f32.mrf.mxu0
        %1809 = vmatprep.mubr.f32.mxu0 0.0
        %1810 = vmatmul.mubr.f32.gmra.mxu0 %v1436
        %v1811 = vpop.f32.mrf.mxu0
        %v1812 = vadd.f32 %v1235, %v1811
        %v1813 = vpop.f32.mrf.mxu0
        %1814 = vmatprep.mubr.f32.mxu0 0.0
        %1815 = vmatmul.mubr.f32.gmra.mxu0 %v1439
        %v1816 = vpop.f32.mrf.mxu0
        %v1817 = vadd.f32 %v1240, %v1816
        %v1818 = vpop.f32.mrf.mxu0
        %1819 = vmatprep.mubr.f32.mxu0 0.0
        %1820 = vmatmul.mubr.f32.gmra.mxu0 %v1442
        %v1821 = vpop.f32.mrf.mxu0
        %v1822 = vadd.f32 %v1245, %v1821
        %v1823 = vpop.f32.mrf.mxu0
        %1824 = vmatprep.mubr.f32.mxu0 0.0
        %1825 = vmatmul.mubr.f32.gmra.mxu0 %v1445
        %v1826 = vpop.f32.mrf.mxu0
        %v1827 = vadd.f32 %v1250, %v1826
        %v1828 = vpop.f32.mrf.mxu0
        %1829 = vmatprep.mubr.f32.mxu0 0.0
        %1830 = vmatmul.mubr.f32.gmra.mxu0 %v1448
        %v1831 = vpop.f32.mrf.mxu0
        %v1832 = vadd.f32 %v1255, %v1831
        %v1833 = vpop.f32.mrf.mxu0
        %1834 = vdwg.mxu0
        %v1835 = vld [vmem:[%s1 + $0x10] sm:$0xff]
        %v1837 = vsel %vm680, %v614, 0
        %v1840 = vsel %vm680, %v615, 0
        %v1843 = vsel %vm680, %v616, 0
        %v1846 = vsel %vm680, %v617, 0
        %v1849 = vsel %vm680, %v618, 0
        %v1852 = vsel %vm680, %v619, 0
        %v1855 = vsel %vm680, %v620, 0
        %v1858 = vsel %vm680, %v621, 0
        %v1861 = vsel %vm680, %v622, 0
        %v1864 = vsel %vm680, %v623, 0
        %v1867 = vsel %vm680, %v624, 0
        %v1870 = vsel %vm680, %v625, 0
        %v1873 = vsel %vm680, %v626, 0
        %v1876 = vsel %vm680, %v627, 0
        %v1879 = vsel %vm680, %v628, 0
        %v1882 = vsel %vm680, %v629, 0
        %v1885 = vsel %vm680, %v630, 0
        %v1888 = vsel %vm680, %v631, 0
        %v1891 = vsel %vm680, %v632, 0
        %v1894 = vsel %vm680, %v633, 0
        %v1897 = vsel %vm680, %v634, 0
        %v1900 = vsel %vm680, %v635, 0
        %v1903 = vsel %vm680, %v636, 0
        %v1906 = vsel %vm680, %v637, 0
        %v1909 = vsel %vm680, %v638, 0
        %v1912 = vsel %vm680, %v639, 0
        %v1915 = vsel %vm680, %v640, 0
        %v1918 = vsel %vm680, %v641, 0
        %v1921 = vsel %vm680, %v642, 0
        %v1924 = vsel %vm680, %v643, 0
        %v1927 = vsel %vm680, %v644, 0
        %v1930 = vsel %vm680, %v645, 0
        %v1933 = vsel %vm680, %v646, 0
        %v1936 = vsel %vm680, %v647, 0
        %v1939 = vsel %vm680, %v648, 0
        %v1942 = vsel %vm680, %v649, 0
        %v1945 = vsel %vm680, %v650, 0
        %v1948 = vsel %vm680, %v651, 0
        %v1951 = vsel %vm680, %v652, 0
        %v1954 = vsel %vm680, %v653, 0
        %v1957 = vsel %vm680, %v654, 0
        %v1960 = vsel %vm680, %v655, 0
        %v1963 = vsel %vm680, %v656, 0
        %v1966 = vsel %vm680, %v657, 0
        %v1969 = vsel %vm680, %v658, 0
        %v1972 = vsel %vm680, %v659, 0
        %v1975 = vsel %vm680, %v660, 0
        %v1978 = vsel %vm680, %v661, 0
        %v1981 = vsel %vm680, %v662, 0
        %v1984 = vsel %vm680, %v663, 0
        %v1987 = vsel %vm680, %v664, 0
        %v1990 = vsel %vm680, %v665, 0
        %v1993 = vsel %vm680, %v666, 0
        %v1996 = vsel %vm680, %v667, 0
        %v1999 = vsel %vm680, %v668, 0
        %v2002 = vsel %vm680, %v669, 0
        %v2005 = vsel %vm680, %v670, 0
        %v2008 = vsel %vm680, %v671, 0
        %v2011 = vsel %vm680, %v672, 0
        %v2014 = vsel %vm680, %v673, 0
        %v2017 = vsel %vm680, %v674, 0
        %v2020 = vsel %vm680, %v675, 0
        %v2023 = vsel %vm680, %v676, 0
        %v2026 = vsel %vm680, %v677, 0
        %2028 = vmatprep.subr.mxu0 0.0
        %2029 = vmatpush1.msra.mxu0 0.0
        %2030 = vmatprep.subr.mxu0 0.0
        %2031 = vmatpush1.msra.mxu0 0.0
        %2032 = vmatprep.subr.mxu0 0.0
        %2033 = vmatpush1.msra.mxu0 0.0
        %2034 = vmatprep.subr.mxu0 0.0
        %2035 = vmatpush1.msra.mxu0 0.0
        %2036 = vmatprep.subr.mxu0 0.0
        %2037 = vmatpush1.msra.mxu0 0.0
        %2038 = vmatprep.subr.mxu0 0.0
        %2039 = vmatpush1.msra.mxu0 0.0
        %2040 = vmatprep.subr.mxu0 0.0
        %2041 = vmatpush1.msra.mxu0 0.0
        %2042 = vmatprep.subr.mxu0 0.0
        %2043 = vmatpush1.msra.mxu0 0.0
        %2044 = vmatprep.subr.mxu0 0.0
        %2045 = vmatpush1.msra.mxu0 0.0
        %2046 = vmatprep.subr.mxu0 0.0
        %2047 = vmatpush1.msra.mxu0 0.0
        %2048 = vmatprep.subr.mxu0 0.0
        %2049 = vmatpush1.msra.mxu0 0.0
        %2050 = vmatprep.subr.mxu0 0.0
        %2051 = vmatpush1.msra.mxu0 0.0
        %2052 = vmatprep.subr.mxu0 0.0
        %2053 = vmatpush1.msra.mxu0 0.0
        %2054 = vmatprep.subr.mxu0 0.0
        %2055 = vmatpush1.msra.mxu0 0.0
        %2056 = vmatprep.subr.mxu0 0.0
        %2057 = vmatpush1.msra.mxu0 0.0
        %2058 = vmatprep.subr.mxu0 0.0
        %2059 = vmatpush1.msra.mxu0 %v1835
        %2060 = vmatprep.subr.mxu0 0.0
        %2061 = vmatpush2.msra.mxu0 0.0
        %2062 = vmatprep.subr.mxu0 0.0
        %2063 = vmatpush2.msra.mxu0 0.0
        %2064 = vmatprep.subr.mxu0 0.0
        %2065 = vmatpush2.msra.mxu0 0.0
        %2066 = vmatprep.subr.mxu0 0.0
        %2067 = vmatpush2.msra.mxu0 0.0
        %2068 = vmatprep.subr.mxu0 0.0
        %2069 = vmatpush2.msra.mxu0 0.0
        %2070 = vmatprep.subr.mxu0 0.0
        %2071 = vmatpush2.msra.mxu0 0.0
        %2072 = vmatprep.subr.mxu0 0.0
        %2073 = vmatpush2.msra.mxu0 0.0
        %2074 = vmatprep.subr.mxu0 0.0
        %2075 = vmatpush2.msra.mxu0 0.0
        %2076 = vmatprep.subr.mxu0 0.0
        %2077 = vmatpush2.msra.mxu0 0.0
        %2078 = vmatprep.subr.mxu0 0.0
        %2079 = vmatpush2.msra.mxu0 0.0
        %2080 = vmatprep.subr.mxu0 0.0
        %2081 = vmatpush2.msra.mxu0 0.0
        %2082 = vmatprep.subr.mxu0 0.0
        %2083 = vmatpush2.msra.mxu0 0.0
        %2084 = vmatprep.subr.mxu0 0.0
        %2085 = vmatpush2.msra.mxu0 0.0
        %2086 = vmatprep.subr.mxu0 0.0
        %2087 = vmatpush2.msra.mxu0 0.0
        %2088 = vmatprep.subr.mxu0 0.0
        %2089 = vmatpush2.msra.mxu0 0.0
        %2090 = vmatprep.subr.mxu0 0.0
        %2091 = vmatpush2.msra.mxu0 0.0
        %2092 = vmatprep.mubr.f32.mxu0 0.0
        %2093 = vmatmul.mubr.f32.gmra.mxu0 %v1837
        %v2094 = vpop.f32.mrf.mxu0
        %v2095 = vadd.f32 0.0, %v2094
        %v2096 = vpop.f32.mrf.mxu0
        %2097 = vmatprep.mubr.f32.mxu0 0.0
        %2098 = vmatmul.mubr.f32.gmra.mxu0 %v1840
        %v2099 = vpop.f32.mrf.mxu0
        %v2100 = vadd.f32 0.0, %v2099
        %v2101 = vpop.f32.mrf.mxu0
        %2102 = vmatprep.mubr.f32.mxu0 0.0
        %2103 = vmatmul.mubr.f32.gmra.mxu0 %v1843
        %v2104 = vpop.f32.mrf.mxu0
        %v2105 = vadd.f32 0.0, %v2104
        %v2106 = vpop.f32.mrf.mxu0
        %2107 = vmatprep.mubr.f32.mxu0 0.0
        %2108 = vmatmul.mubr.f32.gmra.mxu0 %v1846
        %v2109 = vpop.f32.mrf.mxu0
        %v2110 = vadd.f32 0.0, %v2109
        %v2111 = vpop.f32.mrf.mxu0
        %2112 = vmatprep.mubr.f32.mxu0 0.0
        %2113 = vmatmul.mubr.f32.gmra.mxu0 %v1849
        %v2114 = vpop.f32.mrf.mxu0
        %v2115 = vadd.f32 0.0, %v2114
        %v2116 = vpop.f32.mrf.mxu0
        %2117 = vmatprep.mubr.f32.mxu0 0.0
        %2118 = vmatmul.mubr.f32.gmra.mxu0 %v1852
        %v2119 = vpop.f32.mrf.mxu0
        %v2120 = vadd.f32 0.0, %v2119
        %v2121 = vpop.f32.mrf.mxu0
        %2122 = vmatprep.mubr.f32.mxu0 0.0
        %2123 = vmatmul.mubr.f32.gmra.mxu0 %v1855
        %v2124 = vpop.f32.mrf.mxu0
        %v2125 = vadd.f32 0.0, %v2124
        %v2126 = vpop.f32.mrf.mxu0
        %2127 = vmatprep.mubr.f32.mxu0 0.0
        %2128 = vmatmul.mubr.f32.gmra.mxu0 %v1858
        %v2129 = vpop.f32.mrf.mxu0
        %v2130 = vadd.f32 0.0, %v2129
        %v2131 = vpop.f32.mrf.mxu0
        %2132 = vmatprep.mubr.f32.mxu0 0.0
        %2133 = vmatmul.mubr.f32.gmra.mxu0 %v1861
        %v2134 = vpop.f32.mrf.mxu0
        %v2135 = vadd.f32 0.0, %v2134
        %v2136 = vpop.f32.mrf.mxu0
        %2137 = vmatprep.mubr.f32.mxu0 0.0
        %2138 = vmatmul.mubr.f32.gmra.mxu0 %v1864
        %v2139 = vpop.f32.mrf.mxu0
        %v2140 = vadd.f32 0.0, %v2139
        %v2141 = vpop.f32.mrf.mxu0
        %2142 = vmatprep.mubr.f32.mxu0 0.0
        %2143 = vmatmul.mubr.f32.gmra.mxu0 %v1867
        %v2144 = vpop.f32.mrf.mxu0
        %v2145 = vadd.f32 0.0, %v2144
        %v2146 = vpop.f32.mrf.mxu0
        %2147 = vmatprep.mubr.f32.mxu0 0.0
        %2148 = vmatmul.mubr.f32.gmra.mxu0 %v1870
        %v2149 = vpop.f32.mrf.mxu0
        %v2150 = vadd.f32 0.0, %v2149
        %v2151 = vpop.f32.mrf.mxu0
        %2152 = vmatprep.mubr.f32.mxu0 0.0
        %2153 = vmatmul.mubr.f32.gmra.mxu0 %v1873
        %v2154 = vpop.f32.mrf.mxu0
        %v2155 = vadd.f32 0.0, %v2154
        %v2156 = vpop.f32.mrf.mxu0
        %2157 = vmatprep.mubr.f32.mxu0 0.0
        %2158 = vmatmul.mubr.f32.gmra.mxu0 %v1876
        %v2159 = vpop.f32.mrf.mxu0
        %v2160 = vadd.f32 0.0, %v2159
        %v2161 = vpop.f32.mrf.mxu0
        %2162 = vmatprep.mubr.f32.mxu0 0.0
        %2163 = vmatmul.mubr.f32.gmra.mxu0 %v1879
        %v2164 = vpop.f32.mrf.mxu0
        %v2165 = vadd.f32 0.0, %v2164
        %v2166 = vpop.f32.mrf.mxu0
        %2167 = vmatprep.mubr.f32.mxu0 0.0
        %2168 = vmatmul.mubr.f32.gmra.mxu0 %v1882
        %v2169 = vpop.f32.mrf.mxu0
        %v2170 = vadd.f32 0.0, %v2169
        %v2171 = vpop.f32.mrf.mxu0
        %2172 = vmatprep.mubr.f32.mxu0 0.0
        %2173 = vmatmul.mubr.f32.gmra.mxu0 %v1885
        %v2174 = vpop.f32.mrf.mxu0
        %v2175 = vadd.f32 0.0, %v2174
        %v2176 = vpop.f32.mrf.mxu0
        %2177 = vmatprep.mubr.f32.mxu0 0.0
        %2178 = vmatmul.mubr.f32.gmra.mxu0 %v1888
        %v2179 = vpop.f32.mrf.mxu0
        %v2180 = vadd.f32 0.0, %v2179
        %v2181 = vpop.f32.mrf.mxu0
        %2182 = vmatprep.mubr.f32.mxu0 0.0
        %2183 = vmatmul.mubr.f32.gmra.mxu0 %v1891
        %v2184 = vpop.f32.mrf.mxu0
        %v2185 = vadd.f32 0.0, %v2184
        %v2186 = vpop.f32.mrf.mxu0
        %2187 = vmatprep.mubr.f32.mxu0 0.0
        %2188 = vmatmul.mubr.f32.gmra.mxu0 %v1894
        %v2189 = vpop.f32.mrf.mxu0
        %v2190 = vadd.f32 0.0, %v2189
        %v2191 = vpop.f32.mrf.mxu0
        %2192 = vmatprep.mubr.f32.mxu0 0.0
        %2193 = vmatmul.mubr.f32.gmra.mxu0 %v1897
        %v2194 = vpop.f32.mrf.mxu0
        %v2195 = vadd.f32 0.0, %v2194
        %v2196 = vpop.f32.mrf.mxu0
        %2197 = vmatprep.mubr.f32.mxu0 0.0
        %2198 = vmatmul.mubr.f32.gmra.mxu0 %v1900
        %v2199 = vpop.f32.mrf.mxu0
        %v2200 = vadd.f32 0.0, %v2199
        %v2201 = vpop.f32.mrf.mxu0
        %2202 = vmatprep.mubr.f32.mxu0 0.0
        %2203 = vmatmul.mubr.f32.gmra.mxu0 %v1903
        %v2204 = vpop.f32.mrf.mxu0
        %v2205 = vadd.f32 0.0, %v2204
        %v2206 = vpop.f32.mrf.mxu0
        %2207 = vmatprep.mubr.f32.mxu0 0.0
        %2208 = vmatmul.mubr.f32.gmra.mxu0 %v1906
        %v2209 = vpop.f32.mrf.mxu0
        %v2210 = vadd.f32 0.0, %v2209
        %v2211 = vpop.f32.mrf.mxu0
        %2212 = vmatprep.mubr.f32.mxu0 0.0
        %2213 = vmatmul.mubr.f32.gmra.mxu0 %v1909
        %v2214 = vpop.f32.mrf.mxu0
        %v2215 = vadd.f32 0.0, %v2214
        %v2216 = vpop.f32.mrf.mxu0
        %2217 = vmatprep.mubr.f32.mxu0 0.0
        %2218 = vmatmul.mubr.f32.gmra.mxu0 %v1912
        %v2219 = vpop.f32.mrf.mxu0
        %v2220 = vadd.f32 0.0, %v2219
        %v2221 = vpop.f32.mrf.mxu0
        %2222 = vmatprep.mubr.f32.mxu0 0.0
        %2223 = vmatmul.mubr.f32.gmra.mxu0 %v1915
        %v2224 = vpop.f32.mrf.mxu0
        %v2225 = vadd.f32 0.0, %v2224
        %v2226 = vpop.f32.mrf.mxu0
        %2227 = vmatprep.mubr.f32.mxu0 0.0
        %2228 = vmatmul.mubr.f32.gmra.mxu0 %v1918
        %v2229 = vpop.f32.mrf.mxu0
        %v2230 = vadd.f32 0.0, %v2229
        %v2231 = vpop.f32.mrf.mxu0
        %2232 = vmatprep.mubr.f32.mxu0 0.0
        %2233 = vmatmul.mubr.f32.gmra.mxu0 %v1921
        %v2234 = vpop.f32.mrf.mxu0
        %v2235 = vadd.f32 0.0, %v2234
        %v2236 = vpop.f32.mrf.mxu0
        %2237 = vmatprep.mubr.f32.mxu0 0.0
        %2238 = vmatmul.mubr.f32.gmra.mxu0 %v1924
        %v2239 = vpop.f32.mrf.mxu0
        %v2240 = vadd.f32 0.0, %v2239
        %v2241 = vpop.f32.mrf.mxu0
        %2242 = vmatprep.mubr.f32.mxu0 0.0
        %2243 = vmatmul.mubr.f32.gmra.mxu0 %v1927
        %v2244 = vpop.f32.mrf.mxu0
        %v2245 = vadd.f32 0.0, %v2244
        %v2246 = vpop.f32.mrf.mxu0
        %2247 = vmatprep.mubr.f32.mxu0 0.0
        %2248 = vmatmul.mubr.f32.gmra.mxu0 %v1930
        %v2249 = vpop.f32.mrf.mxu0
        %v2250 = vadd.f32 0.0, %v2249
        %v2251 = vpop.f32.mrf.mxu0
        %2252 = vmatprep.mubr.f32.mxu0 0.0
        %2253 = vmatmul.mubr.f32.gmra.mxu0 %v1933
        %v2254 = vpop.f32.mrf.mxu0
        %v2255 = vadd.f32 0.0, %v2254
        %v2256 = vpop.f32.mrf.mxu0
        %2257 = vmatprep.mubr.f32.mxu0 0.0
        %2258 = vmatmul.mubr.f32.gmra.mxu0 %v1936
        %v2259 = vpop.f32.mrf.mxu0
        %v2260 = vadd.f32 0.0, %v2259
        %v2261 = vpop.f32.mrf.mxu0
        %2262 = vmatprep.mubr.f32.mxu0 0.0
        %2263 = vmatmul.mubr.f32.gmra.mxu0 %v1939
        %v2264 = vpop.f32.mrf.mxu0
        %v2265 = vadd.f32 0.0, %v2264
        %v2266 = vpop.f32.mrf.mxu0
        %2267 = vmatprep.mubr.f32.mxu0 0.0
        %2268 = vmatmul.mubr.f32.gmra.mxu0 %v1942
        %v2269 = vpop.f32.mrf.mxu0
        %v2270 = vadd.f32 0.0, %v2269
        %v2271 = vpop.f32.mrf.mxu0
        %2272 = vmatprep.mubr.f32.mxu0 0.0
        %2273 = vmatmul.mubr.f32.gmra.mxu0 %v1945
        %v2274 = vpop.f32.mrf.mxu0
        %v2275 = vadd.f32 0.0, %v2274
        %v2276 = vpop.f32.mrf.mxu0
        %2277 = vmatprep.mubr.f32.mxu0 0.0
        %2278 = vmatmul.mubr.f32.gmra.mxu0 %v1948
        %v2279 = vpop.f32.mrf.mxu0
        %v2280 = vadd.f32 0.0, %v2279
        %v2281 = vpop.f32.mrf.mxu0
        %2282 = vmatprep.mubr.f32.mxu0 0.0
        %2283 = vmatmul.mubr.f32.gmra.mxu0 %v1951
        %v2284 = vpop.f32.mrf.mxu0
        %v2285 = vadd.f32 0.0, %v2284
        %v2286 = vpop.f32.mrf.mxu0
        %2287 = vmatprep.mubr.f32.mxu0 0.0
        %2288 = vmatmul.mubr.f32.gmra.mxu0 %v1954
        %v2289 = vpop.f32.mrf.mxu0
        %v2290 = vadd.f32 0.0, %v2289
        %v2291 = vpop.f32.mrf.mxu0
        %2292 = vmatprep.mubr.f32.mxu0 0.0
        %2293 = vmatmul.mubr.f32.gmra.mxu0 %v1957
        %v2294 = vpop.f32.mrf.mxu0
        %v2295 = vadd.f32 0.0, %v2294
        %v2296 = vpop.f32.mrf.mxu0
        %2297 = vmatprep.mubr.f32.mxu0 0.0
        %2298 = vmatmul.mubr.f32.gmra.mxu0 %v1960
        %v2299 = vpop.f32.mrf.mxu0
        %v2300 = vadd.f32 0.0, %v2299
        %v2301 = vpop.f32.mrf.mxu0
        %2302 = vmatprep.mubr.f32.mxu0 0.0
        %2303 = vmatmul.mubr.f32.gmra.mxu0 %v1963
        %v2304 = vpop.f32.mrf.mxu0
        %v2305 = vadd.f32 0.0, %v2304
        %v2306 = vpop.f32.mrf.mxu0
        %2307 = vmatprep.mubr.f32.mxu0 0.0
        %2308 = vmatmul.mubr.f32.gmra.mxu0 %v1966
        %v2309 = vpop.f32.mrf.mxu0
        %v2310 = vadd.f32 0.0, %v2309
        %v2311 = vpop.f32.mrf.mxu0
        %2312 = vmatprep.mubr.f32.mxu0 0.0
        %2313 = vmatmul.mubr.f32.gmra.mxu0 %v1969
        %v2314 = vpop.f32.mrf.mxu0
        %v2315 = vadd.f32 0.0, %v2314
        %v2316 = vpop.f32.mrf.mxu0
        %2317 = vmatprep.mubr.f32.mxu0 0.0
        %2318 = vmatmul.mubr.f32.gmra.mxu0 %v1972
        %v2319 = vpop.f32.mrf.mxu0
        %v2320 = vadd.f32 0.0, %v2319
        %v2321 = vpop.f32.mrf.mxu0
        %2322 = vmatprep.mubr.f32.mxu0 0.0
        %2323 = vmatmul.mubr.f32.gmra.mxu0 %v1975
        %v2324 = vpop.f32.mrf.mxu0
        %v2325 = vadd.f32 0.0, %v2324
        %v2326 = vpop.f32.mrf.mxu0
        %2327 = vmatprep.mubr.f32.mxu0 0.0
        %2328 = vmatmul.mubr.f32.gmra.mxu0 %v1978
        %v2329 = vpop.f32.mrf.mxu0
        %v2330 = vadd.f32 0.0, %v2329
        %v2331 = vpop.f32.mrf.mxu0
        %2332 = vmatprep.mubr.f32.mxu0 0.0
        %2333 = vmatmul.mubr.f32.gmra.mxu0 %v1981
        %v2334 = vpop.f32.mrf.mxu0
        %v2335 = vadd.f32 0.0, %v2334
        %v2336 = vpop.f32.mrf.mxu0
        %2337 = vmatprep.mubr.f32.mxu0 0.0
        %2338 = vmatmul.mubr.f32.gmra.mxu0 %v1984
        %v2339 = vpop.f32.mrf.mxu0
        %v2340 = vadd.f32 0.0, %v2339
        %v2341 = vpop.f32.mrf.mxu0
        %2342 = vmatprep.mubr.f32.mxu0 0.0
        %2343 = vmatmul.mubr.f32.gmra.mxu0 %v1987
        %v2344 = vpop.f32.mrf.mxu0
        %v2345 = vadd.f32 0.0, %v2344
        %v2346 = vpop.f32.mrf.mxu0
        %2347 = vmatprep.mubr.f32.mxu0 0.0
        %2348 = vmatmul.mubr.f32.gmra.mxu0 %v1990
        %v2349 = vpop.f32.mrf.mxu0
        %v2350 = vadd.f32 0.0, %v2349
        %v2351 = vpop.f32.mrf.mxu0
        %2352 = vmatprep.mubr.f32.mxu0 0.0
        %2353 = vmatmul.mubr.f32.gmra.mxu0 %v1993
        %v2354 = vpop.f32.mrf.mxu0
        %v2355 = vadd.f32 0.0, %v2354
        %v2356 = vpop.f32.mrf.mxu0
        %2357 = vmatprep.mubr.f32.mxu0 0.0
        %2358 = vmatmul.mubr.f32.gmra.mxu0 %v1996
        %v2359 = vpop.f32.mrf.mxu0
        %v2360 = vadd.f32 0.0, %v2359
        %v2361 = vpop.f32.mrf.mxu0
        %2362 = vmatprep.mubr.f32.mxu0 0.0
        %2363 = vmatmul.mubr.f32.gmra.mxu0 %v1999
        %v2364 = vpop.f32.mrf.mxu0
        %v2365 = vadd.f32 0.0, %v2364
        %v2366 = vpop.f32.mrf.mxu0
        %2367 = vmatprep.mubr.f32.mxu0 0.0
        %2368 = vmatmul.mubr.f32.gmra.mxu0 %v2002
        %v2369 = vpop.f32.mrf.mxu0
        %v2370 = vadd.f32 0.0, %v2369
        %v2371 = vpop.f32.mrf.mxu0
        %2372 = vmatprep.mubr.f32.mxu0 0.0
        %2373 = vmatmul.mubr.f32.gmra.mxu0 %v2005
        %v2374 = vpop.f32.mrf.mxu0
        %v2375 = vadd.f32 0.0, %v2374
        %v2376 = vpop.f32.mrf.mxu0
        %2377 = vmatprep.mubr.f32.mxu0 0.0
        %2378 = vmatmul.mubr.f32.gmra.mxu0 %v2008
        %v2379 = vpop.f32.mrf.mxu0
        %v2380 = vadd.f32 0.0, %v2379
        %v2381 = vpop.f32.mrf.mxu0
        %2382 = vmatprep.mubr.f32.mxu0 0.0
        %2383 = vmatmul.mubr.f32.gmra.mxu0 %v2011
        %v2384 = vpop.f32.mrf.mxu0
        %v2385 = vadd.f32 0.0, %v2384
        %v2386 = vpop.f32.mrf.mxu0
        %2387 = vmatprep.mubr.f32.mxu0 0.0
        %2388 = vmatmul.mubr.f32.gmra.mxu0 %v2014
        %v2389 = vpop.f32.mrf.mxu0
        %v2390 = vadd.f32 0.0, %v2389
        %v2391 = vpop.f32.mrf.mxu0
        %2392 = vmatprep.mubr.f32.mxu0 0.0
        %2393 = vmatmul.mubr.f32.gmra.mxu0 %v2017
        %v2394 = vpop.f32.mrf.mxu0
        %v2395 = vadd.f32 0.0, %v2394
        %v2396 = vpop.f32.mrf.mxu0
        %2397 = vmatprep.mubr.f32.mxu0 0.0
        %2398 = vmatmul.mubr.f32.gmra.mxu0 %v2020
        %v2399 = vpop.f32.mrf.mxu0
        %v2400 = vadd.f32 0.0, %v2399
        %v2401 = vpop.f32.mrf.mxu0
        %2402 = vmatprep.mubr.f32.mxu0 0.0
        %2403 = vmatmul.mubr.f32.gmra.mxu0 %v2023
        %v2404 = vpop.f32.mrf.mxu0
        %v2405 = vadd.f32 0.0, %v2404
        %v2406 = vpop.f32.mrf.mxu0
        %2407 = vmatprep.mubr.f32.mxu0 0.0
        %2408 = vmatmul.mubr.f32.gmra.mxu0 %v2026
        %v2409 = vpop.f32.mrf.mxu0
        %v2410 = vadd.f32 0.0, %v2409
        %v2411 = vpop.f32.mrf.mxu0
        %2412 = vdwg.mxu0
        %v2413 = vadd.f32 %v1517, %v2095
        %v2414 = vadd.f32 %v1522, %v2100
        %v2415 = vadd.f32 %v1527, %v2105
        %v2416 = vadd.f32 %v1532, %v2110
        %v2417 = vadd.f32 %v1537, %v2115
        %v2418 = vadd.f32 %v1542, %v2120
        %v2419 = vadd.f32 %v1547, %v2125
        %v2420 = vadd.f32 %v1552, %v2130
        %v2421 = vadd.f32 %v1557, %v2135
        %v2422 = vadd.f32 %v1562, %v2140
        %v2423 = vadd.f32 %v1567, %v2145
        %v2424 = vadd.f32 %v1572, %v2150
        %v2425 = vadd.f32 %v1577, %v2155
        %v2426 = vadd.f32 %v1582, %v2160
        %v2427 = vadd.f32 %v1587, %v2165
        %v2428 = vadd.f32 %v1592, %v2170
        %v2429 = vadd.f32 %v1597, %v2175
        %v2430 = vadd.f32 %v1602, %v2180
        %v2431 = vadd.f32 %v1607, %v2185
        %v2432 = vadd.f32 %v1612, %v2190
        %v2433 = vadd.f32 %v1617, %v2195
        %v2434 = vadd.f32 %v1622, %v2200
        %v2435 = vadd.f32 %v1627, %v2205
        %v2436 = vadd.f32 %v1632, %v2210
        %v2437 = vadd.f32 %v1637, %v2215
        %v2438 = vadd.f32 %v1642, %v2220
        %v2439 = vadd.f32 %v1647, %v2225
        %v2440 = vadd.f32 %v1652, %v2230
        %v2441 = vadd.f32 %v1657, %v2235
        %v2442 = vadd.f32 %v1662, %v2240
        %v2443 = vadd.f32 %v1667, %v2245
        %v2444 = vadd.f32 %v1672, %v2250
        %v2445 = vadd.f32 %v1677, %v2255
        %v2446 = vadd.f32 %v1682, %v2260
        %v2447 = vadd.f32 %v1687, %v2265
        %v2448 = vadd.f32 %v1692, %v2270
        %v2449 = vadd.f32 %v1697, %v2275
        %v2450 = vadd.f32 %v1702, %v2280
        %v2451 = vadd.f32 %v1707, %v2285
        %v2452 = vadd.f32 %v1712, %v2290
        %v2453 = vadd.f32 %v1717, %v2295
        %v2454 = vadd.f32 %v1722, %v2300
        %v2455 = vadd.f32 %v1727, %v2305
        %v2456 = vadd.f32 %v1732, %v2310
        %v2457 = vadd.f32 %v1737, %v2315
        %v2458 = vadd.f32 %v1742, %v2320
        %v2459 = vadd.f32 %v1747, %v2325
        %v2460 = vadd.f32 %v1752, %v2330
        %v2461 = vadd.f32 %v1757, %v2335
        %v2462 = vadd.f32 %v1762, %v2340
        %v2463 = vadd.f32 %v1767, %v2345
        %v2464 = vadd.f32 %v1772, %v2350
        %v2465 = vadd.f32 %v1777, %v2355
        %v2466 = vadd.f32 %v1782, %v2360
        %v2467 = vadd.f32 %v1787, %v2365
        %v2468 = vadd.f32 %v1792, %v2370
        %v2469 = vadd.f32 %v1797, %v2375
        %v2470 = vadd.f32 %v1802, %v2380
        %v2471 = vadd.f32 %v1807, %v2385
        %v2472 = vadd.f32 %v1812, %v2390
        %v2473 = vadd.f32 %v1817, %v2395
        %v2474 = vadd.f32 %v1822, %v2400
        %v2475 = vadd.f32 %v1827, %v2405
        %v2476 = vadd.f32 %v1832, %v2410
        %v2477 = vld [vmem:[%s2] sm:$0x1]
        %v2478 = vlaneseq
        %v2479 = vshrl.u32 %v2478, 7
        %v2480 = vsub.s32 0, %v2479
        %v2481 = vrot.slane %v2477, %v2480
        %v2482 = vadd.f32 %v2413, %v2481
        %v2483 = vadd.f32 %v2414, %v2481
        %v2484 = vadd.f32 %v2415, %v2481
        %v2485 = vadd.f32 %v2416, %v2481
        %v2486 = vadd.f32 %v2417, %v2481
        %v2487 = vadd.f32 %v2418, %v2481
        %v2488 = vadd.f32 %v2419, %v2481
        %v2489 = vadd.f32 %v2420, %v2481
        %v2490 = vadd.f32 %v2421, %v2481
        %v2491 = vadd.f32 %v2422, %v2481
        %v2492 = vadd.f32 %v2423, %v2481
        %v2493 = vadd.f32 %v2424, %v2481
        %v2494 = vadd.f32 %v2425, %v2481
        %v2495 = vadd.f32 %v2426, %v2481
        %v2496 = vadd.f32 %v2427, %v2481
        %v2497 = vadd.f32 %v2428, %v2481
        %v2498 = vadd.f32 %v2429, %v2481
        %v2499 = vadd.f32 %v2430, %v2481
        %v2500 = vadd.f32 %v2431, %v2481
        %v2501 = vadd.f32 %v2432, %v2481
        %v2502 = vadd.f32 %v2433, %v2481
        %v2503 = vadd.f32 %v2434, %v2481
        %v2504 = vadd.f32 %v2435, %v2481
        %v2505 = vadd.f32 %v2436, %v2481
        %v2506 = vadd.f32 %v2437, %v2481
        %v2507 = vadd.f32 %v2438, %v2481
        %v2508 = vadd.f32 %v2439, %v2481
        %v2509 = vadd.f32 %v2440, %v2481
        %v2510 = vadd.f32 %v2441, %v2481
        %v2511 = vadd.f32 %v2442, %v2481
        %v2512 = vadd.f32 %v2443, %v2481
        %v2513 = vadd.f32 %v2444, %v2481
        %v2514 = vadd.f32 %v2445, %v2481
        %v2515 = vadd.f32 %v2446, %v2481
        %v2516 = vadd.f32 %v2447, %v2481
        %v2517 = vadd.f32 %v2448, %v2481
        %v2518 = vadd.f32 %v2449, %v2481
        %v2519 = vadd.f32 %v2450, %v2481
        %v2520 = vadd.f32 %v2451, %v2481
        %v2521 = vadd.f32 %v2452, %v2481
        %v2522 = vadd.f32 %v2453, %v2481
        %v2523 = vadd.f32 %v2454, %v2481
        %v2524 = vadd.f32 %v2455, %v2481
        %v2525 = vadd.f32 %v2456, %v2481
        %v2526 = vadd.f32 %v2457, %v2481
        %v2527 = vadd.f32 %v2458, %v2481
        %v2528 = vadd.f32 %v2459, %v2481
        %v2529 = vadd.f32 %v2460, %v2481
        %v2530 = vadd.f32 %v2461, %v2481
        %v2531 = vadd.f32 %v2462, %v2481
        %v2532 = vadd.f32 %v2463, %v2481
        %v2533 = vadd.f32 %v2464, %v2481
        %v2534 = vadd.f32 %v2465, %v2481
        %v2535 = vadd.f32 %v2466, %v2481
        %v2536 = vadd.f32 %v2467, %v2481
        %v2537 = vadd.f32 %v2468, %v2481
        %v2538 = vadd.f32 %v2469, %v2481
        %v2539 = vadd.f32 %v2470, %v2481
        %v2540 = vadd.f32 %v2471, %v2481
        %v2541 = vadd.f32 %v2472, %v2481
        %v2542 = vadd.f32 %v2473, %v2481
        %v2543 = vadd.f32 %v2474, %v2481
        %v2544 = vadd.f32 %v2475, %v2481
        %v2545 = vadd.f32 %v2476, %v2481
        %v2546 = vmul.f32 %v2482, 0.01
        %v2547 = vmul.f32 %v2483, 0.01
        %v2548 = vmul.f32 %v2484, 0.01
        %v2549 = vmul.f32 %v2485, 0.01
        %v2550 = vmul.f32 %v2486, 0.01
        %v2551 = vmul.f32 %v2487, 0.01
        %v2552 = vmul.f32 %v2488, 0.01
        %v2553 = vmul.f32 %v2489, 0.01
        %v2554 = vmul.f32 %v2490, 0.01
        %v2555 = vmul.f32 %v2491, 0.01
        %v2556 = vmul.f32 %v2492, 0.01
        %v2557 = vmul.f32 %v2493, 0.01
        %v2558 = vmul.f32 %v2494, 0.01
        %v2559 = vmul.f32 %v2495, 0.01
        %v2560 = vmul.f32 %v2496, 0.01
        %v2561 = vmul.f32 %v2497, 0.01
        %v2562 = vmul.f32 %v2498, 0.01
        %v2563 = vmul.f32 %v2499, 0.01
        %v2564 = vmul.f32 %v2500, 0.01
        %v2565 = vmul.f32 %v2501, 0.01
        %v2566 = vmul.f32 %v2502, 0.01
        %v2567 = vmul.f32 %v2503, 0.01
        %v2568 = vmul.f32 %v2504, 0.01
        %v2569 = vmul.f32 %v2505, 0.01
        %v2570 = vmul.f32 %v2506, 0.01
        %v2571 = vmul.f32 %v2507, 0.01
        %v2572 = vmul.f32 %v2508, 0.01
        %v2573 = vmul.f32 %v2509, 0.01
        %v2574 = vmul.f32 %v2510, 0.01
        %v2575 = vmul.f32 %v2511, 0.01
        %v2576 = vmul.f32 %v2512, 0.01
        %v2577 = vmul.f32 %v2513, 0.01
        %v2578 = vmul.f32 %v2514, 0.01
        %v2579 = vmul.f32 %v2515, 0.01
        %v2580 = vmul.f32 %v2516, 0.01
        %v2581 = vmul.f32 %v2517, 0.01
        %v2582 = vmul.f32 %v2518, 0.01
        %v2583 = vmul.f32 %v2519, 0.01
        %v2584 = vmul.f32 %v2520, 0.01
        %v2585 = vmul.f32 %v2521, 0.01
        %v2586 = vmul.f32 %v2522, 0.01
        %v2587 = vmul.f32 %v2523, 0.01
        %v2588 = vmul.f32 %v2524, 0.01
        %v2589 = vmul.f32 %v2525, 0.01
        %v2590 = vmul.f32 %v2526, 0.01
        %v2591 = vmul.f32 %v2527, 0.01
        %v2592 = vmul.f32 %v2528, 0.01
        %v2593 = vmul.f32 %v2529, 0.01
        %v2594 = vmul.f32 %v2530, 0.01
        %v2595 = vmul.f32 %v2531, 0.01
        %v2596 = vmul.f32 %v2532, 0.01
        %v2597 = vmul.f32 %v2533, 0.01
        %v2598 = vmul.f32 %v2534, 0.01
        %v2599 = vmul.f32 %v2535, 0.01
        %v2600 = vmul.f32 %v2536, 0.01
        %v2601 = vmul.f32 %v2537, 0.01
        %v2602 = vmul.f32 %v2538, 0.01
        %v2603 = vmul.f32 %v2539, 0.01
        %v2604 = vmul.f32 %v2540, 0.01
        %v2605 = vmul.f32 %v2541, 0.01
        %v2606 = vmul.f32 %v2542, 0.01
        %v2607 = vmul.f32 %v2543, 0.01
        %v2608 = vmul.f32 %v2544, 0.01
        %v2609 = vmul.f32 %v2545, 0.01
        %v2610 = vmax.f32 %v2482, %v2546
        %v2611 = vmax.f32 %v2483, %v2547
        %v2612 = vmax.f32 %v2484, %v2548
        %v2613 = vmax.f32 %v2485, %v2549
        %v2614 = vmax.f32 %v2486, %v2550
        %v2615 = vmax.f32 %v2487, %v2551
        %v2616 = vmax.f32 %v2488, %v2552
        %v2617 = vmax.f32 %v2489, %v2553
        %v2618 = vmax.f32 %v2490, %v2554
        %v2619 = vmax.f32 %v2491, %v2555
        %v2620 = vmax.f32 %v2492, %v2556
        %v2621 = vmax.f32 %v2493, %v2557
        %v2622 = vmax.f32 %v2494, %v2558
        %v2623 = vmax.f32 %v2495, %v2559
        %v2624 = vmax.f32 %v2496, %v2560
        %v2625 = vmax.f32 %v2497, %v2561
        %v2626 = vmax.f32 %v2498, %v2562
        %v2627 = vmax.f32 %v2499, %v2563
        %v2628 = vmax.f32 %v2500, %v2564
        %v2629 = vmax.f32 %v2501, %v2565
        %v2630 = vmax.f32 %v2502, %v2566
        %v2631 = vmax.f32 %v2503, %v2567
        %v2632 = vmax.f32 %v2504, %v2568
        %v2633 = vmax.f32 %v2505, %v2569
        %v2634 = vmax.f32 %v2506, %v2570
        %v2635 = vmax.f32 %v2507, %v2571
        %v2636 = vmax.f32 %v2508, %v2572
        %v2637 = vmax.f32 %v2509, %v2573
        %v2638 = vmax.f32 %v2510, %v2574
        %v2639 = vmax.f32 %v2511, %v2575
        %v2640 = vmax.f32 %v2512, %v2576
        %v2641 = vmax.f32 %v2513, %v2577
        %v2642 = vmax.f32 %v2514, %v2578
        %v2643 = vmax.f32 %v2515, %v2579
        %v2644 = vmax.f32 %v2516, %v2580
        %v2645 = vmax.f32 %v2517, %v2581
        %v2646 = vmax.f32 %v2518, %v2582
        %v2647 = vmax.f32 %v2519, %v2583
        %v2648 = vmax.f32 %v2520, %v2584
        %v2649 = vmax.f32 %v2521, %v2585
        %v2650 = vmax.f32 %v2522, %v2586
        %v2651 = vmax.f32 %v2523, %v2587
        %v2652 = vmax.f32 %v2524, %v2588
        %v2653 = vmax.f32 %v2525, %v2589
        %v2654 = vmax.f32 %v2526, %v2590
        %v2655 = vmax.f32 %v2527, %v2591
        %v2656 = vmax.f32 %v2528, %v2592
        %v2657 = vmax.f32 %v2529, %v2593
        %v2658 = vmax.f32 %v2530, %v2594
        %v2659 = vmax.f32 %v2531, %v2595
        %v2660 = vmax.f32 %v2532, %v2596
        %v2661 = vmax.f32 %v2533, %v2597
        %v2662 = vmax.f32 %v2534, %v2598
        %v2663 = vmax.f32 %v2535, %v2599
        %v2664 = vmax.f32 %v2536, %v2600
        %v2665 = vmax.f32 %v2537, %v2601
        %v2666 = vmax.f32 %v2538, %v2602
        %v2667 = vmax.f32 %v2539, %v2603
        %v2668 = vmax.f32 %v2540, %v2604
        %v2669 = vmax.f32 %v2541, %v2605
        %v2670 = vmax.f32 %v2542, %v2606
        %v2671 = vmax.f32 %v2543, %v2607
        %v2672 = vmax.f32 %v2544, %v2608
        %v2673 = vmax.f32 %v2545, %v2609
        %v2674 = vrot.slane %v2610, 7
        %v2675 = vrot.slane %v2611, 7
        %v2676 = vrot.slane %v2612, 7
        %v2677 = vrot.slane %v2613, 7
        %v2678 = vrot.slane %v2614, 7
        %v2679 = vrot.slane %v2615, 7
        %v2680 = vrot.slane %v2616, 7
        %v2681 = vrot.slane %v2617, 7
        %v2682 = vrot.slane %v2618, 7
        %v2683 = vrot.slane %v2619, 7
        %v2684 = vrot.slane %v2620, 7
        %v2685 = vrot.slane %v2621, 7
        %v2686 = vrot.slane %v2622, 7
        %v2687 = vrot.slane %v2623, 7
        %v2688 = vrot.slane %v2624, 7
        %v2689 = vrot.slane %v2625, 7
        %v2690 = vrot.slane %v2626, 7
        %v2691 = vrot.slane %v2627, 7
        %v2692 = vrot.slane %v2628, 7
        %v2693 = vrot.slane %v2629, 7
        %v2694 = vrot.slane %v2630, 7
        %v2695 = vrot.slane %v2631, 7
        %v2696 = vrot.slane %v2632, 7
        %v2697 = vrot.slane %v2633, 7
        %v2698 = vrot.slane %v2634, 7
        %v2699 = vrot.slane %v2635, 7
        %v2700 = vrot.slane %v2636, 7
        %v2701 = vrot.slane %v2637, 7
        %v2702 = vrot.slane %v2638, 7
        %v2703 = vrot.slane %v2639, 7
        %v2704 = vrot.slane %v2640, 7
        %v2705 = vrot.slane %v2641, 7
        %v2706 = vrot.slane %v2642, 7
        %v2707 = vrot.slane %v2643, 7
        %v2708 = vrot.slane %v2644, 7
        %v2709 = vrot.slane %v2645, 7
        %v2710 = vrot.slane %v2646, 7
        %v2711 = vrot.slane %v2647, 7
        %v2712 = vrot.slane %v2648, 7
        %v2713 = vrot.slane %v2649, 7
        %v2714 = vrot.slane %v2650, 7
        %v2715 = vrot.slane %v2651, 7
        %v2716 = vrot.slane %v2652, 7
        %v2717 = vrot.slane %v2653, 7
        %v2718 = vrot.slane %v2654, 7
        %v2719 = vrot.slane %v2655, 7
        %v2720 = vrot.slane %v2656, 7
        %v2721 = vrot.slane %v2657, 7
        %v2722 = vrot.slane %v2658, 7
        %v2723 = vrot.slane %v2659, 7
        %v2724 = vrot.slane %v2660, 7
        %v2725 = vrot.slane %v2661, 7
        %v2726 = vrot.slane %v2662, 7
        %v2727 = vrot.slane %v2663, 7
        %v2728 = vrot.slane %v2664, 7
        %v2729 = vrot.slane %v2665, 7
        %v2730 = vrot.slane %v2666, 7
        %v2731 = vrot.slane %v2667, 7
        %v2732 = vrot.slane %v2668, 7
        %v2733 = vrot.slane %v2669, 7
        %v2734 = vrot.slane %v2670, 7
        %v2735 = vrot.slane %v2671, 7
        %v2736 = vrot.slane %v2672, 7
        %v2737 = vrot.slane %v2673, 7
        %v2738 = vsel %vm324, %v2736, %v2737
        %v2739 = vsel %vm324, %v2735, %v2736
        %v2740 = vsel %vm324, %v2734, %v2735
        %v2741 = vsel %vm324, %v2733, %v2734
        %v2742 = vsel %vm324, %v2732, %v2733
        %v2743 = vsel %vm324, %v2731, %v2732
        %v2744 = vsel %vm324, %v2730, %v2731
        %v2745 = vsel %vm324, %v2729, %v2730
        %v2746 = vsel %vm324, %v2728, %v2729
        %v2747 = vsel %vm324, %v2727, %v2728
        %v2748 = vsel %vm324, %v2726, %v2727
        %v2749 = vsel %vm324, %v2725, %v2726
        %v2750 = vsel %vm324, %v2724, %v2725
        %v2751 = vsel %vm324, %v2723, %v2724
        %v2752 = vsel %vm324, %v2722, %v2723
        %v2753 = vsel %vm324, %v2721, %v2722
        %v2754 = vsel %vm324, %v2720, %v2721
        %v2755 = vsel %vm324, %v2719, %v2720
        %v2756 = vsel %vm324, %v2718, %v2719
        %v2757 = vsel %vm324, %v2717, %v2718
        %v2758 = vsel %vm324, %v2716, %v2717
        %v2759 = vsel %vm324, %v2715, %v2716
        %v2760 = vsel %vm324, %v2714, %v2715
        %v2761 = vsel %vm324, %v2713, %v2714
        %v2762 = vsel %vm324, %v2712, %v2713
        %v2763 = vsel %vm324, %v2711, %v2712
        %v2764 = vsel %vm324, %v2710, %v2711
        %v2765 = vsel %vm324, %v2709, %v2710
        %v2766 = vsel %vm324, %v2708, %v2709
        %v2767 = vsel %vm324, %v2707, %v2708
        %v2768 = vsel %vm324, %v2706, %v2707
        %v2769 = vsel %vm324, %v2705, %v2706
        %v2770 = vsel %vm324, %v2704, %v2705
        %v2771 = vsel %vm324, %v2703, %v2704
        %v2772 = vsel %vm324, %v2702, %v2703
        %v2773 = vsel %vm324, %v2701, %v2702
        %v2774 = vsel %vm324, %v2700, %v2701
        %v2775 = vsel %vm324, %v2699, %v2700
        %v2776 = vsel %vm324, %v2698, %v2699
        %v2777 = vsel %vm324, %v2697, %v2698
        %v2778 = vsel %vm324, %v2696, %v2697
        %v2779 = vsel %vm324, %v2695, %v2696
        %v2780 = vsel %vm324, %v2694, %v2695
        %v2781 = vsel %vm324, %v2693, %v2694
        %v2782 = vsel %vm324, %v2692, %v2693
        %v2783 = vsel %vm324, %v2691, %v2692
        %v2784 = vsel %vm324, %v2690, %v2691
        %v2785 = vsel %vm324, %v2689, %v2690
        %v2786 = vsel %vm324, %v2688, %v2689
        %v2787 = vsel %vm324, %v2687, %v2688
        %v2788 = vsel %vm324, %v2686, %v2687
        %v2789 = vsel %vm324, %v2685, %v2686
        %v2790 = vsel %vm324, %v2684, %v2685
        %v2791 = vsel %vm324, %v2683, %v2684
        %v2792 = vsel %vm324, %v2682, %v2683
        %v2793 = vsel %vm324, %v2681, %v2682
        %v2794 = vsel %vm324, %v2680, %v2681
        %v2795 = vsel %vm324, %v2679, %v2680
        %v2796 = vsel %vm324, %v2678, %v2679
        %v2797 = vsel %vm324, %v2677, %v2678
        %v2798 = vsel %vm324, %v2676, %v2677
        %v2799 = vsel %vm324, %v2675, %v2676
        %v2800 = vsel %vm324, %v2674, %v2675
        %v2801 = vsel %vm324, %v2737, %v2674
        %v2802 = vsel %vm397, %v2801, 0.0
        %v2803 = vsel %vm398, %v2800, 0.0
        %v2804 = vsel %vm399, %v2799, 0.0
        %v2805 = vsel %vm400, %v2798, 0.0
        %v2806 = vsel %vm401, %v2797, 0.0
        %v2807 = vsel %vm402, %v2796, 0.0
        %v2808 = vsel %vm403, %v2795, 0.0
        %v2809 = vsel %vm404, %v2794, 0.0
        %v2810 = vsel %vm397, %v2793, 0.0
        %v2811 = vsel %vm398, %v2792, 0.0
        %v2812 = vsel %vm399, %v2791, 0.0
        %v2813 = vsel %vm400, %v2790, 0.0
        %v2814 = vsel %vm401, %v2789, 0.0
        %v2815 = vsel %vm402, %v2788, 0.0
        %v2816 = vsel %vm403, %v2787, 0.0
        %v2817 = vsel %vm404, %v2786, 0.0
        %v2818 = vsel %vm397, %v2785, 0.0
        %v2819 = vsel %vm398, %v2784, 0.0
        %v2820 = vsel %vm399, %v2783, 0.0
        %v2821 = vsel %vm400, %v2782, 0.0
        %v2822 = vsel %vm401, %v2781, 0.0
        %v2823 = vsel %vm402, %v2780, 0.0
        %v2824 = vsel %vm403, %v2779, 0.0
        %v2825 = vsel %vm404, %v2778, 0.0
        %v2826 = vsel %vm397, %v2777, 0.0
        %v2827 = vsel %vm398, %v2776, 0.0
        %v2828 = vsel %vm399, %v2775, 0.0
        %v2829 = vsel %vm400, %v2774, 0.0
        %v2830 = vsel %vm401, %v2773, 0.0
        %v2831 = vsel %vm402, %v2772, 0.0
        %v2832 = vsel %vm403, %v2771, 0.0
        %v2833 = vsel %vm404, %v2770, 0.0
        %v2834 = vsel %vm397, %v2769, 0.0
        %v2835 = vsel %vm398, %v2768, 0.0
        %v2836 = vsel %vm399, %v2767, 0.0
        %v2837 = vsel %vm400, %v2766, 0.0
        %v2838 = vsel %vm401, %v2765, 0.0
        %v2839 = vsel %vm402, %v2764, 0.0
        %v2840 = vsel %vm403, %v2763, 0.0
        %v2841 = vsel %vm404, %v2762, 0.0
        %v2842 = vsel %vm397, %v2761, 0.0
        %v2843 = vsel %vm398, %v2760, 0.0
        %v2844 = vsel %vm399, %v2759, 0.0
        %v2845 = vsel %vm400, %v2758, 0.0
        %v2846 = vsel %vm401, %v2757, 0.0
        %v2847 = vsel %vm402, %v2756, 0.0
        %v2848 = vsel %vm403, %v2755, 0.0
        %v2849 = vsel %vm404, %v2754, 0.0
        %v2850 = vsel %vm397, %v2753, 0.0
        %v2851 = vsel %vm398, %v2752, 0.0
        %v2852 = vsel %vm399, %v2751, 0.0
        %v2853 = vsel %vm400, %v2750, 0.0
        %v2854 = vsel %vm401, %v2749, 0.0
        %v2855 = vsel %vm402, %v2748, 0.0
        %v2856 = vsel %vm403, %v2747, 0.0
        %v2857 = vsel %vm404, %v2746, 0.0
        %v2858 = vsel %vm397, %v2745, 0.0
        %v2859 = vsel %vm398, %v2744, 0.0
        %v2860 = vsel %vm399, %v2743, 0.0
        %v2861 = vsel %vm400, %v2742, 0.0
        %v2862 = vsel %vm401, %v2741, 0.0
        %v2863 = vsel %vm402, %v2740, 0.0
        %v2864 = vsel %vm403, %v2739, 0.0
        %v2865 = vsel %vm404, %v2738, 0.0
        %v2866 = vrot.slane %v2610, 1
        %v2867 = vrot.slane %v2611, 1
        %v2868 = vrot.slane %v2612, 1
        %v2869 = vrot.slane %v2613, 1
        %v2870 = vrot.slane %v2614, 1
        %v2871 = vrot.slane %v2615, 1
        %v2872 = vrot.slane %v2616, 1
        %v2873 = vrot.slane %v2617, 1
        %v2874 = vrot.slane %v2618, 1
        %v2875 = vrot.slane %v2619, 1
        %v2876 = vrot.slane %v2620, 1
        %v2877 = vrot.slane %v2621, 1
        %v2878 = vrot.slane %v2622, 1
        %v2879 = vrot.slane %v2623, 1
        %v2880 = vrot.slane %v2624, 1
        %v2881 = vrot.slane %v2625, 1
        %v2882 = vrot.slane %v2626, 1
        %v2883 = vrot.slane %v2627, 1
        %v2884 = vrot.slane %v2628, 1
        %v2885 = vrot.slane %v2629, 1
        %v2886 = vrot.slane %v2630, 1
        %v2887 = vrot.slane %v2631, 1
        %v2888 = vrot.slane %v2632, 1
        %v2889 = vrot.slane %v2633, 1
        %v2890 = vrot.slane %v2634, 1
        %v2891 = vrot.slane %v2635, 1
        %v2892 = vrot.slane %v2636, 1
        %v2893 = vrot.slane %v2637, 1
        %v2894 = vrot.slane %v2638, 1
        %v2895 = vrot.slane %v2639, 1
        %v2896 = vrot.slane %v2640, 1
        %v2897 = vrot.slane %v2641, 1
        %v2898 = vrot.slane %v2642, 1
        %v2899 = vrot.slane %v2643, 1
        %v2900 = vrot.slane %v2644, 1
        %v2901 = vrot.slane %v2645, 1
        %v2902 = vrot.slane %v2646, 1
        %v2903 = vrot.slane %v2647, 1
        %v2904 = vrot.slane %v2648, 1
        %v2905 = vrot.slane %v2649, 1
        %v2906 = vrot.slane %v2650, 1
        %v2907 = vrot.slane %v2651, 1
        %v2908 = vrot.slane %v2652, 1
        %v2909 = vrot.slane %v2653, 1
        %v2910 = vrot.slane %v2654, 1
        %v2911 = vrot.slane %v2655, 1
        %v2912 = vrot.slane %v2656, 1
        %v2913 = vrot.slane %v2657, 1
        %v2914 = vrot.slane %v2658, 1
        %v2915 = vrot.slane %v2659, 1
        %v2916 = vrot.slane %v2660, 1
        %v2917 = vrot.slane %v2661, 1
        %v2918 = vrot.slane %v2662, 1
        %v2919 = vrot.slane %v2663, 1
        %v2920 = vrot.slane %v2664, 1
        %v2921 = vrot.slane %v2665, 1
        %v2922 = vrot.slane %v2666, 1
        %v2923 = vrot.slane %v2667, 1
        %v2924 = vrot.slane %v2668, 1
        %v2925 = vrot.slane %v2669, 1
        %v2926 = vrot.slane %v2670, 1
        %v2927 = vrot.slane %v2671, 1
        %v2928 = vrot.slane %v2672, 1
        %v2929 = vrot.slane %v2673, 1
        %v2930 = vsel %vm533, %v2928, %v2929
        %v2931 = vsel %vm533, %v2927, %v2928
        %v2932 = vsel %vm533, %v2926, %v2927
        %v2933 = vsel %vm533, %v2925, %v2926
        %v2934 = vsel %vm533, %v2924, %v2925
        %v2935 = vsel %vm533, %v2923, %v2924
        %v2936 = vsel %vm533, %v2922, %v2923
        %v2937 = vsel %vm533, %v2921, %v2922
        %v2938 = vsel %vm533, %v2920, %v2921
        %v2939 = vsel %vm533, %v2919, %v2920
        %v2940 = vsel %vm533, %v2918, %v2919
        %v2941 = vsel %vm533, %v2917, %v2918
        %v2942 = vsel %vm533, %v2916, %v2917
        %v2943 = vsel %vm533, %v2915, %v2916
        %v2944 = vsel %vm533, %v2914, %v2915
        %v2945 = vsel %vm533, %v2913, %v2914
        %v2946 = vsel %vm533, %v2912, %v2913
        %v2947 = vsel %vm533, %v2911, %v2912
        %v2948 = vsel %vm533, %v2910, %v2911
        %v2949 = vsel %vm533, %v2909, %v2910
        %v2950 = vsel %vm533, %v2908, %v2909
        %v2951 = vsel %vm533, %v2907, %v2908
        %v2952 = vsel %vm533, %v2906, %v2907
        %v2953 = vsel %vm533, %v2905, %v2906
        %v2954 = vsel %vm533, %v2904, %v2905
        %v2955 = vsel %vm533, %v2903, %v2904
        %v2956 = vsel %vm533, %v2902, %v2903
        %v2957 = vsel %vm533, %v2901, %v2902
        %v2958 = vsel %vm533, %v2900, %v2901
        %v2959 = vsel %vm533, %v2899, %v2900
        %v2960 = vsel %vm533, %v2898, %v2899
        %v2961 = vsel %vm533, %v2897, %v2898
        %v2962 = vsel %vm533, %v2896, %v2897
        %v2963 = vsel %vm533, %v2895, %v2896
        %v2964 = vsel %vm533, %v2894, %v2895
        %v2965 = vsel %vm533, %v2893, %v2894
        %v2966 = vsel %vm533, %v2892, %v2893
        %v2967 = vsel %vm533, %v2891, %v2892
        %v2968 = vsel %vm533, %v2890, %v2891
        %v2969 = vsel %vm533, %v2889, %v2890
        %v2970 = vsel %vm533, %v2888, %v2889
        %v2971 = vsel %vm533, %v2887, %v2888
        %v2972 = vsel %vm533, %v2886, %v2887
        %v2973 = vsel %vm533, %v2885, %v2886
        %v2974 = vsel %vm533, %v2884, %v2885
        %v2975 = vsel %vm533, %v2883, %v2884
        %v2976 = vsel %vm533, %v2882, %v2883
        %v2977 = vsel %vm533, %v2881, %v2882
        %v2978 = vsel %vm533, %v2880, %v2881
        %v2979 = vsel %vm533, %v2879, %v2880
        %v2980 = vsel %vm533, %v2878, %v2879
        %v2981 = vsel %vm533, %v2877, %v2878
        %v2982 = vsel %vm533, %v2876, %v2877
        %v2983 = vsel %vm533, %v2875, %v2876
        %v2984 = vsel %vm533, %v2874, %v2875
        %v2985 = vsel %vm533, %v2873, %v2874
        %v2986 = vsel %vm533, %v2872, %v2873
        %v2987 = vsel %vm533, %v2871, %v2872
        %v2988 = vsel %vm533, %v2870, %v2871
        %v2989 = vsel %vm533, %v2869, %v2870
        %v2990 = vsel %vm533, %v2868, %v2869
        %v2991 = vsel %vm533, %v2867, %v2868
        %v2992 = vsel %vm533, %v2866, %v2867
        %v2993 = vsel %vm533, %v2929, %v2866
        %v2994 = vsel %vm606, %v2992, 0.0
        %v2995 = vsel %vm607, %v2991, 0.0
        %v2996 = vsel %vm608, %v2990, 0.0
        %v2997 = vsel %vm609, %v2989, 0.0
        %v2998 = vsel %vm610, %v2988, 0.0
        %v2999 = vsel %vm611, %v2987, 0.0
        %v3000 = vsel %vm612, %v2986, 0.0
        %v3001 = vsel %vm613, %v2985, 0.0
        %v3002 = vsel %vm606, %v2984, 0.0
        %v3003 = vsel %vm607, %v2983, 0.0
        %v3004 = vsel %vm608, %v2982, 0.0
        %v3005 = vsel %vm609, %v2981, 0.0
        %v3006 = vsel %vm610, %v2980, 0.0
        %v3007 = vsel %vm611, %v2979, 0.0
        %v3008 = vsel %vm612, %v2978, 0.0
        %v3009 = vsel %vm613, %v2977, 0.0
        %v3010 = vsel %vm606, %v2976, 0.0
        %v3011 = vsel %vm607, %v2975, 0.0
        %v3012 = vsel %vm608, %v2974, 0.0
        %v3013 = vsel %vm609, %v2973, 0.0
        %v3014 = vsel %vm610, %v2972, 0.0
        %v3015 = vsel %vm611, %v2971, 0.0
        %v3016 = vsel %vm612, %v2970, 0.0
        %v3017 = vsel %vm613, %v2969, 0.0
        %v3018 = vsel %vm606, %v2968, 0.0
        %v3019 = vsel %vm607, %v2967, 0.0
        %v3020 = vsel %vm608, %v2966, 0.0
        %v3021 = vsel %vm609, %v2965, 0.0
        %v3022 = vsel %vm610, %v2964, 0.0
        %v3023 = vsel %vm611, %v2963, 0.0
        %v3024 = vsel %vm612, %v2962, 0.0
        %v3025 = vsel %vm613, %v2961, 0.0
        %v3026 = vsel %vm606, %v2960, 0.0
        %v3027 = vsel %vm607, %v2959, 0.0
        %v3028 = vsel %vm608, %v2958, 0.0
        %v3029 = vsel %vm609, %v2957, 0.0
        %v3030 = vsel %vm610, %v2956, 0.0
        %v3031 = vsel %vm611, %v2955, 0.0
        %v3032 = vsel %vm612, %v2954, 0.0
        %v3033 = vsel %vm613, %v2953, 0.0
        %v3034 = vsel %vm606, %v2952, 0.0
        %v3035 = vsel %vm607, %v2951, 0.0
        %v3036 = vsel %vm608, %v2950, 0.0
        %v3037 = vsel %vm609, %v2949, 0.0
        %v3038 = vsel %vm610, %v2948, 0.0
        %v3039 = vsel %vm611, %v2947, 0.0
        %v3040 = vsel %vm612, %v2946, 0.0
        %v3041 = vsel %vm613, %v2945, 0.0
        %v3042 = vsel %vm606, %v2944, 0.0
        %v3043 = vsel %vm607, %v2943, 0.0
        %v3044 = vsel %vm608, %v2942, 0.0
        %v3045 = vsel %vm609, %v2941, 0.0
        %v3046 = vsel %vm610, %v2940, 0.0
        %v3047 = vsel %vm611, %v2939, 0.0
        %v3048 = vsel %vm612, %v2938, 0.0
        %v3049 = vsel %vm613, %v2937, 0.0
        %v3050 = vsel %vm606, %v2936, 0.0
        %v3051 = vsel %vm607, %v2935, 0.0
        %v3052 = vsel %vm608, %v2934, 0.0
        %v3053 = vsel %vm609, %v2933, 0.0
        %v3054 = vsel %vm610, %v2932, 0.0
        %v3055 = vsel %vm611, %v2931, 0.0
        %v3056 = vsel %vm612, %v2930, 0.0
        %v3057 = vsel %vm613, %v2993, 0.0
        %v3058 = vld [vmem:[%s1 + $0x18] sm:$0xff]
        %v3059 = vld [vmem:[%s1 + $0x20] sm:$0xff]
        %v3060 = vld [vmem:[%s1 + $0x28] sm:$0xff]
        %v3061 = vld [vmem:[%s1 + $0x30] sm:$0xff]
        %vm3062 = vcmask 130048
        %v3064 = vsel %vm3062, %v2610, 0
        %v3067 = vsel %vm3062, %v2611, 0
        %v3070 = vsel %vm3062, %v2612, 0
        %v3073 = vsel %vm3062, %v2613, 0
        %v3076 = vsel %vm3062, %v2614, 0
        %v3079 = vsel %vm3062, %v2615, 0
        %v3082 = vsel %vm3062, %v2616, 0
        %v3085 = vsel %vm3062, %v2617, 0
        %v3088 = vsel %vm3062, %v2618, 0
        %v3091 = vsel %vm3062, %v2619, 0
        %v3094 = vsel %vm3062, %v2620, 0
        %v3097 = vsel %vm3062, %v2621, 0
        %v3100 = vsel %vm3062, %v2622, 0
        %v3103 = vsel %vm3062, %v2623, 0
        %v3106 = vsel %vm3062, %v2624, 0
        %v3109 = vsel %vm3062, %v2625, 0
        %v3112 = vsel %vm3062, %v2626, 0
        %v3115 = vsel %vm3062, %v2627, 0
        %v3118 = vsel %vm3062, %v2628, 0
        %v3121 = vsel %vm3062, %v2629, 0
        %v3124 = vsel %vm3062, %v2630, 0
        %v3127 = vsel %vm3062, %v2631, 0
        %v3130 = vsel %vm3062, %v2632, 0
        %v3133 = vsel %vm3062, %v2633, 0
        %v3136 = vsel %vm3062, %v2634, 0
        %v3139 = vsel %vm3062, %v2635, 0
        %v3142 = vsel %vm3062, %v2636, 0
        %v3145 = vsel %vm3062, %v2637, 0
        %v3148 = vsel %vm3062, %v2638, 0
        %v3151 = vsel %vm3062, %v2639, 0
        %v3154 = vsel %vm3062, %v2640, 0
        %v3157 = vsel %vm3062, %v2641, 0
        %v3160 = vsel %vm3062, %v2642, 0
        %v3163 = vsel %vm3062, %v2643, 0
        %v3166 = vsel %vm3062, %v2644, 0
        %v3169 = vsel %vm3062, %v2645, 0
        %v3172 = vsel %vm3062, %v2646, 0
        %v3175 = vsel %vm3062, %v2647, 0
        %v3178 = vsel %vm3062, %v2648, 0
        %v3181 = vsel %vm3062, %v2649, 0
        %v3184 = vsel %vm3062, %v2650, 0
        %v3187 = vsel %vm3062, %v2651, 0
        %v3190 = vsel %vm3062, %v2652, 0
        %v3193 = vsel %vm3062, %v2653, 0
        %v3196 = vsel %vm3062, %v2654, 0
        %v3199 = vsel %vm3062, %v2655, 0
        %v3202 = vsel %vm3062, %v2656, 0
        %v3205 = vsel %vm3062, %v2657, 0
        %v3208 = vsel %vm3062, %v2658, 0
        %v3211 = vsel %vm3062, %v2659, 0
        %v3214 = vsel %vm3062, %v2660, 0
        %v3217 = vsel %vm3062, %v2661, 0
        %v3220 = vsel %vm3062, %v2662, 0
        %v3223 = vsel %vm3062, %v2663, 0
        %v3226 = vsel %vm3062, %v2664, 0
        %v3229 = vsel %vm3062, %v2665, 0
        %v3232 = vsel %vm3062, %v2666, 0
        %v3235 = vsel %vm3062, %v2667, 0
        %v3238 = vsel %vm3062, %v2668, 0
        %v3241 = vsel %vm3062, %v2669, 0
        %v3244 = vsel %vm3062, %v2670, 0
        %v3247 = vsel %vm3062, %v2671, 0
        %v3250 = vsel %vm3062, %v2672, 0
        %v3253 = vsel %vm3062, %v2673, 0
        %3255 = vmatprep.subr.mxu0 0.0
        %3256 = vmatpush1.msra.mxu0 0.0
        %3257 = vmatprep.subr.mxu0 0.0
        %3258 = vmatpush1.msra.mxu0 0.0
        %3259 = vmatprep.subr.mxu0 0.0
        %3260 = vmatpush1.msra.mxu0 0.0
        %3261 = vmatprep.subr.mxu0 0.0
        %3262 = vmatpush1.msra.mxu0 0.0
        %3263 = vmatprep.subr.mxu0 0.0
        %3264 = vmatpush1.msra.mxu0 0.0
        %3265 = vmatprep.subr.mxu0 0.0
        %3266 = vmatpush1.msra.mxu0 0.0
        %3267 = vmatprep.subr.mxu0 0.0
        %3268 = vmatpush1.msra.mxu0 0.0
        %3269 = vmatprep.subr.mxu0 0.0
        %3270 = vmatpush1.msra.mxu0 0.0
        %3271 = vmatprep.subr.mxu0 0.0
        %3272 = vmatpush1.msra.mxu0 0.0
        %3273 = vmatprep.subr.mxu0 0.0
        %3274 = vmatpush1.msra.mxu0 0.0
        %3275 = vmatprep.subr.mxu0 0.0
        %3276 = vmatpush1.msra.mxu0 0.0
        %3277 = vmatprep.subr.mxu0 0.0
        %3278 = vmatpush1.msra.mxu0 0.0
        %3279 = vmatprep.subr.mxu0 0.0
        %3280 = vmatpush1.msra.mxu0 0.0
        %3281 = vmatprep.subr.mxu0 0.0
        %3282 = vmatpush1.msra.mxu0 0.0
        %3283 = vmatprep.subr.mxu0 0.0
        %3284 = vmatpush1.msra.mxu0 %v3061
        %3285 = vmatprep.subr.mxu0 0.0
        %3286 = vmatpush1.msra.mxu0 %v3060
        %3287 = vmatprep.subr.mxu0 0.0
        %3288 = vmatpush2.msra.mxu0 0.0
        %3289 = vmatprep.subr.mxu0 0.0
        %3290 = vmatpush2.msra.mxu0 0.0
        %3291 = vmatprep.subr.mxu0 0.0
        %3292 = vmatpush2.msra.mxu0 0.0
        %3293 = vmatprep.subr.mxu0 0.0
        %3294 = vmatpush2.msra.mxu0 0.0
        %3295 = vmatprep.subr.mxu0 0.0
        %3296 = vmatpush2.msra.mxu0 0.0
        %3297 = vmatprep.subr.mxu0 0.0
        %3298 = vmatpush2.msra.mxu0 0.0
        %3299 = vmatprep.subr.mxu0 0.0
        %3300 = vmatpush2.msra.mxu0 0.0
        %3301 = vmatprep.subr.mxu0 0.0
        %3302 = vmatpush2.msra.mxu0 0.0
        %3303 = vmatprep.subr.mxu0 0.0
        %3304 = vmatpush2.msra.mxu0 0.0
        %3305 = vmatprep.subr.mxu0 0.0
        %3306 = vmatpush2.msra.mxu0 0.0
        %3307 = vmatprep.subr.mxu0 0.0
        %3308 = vmatpush2.msra.mxu0 0.0
        %3309 = vmatprep.subr.mxu0 0.0
        %3310 = vmatpush2.msra.mxu0 0.0
        %3311 = vmatprep.subr.mxu0 0.0
        %3312 = vmatpush2.msra.mxu0 0.0
        %3313 = vmatprep.subr.mxu0 0.0
        %3314 = vmatpush2.msra.mxu0 0.0
        %3315 = vmatprep.subr.mxu0 0.0
        %3316 = vmatpush2.msra.mxu0 0.0
        %3317 = vmatprep.subr.mxu0 0.0
        %3318 = vmatpush2.msra.mxu0 0.0
        %3319 = vmatprep.mubr.f32.mxu0 0.0
        %3320 = vmatmul.mubr.f32.gmra.mxu0 %v3064
        %v3321 = vpop.f32.mrf.mxu0
        %v3322 = vadd.f32 0.0, %v3321
        %v3323 = vpop.f32.mrf.mxu0
        %3324 = vmatprep.mubr.f32.mxu0 0.0
        %3325 = vmatmul.mubr.f32.gmra.mxu0 %v3067
        %v3326 = vpop.f32.mrf.mxu0
        %v3327 = vadd.f32 0.0, %v3326
        %v3328 = vpop.f32.mrf.mxu0
        %3329 = vmatprep.mubr.f32.mxu0 0.0
        %3330 = vmatmul.mubr.f32.gmra.mxu0 %v3070
        %v3331 = vpop.f32.mrf.mxu0
        %v3332 = vadd.f32 0.0, %v3331
        %v3333 = vpop.f32.mrf.mxu0
        %3334 = vmatprep.mubr.f32.mxu0 0.0
        %3335 = vmatmul.mubr.f32.gmra.mxu0 %v3073
        %v3336 = vpop.f32.mrf.mxu0
        %v3337 = vadd.f32 0.0, %v3336
        %v3338 = vpop.f32.mrf.mxu0
        %3339 = vmatprep.mubr.f32.mxu0 0.0
        %3340 = vmatmul.mubr.f32.gmra.mxu0 %v3076
        %v3341 = vpop.f32.mrf.mxu0
        %v3342 = vadd.f32 0.0, %v3341
        %v3343 = vpop.f32.mrf.mxu0
        %3344 = vmatprep.mubr.f32.mxu0 0.0
        %3345 = vmatmul.mubr.f32.gmra.mxu0 %v3079
        %v3346 = vpop.f32.mrf.mxu0
        %v3347 = vadd.f32 0.0, %v3346
        %v3348 = vpop.f32.mrf.mxu0
        %3349 = vmatprep.mubr.f32.mxu0 0.0
        %3350 = vmatmul.mubr.f32.gmra.mxu0 %v3082
        %v3351 = vpop.f32.mrf.mxu0
        %v3352 = vadd.f32 0.0, %v3351
        %v3353 = vpop.f32.mrf.mxu0
        %3354 = vmatprep.mubr.f32.mxu0 0.0
        %3355 = vmatmul.mubr.f32.gmra.mxu0 %v3085
        %v3356 = vpop.f32.mrf.mxu0
        %v3357 = vadd.f32 0.0, %v3356
        %v3358 = vpop.f32.mrf.mxu0
        %3359 = vmatprep.mubr.f32.mxu0 0.0
        %3360 = vmatmul.mubr.f32.gmra.mxu0 %v3088
        %v3361 = vpop.f32.mrf.mxu0
        %v3362 = vadd.f32 0.0, %v3361
        %v3363 = vpop.f32.mrf.mxu0
        %3364 = vmatprep.mubr.f32.mxu0 0.0
        %3365 = vmatmul.mubr.f32.gmra.mxu0 %v3091
        %v3366 = vpop.f32.mrf.mxu0
        %v3367 = vadd.f32 0.0, %v3366
        %v3368 = vpop.f32.mrf.mxu0
        %3369 = vmatprep.mubr.f32.mxu0 0.0
        %3370 = vmatmul.mubr.f32.gmra.mxu0 %v3094
        %v3371 = vpop.f32.mrf.mxu0
        %v3372 = vadd.f32 0.0, %v3371
        %v3373 = vpop.f32.mrf.mxu0
        %3374 = vmatprep.mubr.f32.mxu0 0.0
        %3375 = vmatmul.mubr.f32.gmra.mxu0 %v3097
        %v3376 = vpop.f32.mrf.mxu0
        %v3377 = vadd.f32 0.0, %v3376
        %v3378 = vpop.f32.mrf.mxu0
        %3379 = vmatprep.mubr.f32.mxu0 0.0
        %3380 = vmatmul.mubr.f32.gmra.mxu0 %v3100
        %v3381 = vpop.f32.mrf.mxu0
        %v3382 = vadd.f32 0.0, %v3381
        %v3383 = vpop.f32.mrf.mxu0
        %3384 = vmatprep.mubr.f32.mxu0 0.0
        %3385 = vmatmul.mubr.f32.gmra.mxu0 %v3103
        %v3386 = vpop.f32.mrf.mxu0
        %v3387 = vadd.f32 0.0, %v3386
        %v3388 = vpop.f32.mrf.mxu0
        %3389 = vmatprep.mubr.f32.mxu0 0.0
        %3390 = vmatmul.mubr.f32.gmra.mxu0 %v3106
        %v3391 = vpop.f32.mrf.mxu0
        %v3392 = vadd.f32 0.0, %v3391
        %v3393 = vpop.f32.mrf.mxu0
        %3394 = vmatprep.mubr.f32.mxu0 0.0
        %3395 = vmatmul.mubr.f32.gmra.mxu0 %v3109
        %v3396 = vpop.f32.mrf.mxu0
        %v3397 = vadd.f32 0.0, %v3396
        %v3398 = vpop.f32.mrf.mxu0
        %3399 = vmatprep.mubr.f32.mxu0 0.0
        %3400 = vmatmul.mubr.f32.gmra.mxu0 %v3112
        %v3401 = vpop.f32.mrf.mxu0
        %v3402 = vadd.f32 0.0, %v3401
        %v3403 = vpop.f32.mrf.mxu0
        %3404 = vmatprep.mubr.f32.mxu0 0.0
        %3405 = vmatmul.mubr.f32.gmra.mxu0 %v3115
        %v3406 = vpop.f32.mrf.mxu0
        %v3407 = vadd.f32 0.0, %v3406
        %v3408 = vpop.f32.mrf.mxu0
        %3409 = vmatprep.mubr.f32.mxu0 0.0
        %3410 = vmatmul.mubr.f32.gmra.mxu0 %v3118
        %v3411 = vpop.f32.mrf.mxu0
        %v3412 = vadd.f32 0.0, %v3411
        %v3413 = vpop.f32.mrf.mxu0
        %3414 = vmatprep.mubr.f32.mxu0 0.0
        %3415 = vmatmul.mubr.f32.gmra.mxu0 %v3121
        %v3416 = vpop.f32.mrf.mxu0
        %v3417 = vadd.f32 0.0, %v3416
        %v3418 = vpop.f32.mrf.mxu0
        %3419 = vmatprep.mubr.f32.mxu0 0.0
        %3420 = vmatmul.mubr.f32.gmra.mxu0 %v3124
        %v3421 = vpop.f32.mrf.mxu0
        %v3422 = vadd.f32 0.0, %v3421
        %v3423 = vpop.f32.mrf.mxu0
        %3424 = vmatprep.mubr.f32.mxu0 0.0
        %3425 = vmatmul.mubr.f32.gmra.mxu0 %v3127
        %v3426 = vpop.f32.mrf.mxu0
        %v3427 = vadd.f32 0.0, %v3426
        %v3428 = vpop.f32.mrf.mxu0
        %3429 = vmatprep.mubr.f32.mxu0 0.0
        %3430 = vmatmul.mubr.f32.gmra.mxu0 %v3130
        %v3431 = vpop.f32.mrf.mxu0
        %v3432 = vadd.f32 0.0, %v3431
        %v3433 = vpop.f32.mrf.mxu0
        %3434 = vmatprep.mubr.f32.mxu0 0.0
        %3435 = vmatmul.mubr.f32.gmra.mxu0 %v3133
        %v3436 = vpop.f32.mrf.mxu0
        %v3437 = vadd.f32 0.0, %v3436
        %v3438 = vpop.f32.mrf.mxu0
        %3439 = vmatprep.mubr.f32.mxu0 0.0
        %3440 = vmatmul.mubr.f32.gmra.mxu0 %v3136
        %v3441 = vpop.f32.mrf.mxu0
        %v3442 = vadd.f32 0.0, %v3441
        %v3443 = vpop.f32.mrf.mxu0
        %3444 = vmatprep.mubr.f32.mxu0 0.0
        %3445 = vmatmul.mubr.f32.gmra.mxu0 %v3139
        %v3446 = vpop.f32.mrf.mxu0
        %v3447 = vadd.f32 0.0, %v3446
        %v3448 = vpop.f32.mrf.mxu0
        %3449 = vmatprep.mubr.f32.mxu0 0.0
        %3450 = vmatmul.mubr.f32.gmra.mxu0 %v3142
        %v3451 = vpop.f32.mrf.mxu0
        %v3452 = vadd.f32 0.0, %v3451
        %v3453 = vpop.f32.mrf.mxu0
        %3454 = vmatprep.mubr.f32.mxu0 0.0
        %3455 = vmatmul.mubr.f32.gmra.mxu0 %v3145
        %v3456 = vpop.f32.mrf.mxu0
        %v3457 = vadd.f32 0.0, %v3456
        %v3458 = vpop.f32.mrf.mxu0
        %3459 = vmatprep.mubr.f32.mxu0 0.0
        %3460 = vmatmul.mubr.f32.gmra.mxu0 %v3148
        %v3461 = vpop.f32.mrf.mxu0
        %v3462 = vadd.f32 0.0, %v3461
        %v3463 = vpop.f32.mrf.mxu0
        %3464 = vmatprep.mubr.f32.mxu0 0.0
        %3465 = vmatmul.mubr.f32.gmra.mxu0 %v3151
        %v3466 = vpop.f32.mrf.mxu0
        %v3467 = vadd.f32 0.0, %v3466
        %v3468 = vpop.f32.mrf.mxu0
        %3469 = vmatprep.mubr.f32.mxu0 0.0
        %3470 = vmatmul.mubr.f32.gmra.mxu0 %v3154
        %v3471 = vpop.f32.mrf.mxu0
        %v3472 = vadd.f32 0.0, %v3471
        %v3473 = vpop.f32.mrf.mxu0
        %3474 = vmatprep.mubr.f32.mxu0 0.0
        %3475 = vmatmul.mubr.f32.gmra.mxu0 %v3157
        %v3476 = vpop.f32.mrf.mxu0
        %v3477 = vadd.f32 0.0, %v3476
        %v3478 = vpop.f32.mrf.mxu0
        %3479 = vmatprep.mubr.f32.mxu0 0.0
        %3480 = vmatmul.mubr.f32.gmra.mxu0 %v3160
        %v3481 = vpop.f32.mrf.mxu0
        %v3482 = vadd.f32 0.0, %v3481
        %v3483 = vpop.f32.mrf.mxu0
        %3484 = vmatprep.mubr.f32.mxu0 0.0
        %3485 = vmatmul.mubr.f32.gmra.mxu0 %v3163
        %v3486 = vpop.f32.mrf.mxu0
        %v3487 = vadd.f32 0.0, %v3486
        %v3488 = vpop.f32.mrf.mxu0
        %3489 = vmatprep.mubr.f32.mxu0 0.0
        %3490 = vmatmul.mubr.f32.gmra.mxu0 %v3166
        %v3491 = vpop.f32.mrf.mxu0
        %v3492 = vadd.f32 0.0, %v3491
        %v3493 = vpop.f32.mrf.mxu0
        %3494 = vmatprep.mubr.f32.mxu0 0.0
        %3495 = vmatmul.mubr.f32.gmra.mxu0 %v3169
        %v3496 = vpop.f32.mrf.mxu0
        %v3497 = vadd.f32 0.0, %v3496
        %v3498 = vpop.f32.mrf.mxu0
        %3499 = vmatprep.mubr.f32.mxu0 0.0
        %3500 = vmatmul.mubr.f32.gmra.mxu0 %v3172
        %v3501 = vpop.f32.mrf.mxu0
        %v3502 = vadd.f32 0.0, %v3501
        %v3503 = vpop.f32.mrf.mxu0
        %3504 = vmatprep.mubr.f32.mxu0 0.0
        %3505 = vmatmul.mubr.f32.gmra.mxu0 %v3175
        %v3506 = vpop.f32.mrf.mxu0
        %v3507 = vadd.f32 0.0, %v3506
        %v3508 = vpop.f32.mrf.mxu0
        %3509 = vmatprep.mubr.f32.mxu0 0.0
        %3510 = vmatmul.mubr.f32.gmra.mxu0 %v3178
        %v3511 = vpop.f32.mrf.mxu0
        %v3512 = vadd.f32 0.0, %v3511
        %v3513 = vpop.f32.mrf.mxu0
        %3514 = vmatprep.mubr.f32.mxu0 0.0
        %3515 = vmatmul.mubr.f32.gmra.mxu0 %v3181
        %v3516 = vpop.f32.mrf.mxu0
        %v3517 = vadd.f32 0.0, %v3516
        %v3518 = vpop.f32.mrf.mxu0
        %3519 = vmatprep.mubr.f32.mxu0 0.0
        %3520 = vmatmul.mubr.f32.gmra.mxu0 %v3184
        %v3521 = vpop.f32.mrf.mxu0
        %v3522 = vadd.f32 0.0, %v3521
        %v3523 = vpop.f32.mrf.mxu0
        %3524 = vmatprep.mubr.f32.mxu0 0.0
        %3525 = vmatmul.mubr.f32.gmra.mxu0 %v3187
        %v3526 = vpop.f32.mrf.mxu0
        %v3527 = vadd.f32 0.0, %v3526
        %v3528 = vpop.f32.mrf.mxu0
        %3529 = vmatprep.mubr.f32.mxu0 0.0
        %3530 = vmatmul.mubr.f32.gmra.mxu0 %v3190
        %v3531 = vpop.f32.mrf.mxu0
        %v3532 = vadd.f32 0.0, %v3531
        %v3533 = vpop.f32.mrf.mxu0
        %3534 = vmatprep.mubr.f32.mxu0 0.0
        %3535 = vmatmul.mubr.f32.gmra.mxu0 %v3193
        %v3536 = vpop.f32.mrf.mxu0
        %v3537 = vadd.f32 0.0, %v3536
        %v3538 = vpop.f32.mrf.mxu0
        %3539 = vmatprep.mubr.f32.mxu0 0.0
        %3540 = vmatmul.mubr.f32.gmra.mxu0 %v3196
        %v3541 = vpop.f32.mrf.mxu0
        %v3542 = vadd.f32 0.0, %v3541
        %v3543 = vpop.f32.mrf.mxu0
        %3544 = vmatprep.mubr.f32.mxu0 0.0
        %3545 = vmatmul.mubr.f32.gmra.mxu0 %v3199
        %v3546 = vpop.f32.mrf.mxu0
        %v3547 = vadd.f32 0.0, %v3546
        %v3548 = vpop.f32.mrf.mxu0
        %3549 = vmatprep.mubr.f32.mxu0 0.0
        %3550 = vmatmul.mubr.f32.gmra.mxu0 %v3202
        %v3551 = vpop.f32.mrf.mxu0
        %v3552 = vadd.f32 0.0, %v3551
        %v3553 = vpop.f32.mrf.mxu0
        %3554 = vmatprep.mubr.f32.mxu0 0.0
        %3555 = vmatmul.mubr.f32.gmra.mxu0 %v3205
        %v3556 = vpop.f32.mrf.mxu0
        %v3557 = vadd.f32 0.0, %v3556
        %v3558 = vpop.f32.mrf.mxu0
        %3559 = vmatprep.mubr.f32.mxu0 0.0
        %3560 = vmatmul.mubr.f32.gmra.mxu0 %v3208
        %v3561 = vpop.f32.mrf.mxu0
        %v3562 = vadd.f32 0.0, %v3561
        %v3563 = vpop.f32.mrf.mxu0
        %3564 = vmatprep.mubr.f32.mxu0 0.0
        %3565 = vmatmul.mubr.f32.gmra.mxu0 %v3211
        %v3566 = vpop.f32.mrf.mxu0
        %v3567 = vadd.f32 0.0, %v3566
        %v3568 = vpop.f32.mrf.mxu0
        %3569 = vmatprep.mubr.f32.mxu0 0.0
        %3570 = vmatmul.mubr.f32.gmra.mxu0 %v3214
        %v3571 = vpop.f32.mrf.mxu0
        %v3572 = vadd.f32 0.0, %v3571
        %v3573 = vpop.f32.mrf.mxu0
        %3574 = vmatprep.mubr.f32.mxu0 0.0
        %3575 = vmatmul.mubr.f32.gmra.mxu0 %v3217
        %v3576 = vpop.f32.mrf.mxu0
        %v3577 = vadd.f32 0.0, %v3576
        %v3578 = vpop.f32.mrf.mxu0
        %3579 = vmatprep.mubr.f32.mxu0 0.0
        %3580 = vmatmul.mubr.f32.gmra.mxu0 %v3220
        %v3581 = vpop.f32.mrf.mxu0
        %v3582 = vadd.f32 0.0, %v3581
        %v3583 = vpop.f32.mrf.mxu0
        %3584 = vmatprep.mubr.f32.mxu0 0.0
        %3585 = vmatmul.mubr.f32.gmra.mxu0 %v3223
        %v3586 = vpop.f32.mrf.mxu0
        %v3587 = vadd.f32 0.0, %v3586
        %v3588 = vpop.f32.mrf.mxu0
        %3589 = vmatprep.mubr.f32.mxu0 0.0
        %3590 = vmatmul.mubr.f32.gmra.mxu0 %v3226
        %v3591 = vpop.f32.mrf.mxu0
        %v3592 = vadd.f32 0.0, %v3591
        %v3593 = vpop.f32.mrf.mxu0
        %3594 = vmatprep.mubr.f32.mxu0 0.0
        %3595 = vmatmul.mubr.f32.gmra.mxu0 %v3229
        %v3596 = vpop.f32.mrf.mxu0
        %v3597 = vadd.f32 0.0, %v3596
        %v3598 = vpop.f32.mrf.mxu0
        %3599 = vmatprep.mubr.f32.mxu0 0.0
        %3600 = vmatmul.mubr.f32.gmra.mxu0 %v3232
        %v3601 = vpop.f32.mrf.mxu0
        %v3602 = vadd.f32 0.0, %v3601
        %v3603 = vpop.f32.mrf.mxu0
        %3604 = vmatprep.mubr.f32.mxu0 0.0
        %3605 = vmatmul.mubr.f32.gmra.mxu0 %v3235
        %v3606 = vpop.f32.mrf.mxu0
        %v3607 = vadd.f32 0.0, %v3606
        %v3608 = vpop.f32.mrf.mxu0
        %3609 = vmatprep.mubr.f32.mxu0 0.0
        %3610 = vmatmul.mubr.f32.gmra.mxu0 %v3238
        %v3611 = vpop.f32.mrf.mxu0
        %v3612 = vadd.f32 0.0, %v3611
        %v3613 = vpop.f32.mrf.mxu0
        %3614 = vmatprep.mubr.f32.mxu0 0.0
        %3615 = vmatmul.mubr.f32.gmra.mxu0 %v3241
        %v3616 = vpop.f32.mrf.mxu0
        %v3617 = vadd.f32 0.0, %v3616
        %v3618 = vpop.f32.mrf.mxu0
        %3619 = vmatprep.mubr.f32.mxu0 0.0
        %3620 = vmatmul.mubr.f32.gmra.mxu0 %v3244
        %v3621 = vpop.f32.mrf.mxu0
        %v3622 = vadd.f32 0.0, %v3621
        %v3623 = vpop.f32.mrf.mxu0
        %3624 = vmatprep.mubr.f32.mxu0 0.0
        %3625 = vmatmul.mubr.f32.gmra.mxu0 %v3247
        %v3626 = vpop.f32.mrf.mxu0
        %v3627 = vadd.f32 0.0, %v3626
        %v3628 = vpop.f32.mrf.mxu0
        %3629 = vmatprep.mubr.f32.mxu0 0.0
        %3630 = vmatmul.mubr.f32.gmra.mxu0 %v3250
        %v3631 = vpop.f32.mrf.mxu0
        %v3632 = vadd.f32 0.0, %v3631
        %v3633 = vpop.f32.mrf.mxu0
        %3634 = vmatprep.mubr.f32.mxu0 0.0
        %3635 = vmatmul.mubr.f32.gmra.mxu0 %v3253
        %v3636 = vpop.f32.mrf.mxu0
        %v3637 = vadd.f32 0.0, %v3636
        %v3638 = vpop.f32.mrf.mxu0
        %3639 = vdwg.mxu0
        %v3641 = vsel %vm3062, %v2802, 0
        %v3644 = vsel %vm3062, %v2803, 0
        %v3647 = vsel %vm3062, %v2804, 0
        %v3650 = vsel %vm3062, %v2805, 0
        %v3653 = vsel %vm3062, %v2806, 0
        %v3656 = vsel %vm3062, %v2807, 0
        %v3659 = vsel %vm3062, %v2808, 0
        %v3662 = vsel %vm3062, %v2809, 0
        %v3665 = vsel %vm3062, %v2810, 0
        %v3668 = vsel %vm3062, %v2811, 0
        %v3671 = vsel %vm3062, %v2812, 0
        %v3674 = vsel %vm3062, %v2813, 0
        %v3677 = vsel %vm3062, %v2814, 0
        %v3680 = vsel %vm3062, %v2815, 0
        %v3683 = vsel %vm3062, %v2816, 0
        %v3686 = vsel %vm3062, %v2817, 0
        %v3689 = vsel %vm3062, %v2818, 0
        %v3692 = vsel %vm3062, %v2819, 0
        %v3695 = vsel %vm3062, %v2820, 0
        %v3698 = vsel %vm3062, %v2821, 0
        %v3701 = vsel %vm3062, %v2822, 0
        %v3704 = vsel %vm3062, %v2823, 0
        %v3707 = vsel %vm3062, %v2824, 0
        %v3710 = vsel %vm3062, %v2825, 0
        %v3713 = vsel %vm3062, %v2826, 0
        %v3716 = vsel %vm3062, %v2827, 0
        %v3719 = vsel %vm3062, %v2828, 0
        %v3722 = vsel %vm3062, %v2829, 0
        %v3725 = vsel %vm3062, %v2830, 0
        %v3728 = vsel %vm3062, %v2831, 0
        %v3731 = vsel %vm3062, %v2832, 0
        %v3734 = vsel %vm3062, %v2833, 0
        %v3737 = vsel %vm3062, %v2834, 0
        %v3740 = vsel %vm3062, %v2835, 0
        %v3743 = vsel %vm3062, %v2836, 0
        %v3746 = vsel %vm3062, %v2837, 0
        %v3749 = vsel %vm3062, %v2838, 0
        %v3752 = vsel %vm3062, %v2839, 0
        %v3755 = vsel %vm3062, %v2840, 0
        %v3758 = vsel %vm3062, %v2841, 0
        %v3761 = vsel %vm3062, %v2842, 0
        %v3764 = vsel %vm3062, %v2843, 0
        %v3767 = vsel %vm3062, %v2844, 0
        %v3770 = vsel %vm3062, %v2845, 0
        %v3773 = vsel %vm3062, %v2846, 0
        %v3776 = vsel %vm3062, %v2847, 0
        %v3779 = vsel %vm3062, %v2848, 0
        %v3782 = vsel %vm3062, %v2849, 0
        %v3785 = vsel %vm3062, %v2850, 0
        %v3788 = vsel %vm3062, %v2851, 0
        %v3791 = vsel %vm3062, %v2852, 0
        %v3794 = vsel %vm3062, %v2853, 0
        %v3797 = vsel %vm3062, %v2854, 0
        %v3800 = vsel %vm3062, %v2855, 0
        %v3803 = vsel %vm3062, %v2856, 0
        %v3806 = vsel %vm3062, %v2857, 0
        %v3809 = vsel %vm3062, %v2858, 0
        %v3812 = vsel %vm3062, %v2859, 0
        %v3815 = vsel %vm3062, %v2860, 0
        %v3818 = vsel %vm3062, %v2861, 0
        %v3821 = vsel %vm3062, %v2862, 0
        %v3824 = vsel %vm3062, %v2863, 0
        %v3827 = vsel %vm3062, %v2864, 0
        %v3830 = vsel %vm3062, %v2865, 0
        %3832 = vmatprep.subr.mxu0 0.0
        %3833 = vmatpush1.msra.mxu0 0.0
        %3834 = vmatprep.subr.mxu0 0.0
        %3835 = vmatpush1.msra.mxu0 0.0
        %3836 = vmatprep.subr.mxu0 0.0
        %3837 = vmatpush1.msra.mxu0 0.0
        %3838 = vmatprep.subr.mxu0 0.0
        %3839 = vmatpush1.msra.mxu0 0.0
        %3840 = vmatprep.subr.mxu0 0.0
        %3841 = vmatpush1.msra.mxu0 0.0
        %3842 = vmatprep.subr.mxu0 0.0
        %3843 = vmatpush1.msra.mxu0 0.0
        %3844 = vmatprep.subr.mxu0 0.0
        %3845 = vmatpush1.msra.mxu0 0.0
        %3846 = vmatprep.subr.mxu0 0.0
        %3847 = vmatpush1.msra.mxu0 0.0
        %3848 = vmatprep.subr.mxu0 0.0
        %3849 = vmatpush1.msra.mxu0 0.0
        %3850 = vmatprep.subr.mxu0 0.0
        %3851 = vmatpush1.msra.mxu0 0.0
        %3852 = vmatprep.subr.mxu0 0.0
        %3853 = vmatpush1.msra.mxu0 0.0
        %3854 = vmatprep.subr.mxu0 0.0
        %3855 = vmatpush1.msra.mxu0 0.0
        %3856 = vmatprep.subr.mxu0 0.0
        %3857 = vmatpush1.msra.mxu0 0.0
        %3858 = vmatprep.subr.mxu0 0.0
        %3859 = vmatpush1.msra.mxu0 0.0
        %3860 = vmatprep.subr.mxu0 0.0
        %3861 = vmatpush1.msra.mxu0 %v3059
        %3862 = vmatprep.subr.mxu0 0.0
        %3863 = vmatpush1.msra.mxu0 %v3058
        %3864 = vmatprep.subr.mxu0 0.0
        %3865 = vmatpush2.msra.mxu0 0.0
        %3866 = vmatprep.subr.mxu0 0.0
        %3867 = vmatpush2.msra.mxu0 0.0
        %3868 = vmatprep.subr.mxu0 0.0
        %3869 = vmatpush2.msra.mxu0 0.0
        %3870 = vmatprep.subr.mxu0 0.0
        %3871 = vmatpush2.msra.mxu0 0.0
        %3872 = vmatprep.subr.mxu0 0.0
        %3873 = vmatpush2.msra.mxu0 0.0
        %3874 = vmatprep.subr.mxu0 0.0
        %3875 = vmatpush2.msra.mxu0 0.0
        %3876 = vmatprep.subr.mxu0 0.0
        %3877 = vmatpush2.msra.mxu0 0.0
        %3878 = vmatprep.subr.mxu0 0.0
        %3879 = vmatpush2.msra.mxu0 0.0
        %3880 = vmatprep.subr.mxu0 0.0
        %3881 = vmatpush2.msra.mxu0 0.0
        %3882 = vmatprep.subr.mxu0 0.0
        %3883 = vmatpush2.msra.mxu0 0.0
        %3884 = vmatprep.subr.mxu0 0.0
        %3885 = vmatpush2.msra.mxu0 0.0
        %3886 = vmatprep.subr.mxu0 0.0
        %3887 = vmatpush2.msra.mxu0 0.0
        %3888 = vmatprep.subr.mxu0 0.0
        %3889 = vmatpush2.msra.mxu0 0.0
        %3890 = vmatprep.subr.mxu0 0.0
        %3891 = vmatpush2.msra.mxu0 0.0
        %3892 = vmatprep.subr.mxu0 0.0
        %3893 = vmatpush2.msra.mxu0 0.0
        %3894 = vmatprep.subr.mxu0 0.0
        %3895 = vmatpush2.msra.mxu0 0.0
        %3896 = vmatprep.mubr.f32.mxu0 0.0
        %3897 = vmatmul.mubr.f32.gmra.mxu0 %v3641
        %v3898 = vpop.f32.mrf.mxu0
        %v3899 = vadd.f32 %v3322, %v3898
        %v3900 = vpop.f32.mrf.mxu0
        %3901 = vmatprep.mubr.f32.mxu0 0.0
        %3902 = vmatmul.mubr.f32.gmra.mxu0 %v3644
        %v3903 = vpop.f32.mrf.mxu0
        %v3904 = vadd.f32 %v3327, %v3903
        %v3905 = vpop.f32.mrf.mxu0
        %3906 = vmatprep.mubr.f32.mxu0 0.0
        %3907 = vmatmul.mubr.f32.gmra.mxu0 %v3647
        %v3908 = vpop.f32.mrf.mxu0
        %v3909 = vadd.f32 %v3332, %v3908
        %v3910 = vpop.f32.mrf.mxu0
        %3911 = vmatprep.mubr.f32.mxu0 0.0
        %3912 = vmatmul.mubr.f32.gmra.mxu0 %v3650
        %v3913 = vpop.f32.mrf.mxu0
        %v3914 = vadd.f32 %v3337, %v3913
        %v3915 = vpop.f32.mrf.mxu0
        %3916 = vmatprep.mubr.f32.mxu0 0.0
        %3917 = vmatmul.mubr.f32.gmra.mxu0 %v3653
        %v3918 = vpop.f32.mrf.mxu0
        %v3919 = vadd.f32 %v3342, %v3918
        %v3920 = vpop.f32.mrf.mxu0
        %3921 = vmatprep.mubr.f32.mxu0 0.0
        %3922 = vmatmul.mubr.f32.gmra.mxu0 %v3656
        %v3923 = vpop.f32.mrf.mxu0
        %v3924 = vadd.f32 %v3347, %v3923
        %v3925 = vpop.f32.mrf.mxu0
        %3926 = vmatprep.mubr.f32.mxu0 0.0
        %3927 = vmatmul.mubr.f32.gmra.mxu0 %v3659
        %v3928 = vpop.f32.mrf.mxu0
        %v3929 = vadd.f32 %v3352, %v3928
        %v3930 = vpop.f32.mrf.mxu0
        %3931 = vmatprep.mubr.f32.mxu0 0.0
        %3932 = vmatmul.mubr.f32.gmra.mxu0 %v3662
        %v3933 = vpop.f32.mrf.mxu0
        %v3934 = vadd.f32 %v3357, %v3933
        %v3935 = vpop.f32.mrf.mxu0
        %3936 = vmatprep.mubr.f32.mxu0 0.0
        %3937 = vmatmul.mubr.f32.gmra.mxu0 %v3665
        %v3938 = vpop.f32.mrf.mxu0
        %v3939 = vadd.f32 %v3362, %v3938
        %v3940 = vpop.f32.mrf.mxu0
        %3941 = vmatprep.mubr.f32.mxu0 0.0
        %3942 = vmatmul.mubr.f32.gmra.mxu0 %v3668
        %v3943 = vpop.f32.mrf.mxu0
        %v3944 = vadd.f32 %v3367, %v3943
        %v3945 = vpop.f32.mrf.mxu0
        %3946 = vmatprep.mubr.f32.mxu0 0.0
        %3947 = vmatmul.mubr.f32.gmra.mxu0 %v3671
        %v3948 = vpop.f32.mrf.mxu0
        %v3949 = vadd.f32 %v3372, %v3948
        %v3950 = vpop.f32.mrf.mxu0
        %3951 = vmatprep.mubr.f32.mxu0 0.0
        %3952 = vmatmul.mubr.f32.gmra.mxu0 %v3674
        %v3953 = vpop.f32.mrf.mxu0
        %v3954 = vadd.f32 %v3377, %v3953
        %v3955 = vpop.f32.mrf.mxu0
        %3956 = vmatprep.mubr.f32.mxu0 0.0
        %3957 = vmatmul.mubr.f32.gmra.mxu0 %v3677
        %v3958 = vpop.f32.mrf.mxu0
        %v3959 = vadd.f32 %v3382, %v3958
        %v3960 = vpop.f32.mrf.mxu0
        %3961 = vmatprep.mubr.f32.mxu0 0.0
        %3962 = vmatmul.mubr.f32.gmra.mxu0 %v3680
        %v3963 = vpop.f32.mrf.mxu0
        %v3964 = vadd.f32 %v3387, %v3963
        %v3965 = vpop.f32.mrf.mxu0
        %3966 = vmatprep.mubr.f32.mxu0 0.0
        %3967 = vmatmul.mubr.f32.gmra.mxu0 %v3683
        %v3968 = vpop.f32.mrf.mxu0
        %v3969 = vadd.f32 %v3392, %v3968
        %v3970 = vpop.f32.mrf.mxu0
        %3971 = vmatprep.mubr.f32.mxu0 0.0
        %3972 = vmatmul.mubr.f32.gmra.mxu0 %v3686
        %v3973 = vpop.f32.mrf.mxu0
        %v3974 = vadd.f32 %v3397, %v3973
        %v3975 = vpop.f32.mrf.mxu0
        %3976 = vmatprep.mubr.f32.mxu0 0.0
        %3977 = vmatmul.mubr.f32.gmra.mxu0 %v3689
        %v3978 = vpop.f32.mrf.mxu0
        %v3979 = vadd.f32 %v3402, %v3978
        %v3980 = vpop.f32.mrf.mxu0
        %3981 = vmatprep.mubr.f32.mxu0 0.0
        %3982 = vmatmul.mubr.f32.gmra.mxu0 %v3692
        %v3983 = vpop.f32.mrf.mxu0
        %v3984 = vadd.f32 %v3407, %v3983
        %v3985 = vpop.f32.mrf.mxu0
        %3986 = vmatprep.mubr.f32.mxu0 0.0
        %3987 = vmatmul.mubr.f32.gmra.mxu0 %v3695
        %v3988 = vpop.f32.mrf.mxu0
        %v3989 = vadd.f32 %v3412, %v3988
        %v3990 = vpop.f32.mrf.mxu0
        %3991 = vmatprep.mubr.f32.mxu0 0.0
        %3992 = vmatmul.mubr.f32.gmra.mxu0 %v3698
        %v3993 = vpop.f32.mrf.mxu0
        %v3994 = vadd.f32 %v3417, %v3993
        %v3995 = vpop.f32.mrf.mxu0
        %3996 = vmatprep.mubr.f32.mxu0 0.0
        %3997 = vmatmul.mubr.f32.gmra.mxu0 %v3701
        %v3998 = vpop.f32.mrf.mxu0
        %v3999 = vadd.f32 %v3422, %v3998
        %v4000 = vpop.f32.mrf.mxu0
        %4001 = vmatprep.mubr.f32.mxu0 0.0
        %4002 = vmatmul.mubr.f32.gmra.mxu0 %v3704
        %v4003 = vpop.f32.mrf.mxu0
        %v4004 = vadd.f32 %v3427, %v4003
        %v4005 = vpop.f32.mrf.mxu0
        %4006 = vmatprep.mubr.f32.mxu0 0.0
        %4007 = vmatmul.mubr.f32.gmra.mxu0 %v3707
        %v4008 = vpop.f32.mrf.mxu0
        %v4009 = vadd.f32 %v3432, %v4008
        %v4010 = vpop.f32.mrf.mxu0
        %4011 = vmatprep.mubr.f32.mxu0 0.0
        %4012 = vmatmul.mubr.f32.gmra.mxu0 %v3710
        %v4013 = vpop.f32.mrf.mxu0
        %v4014 = vadd.f32 %v3437, %v4013
        %v4015 = vpop.f32.mrf.mxu0
        %4016 = vmatprep.mubr.f32.mxu0 0.0
        %4017 = vmatmul.mubr.f32.gmra.mxu0 %v3713
        %v4018 = vpop.f32.mrf.mxu0
        %v4019 = vadd.f32 %v3442, %v4018
        %v4020 = vpop.f32.mrf.mxu0
        %4021 = vmatprep.mubr.f32.mxu0 0.0
        %4022 = vmatmul.mubr.f32.gmra.mxu0 %v3716
        %v4023 = vpop.f32.mrf.mxu0
        %v4024 = vadd.f32 %v3447, %v4023
        %v4025 = vpop.f32.mrf.mxu0
        %4026 = vmatprep.mubr.f32.mxu0 0.0
        %4027 = vmatmul.mubr.f32.gmra.mxu0 %v3719
        %v4028 = vpop.f32.mrf.mxu0
        %v4029 = vadd.f32 %v3452, %v4028
        %v4030 = vpop.f32.mrf.mxu0
        %4031 = vmatprep.mubr.f32.mxu0 0.0
        %4032 = vmatmul.mubr.f32.gmra.mxu0 %v3722
        %v4033 = vpop.f32.mrf.mxu0
        %v4034 = vadd.f32 %v3457, %v4033
        %v4035 = vpop.f32.mrf.mxu0
        %4036 = vmatprep.mubr.f32.mxu0 0.0
        %4037 = vmatmul.mubr.f32.gmra.mxu0 %v3725
        %v4038 = vpop.f32.mrf.mxu0
        %v4039 = vadd.f32 %v3462, %v4038
        %v4040 = vpop.f32.mrf.mxu0
        %4041 = vmatprep.mubr.f32.mxu0 0.0
        %4042 = vmatmul.mubr.f32.gmra.mxu0 %v3728
        %v4043 = vpop.f32.mrf.mxu0
        %v4044 = vadd.f32 %v3467, %v4043
        %v4045 = vpop.f32.mrf.mxu0
        %4046 = vmatprep.mubr.f32.mxu0 0.0
        %4047 = vmatmul.mubr.f32.gmra.mxu0 %v3731
        %v4048 = vpop.f32.mrf.mxu0
        %v4049 = vadd.f32 %v3472, %v4048
        %v4050 = vpop.f32.mrf.mxu0
        %4051 = vmatprep.mubr.f32.mxu0 0.0
        %4052 = vmatmul.mubr.f32.gmra.mxu0 %v3734
        %v4053 = vpop.f32.mrf.mxu0
        %v4054 = vadd.f32 %v3477, %v4053
        %v4055 = vpop.f32.mrf.mxu0
        %4056 = vmatprep.mubr.f32.mxu0 0.0
        %4057 = vmatmul.mubr.f32.gmra.mxu0 %v3737
        %v4058 = vpop.f32.mrf.mxu0
        %v4059 = vadd.f32 %v3482, %v4058
        %v4060 = vpop.f32.mrf.mxu0
        %4061 = vmatprep.mubr.f32.mxu0 0.0
        %4062 = vmatmul.mubr.f32.gmra.mxu0 %v3740
        %v4063 = vpop.f32.mrf.mxu0
        %v4064 = vadd.f32 %v3487, %v4063
        %v4065 = vpop.f32.mrf.mxu0
        %4066 = vmatprep.mubr.f32.mxu0 0.0
        %4067 = vmatmul.mubr.f32.gmra.mxu0 %v3743
        %v4068 = vpop.f32.mrf.mxu0
        %v4069 = vadd.f32 %v3492, %v4068
        %v4070 = vpop.f32.mrf.mxu0
        %4071 = vmatprep.mubr.f32.mxu0 0.0
        %4072 = vmatmul.mubr.f32.gmra.mxu0 %v3746
        %v4073 = vpop.f32.mrf.mxu0
        %v4074 = vadd.f32 %v3497, %v4073
        %v4075 = vpop.f32.mrf.mxu0
        %4076 = vmatprep.mubr.f32.mxu0 0.0
        %4077 = vmatmul.mubr.f32.gmra.mxu0 %v3749
        %v4078 = vpop.f32.mrf.mxu0
        %v4079 = vadd.f32 %v3502, %v4078
        %v4080 = vpop.f32.mrf.mxu0
        %4081 = vmatprep.mubr.f32.mxu0 0.0
        %4082 = vmatmul.mubr.f32.gmra.mxu0 %v3752
        %v4083 = vpop.f32.mrf.mxu0
        %v4084 = vadd.f32 %v3507, %v4083
        %v4085 = vpop.f32.mrf.mxu0
        %4086 = vmatprep.mubr.f32.mxu0 0.0
        %4087 = vmatmul.mubr.f32.gmra.mxu0 %v3755
        %v4088 = vpop.f32.mrf.mxu0
        %v4089 = vadd.f32 %v3512, %v4088
        %v4090 = vpop.f32.mrf.mxu0
        %4091 = vmatprep.mubr.f32.mxu0 0.0
        %4092 = vmatmul.mubr.f32.gmra.mxu0 %v3758
        %v4093 = vpop.f32.mrf.mxu0
        %v4094 = vadd.f32 %v3517, %v4093
        %v4095 = vpop.f32.mrf.mxu0
        %4096 = vmatprep.mubr.f32.mxu0 0.0
        %4097 = vmatmul.mubr.f32.gmra.mxu0 %v3761
        %v4098 = vpop.f32.mrf.mxu0
        %v4099 = vadd.f32 %v3522, %v4098
        %v4100 = vpop.f32.mrf.mxu0
        %4101 = vmatprep.mubr.f32.mxu0 0.0
        %4102 = vmatmul.mubr.f32.gmra.mxu0 %v3764
        %v4103 = vpop.f32.mrf.mxu0
        %v4104 = vadd.f32 %v3527, %v4103
        %v4105 = vpop.f32.mrf.mxu0
        %4106 = vmatprep.mubr.f32.mxu0 0.0
        %4107 = vmatmul.mubr.f32.gmra.mxu0 %v3767
        %v4108 = vpop.f32.mrf.mxu0
        %v4109 = vadd.f32 %v3532, %v4108
        %v4110 = vpop.f32.mrf.mxu0
        %4111 = vmatprep.mubr.f32.mxu0 0.0
        %4112 = vmatmul.mubr.f32.gmra.mxu0 %v3770
        %v4113 = vpop.f32.mrf.mxu0
        %v4114 = vadd.f32 %v3537, %v4113
        %v4115 = vpop.f32.mrf.mxu0
        %4116 = vmatprep.mubr.f32.mxu0 0.0
        %4117 = vmatmul.mubr.f32.gmra.mxu0 %v3773
        %v4118 = vpop.f32.mrf.mxu0
        %v4119 = vadd.f32 %v3542, %v4118
        %v4120 = vpop.f32.mrf.mxu0
        %4121 = vmatprep.mubr.f32.mxu0 0.0
        %4122 = vmatmul.mubr.f32.gmra.mxu0 %v3776
        %v4123 = vpop.f32.mrf.mxu0
        %v4124 = vadd.f32 %v3547, %v4123
        %v4125 = vpop.f32.mrf.mxu0
        %4126 = vmatprep.mubr.f32.mxu0 0.0
        %4127 = vmatmul.mubr.f32.gmra.mxu0 %v3779
        %v4128 = vpop.f32.mrf.mxu0
        %v4129 = vadd.f32 %v3552, %v4128
        %v4130 = vpop.f32.mrf.mxu0
        %4131 = vmatprep.mubr.f32.mxu0 0.0
        %4132 = vmatmul.mubr.f32.gmra.mxu0 %v3782
        %v4133 = vpop.f32.mrf.mxu0
        %v4134 = vadd.f32 %v3557, %v4133
        %v4135 = vpop.f32.mrf.mxu0
        %4136 = vmatprep.mubr.f32.mxu0 0.0
        %4137 = vmatmul.mubr.f32.gmra.mxu0 %v3785
        %v4138 = vpop.f32.mrf.mxu0
        %v4139 = vadd.f32 %v3562, %v4138
        %v4140 = vpop.f32.mrf.mxu0
        %4141 = vmatprep.mubr.f32.mxu0 0.0
        %4142 = vmatmul.mubr.f32.gmra.mxu0 %v3788
        %v4143 = vpop.f32.mrf.mxu0
        %v4144 = vadd.f32 %v3567, %v4143
        %v4145 = vpop.f32.mrf.mxu0
        %4146 = vmatprep.mubr.f32.mxu0 0.0
        %4147 = vmatmul.mubr.f32.gmra.mxu0 %v3791
        %v4148 = vpop.f32.mrf.mxu0
        %v4149 = vadd.f32 %v3572, %v4148
        %v4150 = vpop.f32.mrf.mxu0
        %4151 = vmatprep.mubr.f32.mxu0 0.0
        %4152 = vmatmul.mubr.f32.gmra.mxu0 %v3794
        %v4153 = vpop.f32.mrf.mxu0
        %v4154 = vadd.f32 %v3577, %v4153
        %v4155 = vpop.f32.mrf.mxu0
        %4156 = vmatprep.mubr.f32.mxu0 0.0
        %4157 = vmatmul.mubr.f32.gmra.mxu0 %v3797
        %v4158 = vpop.f32.mrf.mxu0
        %v4159 = vadd.f32 %v3582, %v4158
        %v4160 = vpop.f32.mrf.mxu0
        %4161 = vmatprep.mubr.f32.mxu0 0.0
        %4162 = vmatmul.mubr.f32.gmra.mxu0 %v3800
        %v4163 = vpop.f32.mrf.mxu0
        %v4164 = vadd.f32 %v3587, %v4163
        %v4165 = vpop.f32.mrf.mxu0
        %4166 = vmatprep.mubr.f32.mxu0 0.0
        %4167 = vmatmul.mubr.f32.gmra.mxu0 %v3803
        %v4168 = vpop.f32.mrf.mxu0
        %v4169 = vadd.f32 %v3592, %v4168
        %v4170 = vpop.f32.mrf.mxu0
        %4171 = vmatprep.mubr.f32.mxu0 0.0
        %4172 = vmatmul.mubr.f32.gmra.mxu0 %v3806
        %v4173 = vpop.f32.mrf.mxu0
        %v4174 = vadd.f32 %v3597, %v4173
        %v4175 = vpop.f32.mrf.mxu0
        %4176 = vmatprep.mubr.f32.mxu0 0.0
        %4177 = vmatmul.mubr.f32.gmra.mxu0 %v3809
        %v4178 = vpop.f32.mrf.mxu0
        %v4179 = vadd.f32 %v3602, %v4178
        %v4180 = vpop.f32.mrf.mxu0
        %4181 = vmatprep.mubr.f32.mxu0 0.0
        %4182 = vmatmul.mubr.f32.gmra.mxu0 %v3812
        %v4183 = vpop.f32.mrf.mxu0
        %v4184 = vadd.f32 %v3607, %v4183
        %v4185 = vpop.f32.mrf.mxu0
        %4186 = vmatprep.mubr.f32.mxu0 0.0
        %4187 = vmatmul.mubr.f32.gmra.mxu0 %v3815
        %v4188 = vpop.f32.mrf.mxu0
        %v4189 = vadd.f32 %v3612, %v4188
        %v4190 = vpop.f32.mrf.mxu0
        %4191 = vmatprep.mubr.f32.mxu0 0.0
        %4192 = vmatmul.mubr.f32.gmra.mxu0 %v3818
        %v4193 = vpop.f32.mrf.mxu0
        %v4194 = vadd.f32 %v3617, %v4193
        %v4195 = vpop.f32.mrf.mxu0
        %4196 = vmatprep.mubr.f32.mxu0 0.0
        %4197 = vmatmul.mubr.f32.gmra.mxu0 %v3821
        %v4198 = vpop.f32.mrf.mxu0
        %v4199 = vadd.f32 %v3622, %v4198
        %v4200 = vpop.f32.mrf.mxu0
        %4201 = vmatprep.mubr.f32.mxu0 0.0
        %4202 = vmatmul.mubr.f32.gmra.mxu0 %v3824
        %v4203 = vpop.f32.mrf.mxu0
        %v4204 = vadd.f32 %v3627, %v4203
        %v4205 = vpop.f32.mrf.mxu0
        %4206 = vmatprep.mubr.f32.mxu0 0.0
        %4207 = vmatmul.mubr.f32.gmra.mxu0 %v3827
        %v4208 = vpop.f32.mrf.mxu0
        %v4209 = vadd.f32 %v3632, %v4208
        %v4210 = vpop.f32.mrf.mxu0
        %4211 = vmatprep.mubr.f32.mxu0 0.0
        %4212 = vmatmul.mubr.f32.gmra.mxu0 %v3830
        %v4213 = vpop.f32.mrf.mxu0
        %v4214 = vadd.f32 %v3637, %v4213
        %v4215 = vpop.f32.mrf.mxu0
        %4216 = vdwg.mxu0
        %v4217 = vld [vmem:[%s1 + $0x38] sm:$0xff]
        %v4218 = vld [vmem:[%s1 + $0x40] sm:$0xff]
        %v4220 = vsel %vm3062, %v2994, 0
        %v4223 = vsel %vm3062, %v2995, 0
        %v4226 = vsel %vm3062, %v2996, 0
        %v4229 = vsel %vm3062, %v2997, 0
        %v4232 = vsel %vm3062, %v2998, 0
        %v4235 = vsel %vm3062, %v2999, 0
        %v4238 = vsel %vm3062, %v3000, 0
        %v4241 = vsel %vm3062, %v3001, 0
        %v4244 = vsel %vm3062, %v3002, 0
        %v4247 = vsel %vm3062, %v3003, 0
        %v4250 = vsel %vm3062, %v3004, 0
        %v4253 = vsel %vm3062, %v3005, 0
        %v4256 = vsel %vm3062, %v3006, 0
        %v4259 = vsel %vm3062, %v3007, 0
        %v4262 = vsel %vm3062, %v3008, 0
        %v4265 = vsel %vm3062, %v3009, 0
        %v4268 = vsel %vm3062, %v3010, 0
        %v4271 = vsel %vm3062, %v3011, 0
        %v4274 = vsel %vm3062, %v3012, 0
        %v4277 = vsel %vm3062, %v3013, 0
        %v4280 = vsel %vm3062, %v3014, 0
        %v4283 = vsel %vm3062, %v3015, 0
        %v4286 = vsel %vm3062, %v3016, 0
        %v4289 = vsel %vm3062, %v3017, 0
        %v4292 = vsel %vm3062, %v3018, 0
        %v4295 = vsel %vm3062, %v3019, 0
        %v4298 = vsel %vm3062, %v3020, 0
        %v4301 = vsel %vm3062, %v3021, 0
        %v4304 = vsel %vm3062, %v3022, 0
        %v4307 = vsel %vm3062, %v3023, 0
        %v4310 = vsel %vm3062, %v3024, 0
        %v4313 = vsel %vm3062, %v3025, 0
        %v4316 = vsel %vm3062, %v3026, 0
        %v4319 = vsel %vm3062, %v3027, 0
        %v4322 = vsel %vm3062, %v3028, 0
        %v4325 = vsel %vm3062, %v3029, 0
        %v4328 = vsel %vm3062, %v3030, 0
        %v4331 = vsel %vm3062, %v3031, 0
        %v4334 = vsel %vm3062, %v3032, 0
        %v4337 = vsel %vm3062, %v3033, 0
        %v4340 = vsel %vm3062, %v3034, 0
        %v4343 = vsel %vm3062, %v3035, 0
        %v4346 = vsel %vm3062, %v3036, 0
        %v4349 = vsel %vm3062, %v3037, 0
        %v4352 = vsel %vm3062, %v3038, 0
        %v4355 = vsel %vm3062, %v3039, 0
        %v4358 = vsel %vm3062, %v3040, 0
        %v4361 = vsel %vm3062, %v3041, 0
        %v4364 = vsel %vm3062, %v3042, 0
        %v4367 = vsel %vm3062, %v3043, 0
        %v4370 = vsel %vm3062, %v3044, 0
        %v4373 = vsel %vm3062, %v3045, 0
        %v4376 = vsel %vm3062, %v3046, 0
        %v4379 = vsel %vm3062, %v3047, 0
        %v4382 = vsel %vm3062, %v3048, 0
        %v4385 = vsel %vm3062, %v3049, 0
        %v4388 = vsel %vm3062, %v3050, 0
        %v4391 = vsel %vm3062, %v3051, 0
        %v4394 = vsel %vm3062, %v3052, 0
        %v4397 = vsel %vm3062, %v3053, 0
        %v4400 = vsel %vm3062, %v3054, 0
        %v4403 = vsel %vm3062, %v3055, 0
        %v4406 = vsel %vm3062, %v3056, 0
        %v4409 = vsel %vm3062, %v3057, 0
        %4411 = vmatprep.subr.mxu0 0.0
        %4412 = vmatpush1.msra.mxu0 0.0
        %4413 = vmatprep.subr.mxu0 0.0
        %4414 = vmatpush1.msra.mxu0 0.0
        %4415 = vmatprep.subr.mxu0 0.0
        %4416 = vmatpush1.msra.mxu0 0.0
        %4417 = vmatprep.subr.mxu0 0.0
        %4418 = vmatpush1.msra.mxu0 0.0
        %4419 = vmatprep.subr.mxu0 0.0
        %4420 = vmatpush1.msra.mxu0 0.0
        %4421 = vmatprep.subr.mxu0 0.0
        %4422 = vmatpush1.msra.mxu0 0.0
        %4423 = vmatprep.subr.mxu0 0.0
        %4424 = vmatpush1.msra.mxu0 0.0
        %4425 = vmatprep.subr.mxu0 0.0
        %4426 = vmatpush1.msra.mxu0 0.0
        %4427 = vmatprep.subr.mxu0 0.0
        %4428 = vmatpush1.msra.mxu0 0.0
        %4429 = vmatprep.subr.mxu0 0.0
        %4430 = vmatpush1.msra.mxu0 0.0
        %4431 = vmatprep.subr.mxu0 0.0
        %4432 = vmatpush1.msra.mxu0 0.0
        %4433 = vmatprep.subr.mxu0 0.0
        %4434 = vmatpush1.msra.mxu0 0.0
        %4435 = vmatprep.subr.mxu0 0.0
        %4436 = vmatpush1.msra.mxu0 0.0
        %4437 = vmatprep.subr.mxu0 0.0
        %4438 = vmatpush1.msra.mxu0 0.0
        %4439 = vmatprep.subr.mxu0 0.0
        %4440 = vmatpush1.msra.mxu0 %v4218
        %4441 = vmatprep.subr.mxu0 0.0
        %4442 = vmatpush1.msra.mxu0 %v4217
        %4443 = vmatprep.subr.mxu0 0.0
        %4444 = vmatpush2.msra.mxu0 0.0
        %4445 = vmatprep.subr.mxu0 0.0
        %4446 = vmatpush2.msra.mxu0 0.0
        %4447 = vmatprep.subr.mxu0 0.0
        %4448 = vmatpush2.msra.mxu0 0.0
        %4449 = vmatprep.subr.mxu0 0.0
        %4450 = vmatpush2.msra.mxu0 0.0
        %4451 = vmatprep.subr.mxu0 0.0
        %4452 = vmatpush2.msra.mxu0 0.0
        %4453 = vmatprep.subr.mxu0 0.0
        %4454 = vmatpush2.msra.mxu0 0.0
        %4455 = vmatprep.subr.mxu0 0.0
        %4456 = vmatpush2.msra.mxu0 0.0
        %4457 = vmatprep.subr.mxu0 0.0
        %4458 = vmatpush2.msra.mxu0 0.0
        %4459 = vmatprep.subr.mxu0 0.0
        %4460 = vmatpush2.msra.mxu0 0.0
        %4461 = vmatprep.subr.mxu0 0.0
        %4462 = vmatpush2.msra.mxu0 0.0
        %4463 = vmatprep.subr.mxu0 0.0
        %4464 = vmatpush2.msra.mxu0 0.0
        %4465 = vmatprep.subr.mxu0 0.0
        %4466 = vmatpush2.msra.mxu0 0.0
        %4467 = vmatprep.subr.mxu0 0.0
        %4468 = vmatpush2.msra.mxu0 0.0
        %4469 = vmatprep.subr.mxu0 0.0
        %4470 = vmatpush2.msra.mxu0 0.0
        %4471 = vmatprep.subr.mxu0 0.0
        %4472 = vmatpush2.msra.mxu0 0.0
        %4473 = vmatprep.subr.mxu0 0.0
        %4474 = vmatpush2.msra.mxu0 0.0
        %4475 = vmatprep.mubr.f32.mxu0 0.0
        %4476 = vmatmul.mubr.f32.gmra.mxu0 %v4220
        %v4477 = vpop.f32.mrf.mxu0
        %v4478 = vadd.f32 0.0, %v4477
        %v4479 = vpop.f32.mrf.mxu0
        %4480 = vmatprep.mubr.f32.mxu0 0.0
        %4481 = vmatmul.mubr.f32.gmra.mxu0 %v4223
        %v4482 = vpop.f32.mrf.mxu0
        %v4483 = vadd.f32 0.0, %v4482
        %v4484 = vpop.f32.mrf.mxu0
        %4485 = vmatprep.mubr.f32.mxu0 0.0
        %4486 = vmatmul.mubr.f32.gmra.mxu0 %v4226
        %v4487 = vpop.f32.mrf.mxu0
        %v4488 = vadd.f32 0.0, %v4487
        %v4489 = vpop.f32.mrf.mxu0
        %4490 = vmatprep.mubr.f32.mxu0 0.0
        %4491 = vmatmul.mubr.f32.gmra.mxu0 %v4229
        %v4492 = vpop.f32.mrf.mxu0
        %v4493 = vadd.f32 0.0, %v4492
        %v4494 = vpop.f32.mrf.mxu0
        %4495 = vmatprep.mubr.f32.mxu0 0.0
        %4496 = vmatmul.mubr.f32.gmra.mxu0 %v4232
        %v4497 = vpop.f32.mrf.mxu0
        %v4498 = vadd.f32 0.0, %v4497
        %v4499 = vpop.f32.mrf.mxu0
        %4500 = vmatprep.mubr.f32.mxu0 0.0
        %4501 = vmatmul.mubr.f32.gmra.mxu0 %v4235
        %v4502 = vpop.f32.mrf.mxu0
        %v4503 = vadd.f32 0.0, %v4502
        %v4504 = vpop.f32.mrf.mxu0
        %4505 = vmatprep.mubr.f32.mxu0 0.0
        %4506 = vmatmul.mubr.f32.gmra.mxu0 %v4238
        %v4507 = vpop.f32.mrf.mxu0
        %v4508 = vadd.f32 0.0, %v4507
        %v4509 = vpop.f32.mrf.mxu0
        %4510 = vmatprep.mubr.f32.mxu0 0.0
        %4511 = vmatmul.mubr.f32.gmra.mxu0 %v4241
        %v4512 = vpop.f32.mrf.mxu0
        %v4513 = vadd.f32 0.0, %v4512
        %v4514 = vpop.f32.mrf.mxu0
        %4515 = vmatprep.mubr.f32.mxu0 0.0
        %4516 = vmatmul.mubr.f32.gmra.mxu0 %v4244
        %v4517 = vpop.f32.mrf.mxu0
        %v4518 = vadd.f32 0.0, %v4517
        %v4519 = vpop.f32.mrf.mxu0
        %4520 = vmatprep.mubr.f32.mxu0 0.0
        %4521 = vmatmul.mubr.f32.gmra.mxu0 %v4247
        %v4522 = vpop.f32.mrf.mxu0
        %v4523 = vadd.f32 0.0, %v4522
        %v4524 = vpop.f32.mrf.mxu0
        %4525 = vmatprep.mubr.f32.mxu0 0.0
        %4526 = vmatmul.mubr.f32.gmra.mxu0 %v4250
        %v4527 = vpop.f32.mrf.mxu0
        %v4528 = vadd.f32 0.0, %v4527
        %v4529 = vpop.f32.mrf.mxu0
        %4530 = vmatprep.mubr.f32.mxu0 0.0
        %4531 = vmatmul.mubr.f32.gmra.mxu0 %v4253
        %v4532 = vpop.f32.mrf.mxu0
        %v4533 = vadd.f32 0.0, %v4532
        %v4534 = vpop.f32.mrf.mxu0
        %4535 = vmatprep.mubr.f32.mxu0 0.0
        %4536 = vmatmul.mubr.f32.gmra.mxu0 %v4256
        %v4537 = vpop.f32.mrf.mxu0
        %v4538 = vadd.f32 0.0, %v4537
        %v4539 = vpop.f32.mrf.mxu0
        %4540 = vmatprep.mubr.f32.mxu0 0.0
        %4541 = vmatmul.mubr.f32.gmra.mxu0 %v4259
        %v4542 = vpop.f32.mrf.mxu0
        %v4543 = vadd.f32 0.0, %v4542
        %v4544 = vpop.f32.mrf.mxu0
        %4545 = vmatprep.mubr.f32.mxu0 0.0
        %4546 = vmatmul.mubr.f32.gmra.mxu0 %v4262
        %v4547 = vpop.f32.mrf.mxu0
        %v4548 = vadd.f32 0.0, %v4547
        %v4549 = vpop.f32.mrf.mxu0
        %4550 = vmatprep.mubr.f32.mxu0 0.0
        %4551 = vmatmul.mubr.f32.gmra.mxu0 %v4265
        %v4552 = vpop.f32.mrf.mxu0
        %v4553 = vadd.f32 0.0, %v4552
        %v4554 = vpop.f32.mrf.mxu0
        %4555 = vmatprep.mubr.f32.mxu0 0.0
        %4556 = vmatmul.mubr.f32.gmra.mxu0 %v4268
        %v4557 = vpop.f32.mrf.mxu0
        %v4558 = vadd.f32 0.0, %v4557
        %v4559 = vpop.f32.mrf.mxu0
        %4560 = vmatprep.mubr.f32.mxu0 0.0
        %4561 = vmatmul.mubr.f32.gmra.mxu0 %v4271
        %v4562 = vpop.f32.mrf.mxu0
        %v4563 = vadd.f32 0.0, %v4562
        %v4564 = vpop.f32.mrf.mxu0
        %4565 = vmatprep.mubr.f32.mxu0 0.0
        %4566 = vmatmul.mubr.f32.gmra.mxu0 %v4274
        %v4567 = vpop.f32.mrf.mxu0
        %v4568 = vadd.f32 0.0, %v4567
        %v4569 = vpop.f32.mrf.mxu0
        %4570 = vmatprep.mubr.f32.mxu0 0.0
        %4571 = vmatmul.mubr.f32.gmra.mxu0 %v4277
        %v4572 = vpop.f32.mrf.mxu0
        %v4573 = vadd.f32 0.0, %v4572
        %v4574 = vpop.f32.mrf.mxu0
        %4575 = vmatprep.mubr.f32.mxu0 0.0
        %4576 = vmatmul.mubr.f32.gmra.mxu0 %v4280
        %v4577 = vpop.f32.mrf.mxu0
        %v4578 = vadd.f32 0.0, %v4577
        %v4579 = vpop.f32.mrf.mxu0
        %4580 = vmatprep.mubr.f32.mxu0 0.0
        %4581 = vmatmul.mubr.f32.gmra.mxu0 %v4283
        %v4582 = vpop.f32.mrf.mxu0
        %v4583 = vadd.f32 0.0, %v4582
        %v4584 = vpop.f32.mrf.mxu0
        %4585 = vmatprep.mubr.f32.mxu0 0.0
        %4586 = vmatmul.mubr.f32.gmra.mxu0 %v4286
        %v4587 = vpop.f32.mrf.mxu0
        %v4588 = vadd.f32 0.0, %v4587
        %v4589 = vpop.f32.mrf.mxu0
        %4590 = vmatprep.mubr.f32.mxu0 0.0
        %4591 = vmatmul.mubr.f32.gmra.mxu0 %v4289
        %v4592 = vpop.f32.mrf.mxu0
        %v4593 = vadd.f32 0.0, %v4592
        %v4594 = vpop.f32.mrf.mxu0
        %4595 = vmatprep.mubr.f32.mxu0 0.0
        %4596 = vmatmul.mubr.f32.gmra.mxu0 %v4292
        %v4597 = vpop.f32.mrf.mxu0
        %v4598 = vadd.f32 0.0, %v4597
        %v4599 = vpop.f32.mrf.mxu0
        %4600 = vmatprep.mubr.f32.mxu0 0.0
        %4601 = vmatmul.mubr.f32.gmra.mxu0 %v4295
        %v4602 = vpop.f32.mrf.mxu0
        %v4603 = vadd.f32 0.0, %v4602
        %v4604 = vpop.f32.mrf.mxu0
        %4605 = vmatprep.mubr.f32.mxu0 0.0
        %4606 = vmatmul.mubr.f32.gmra.mxu0 %v4298
        %v4607 = vpop.f32.mrf.mxu0
        %v4608 = vadd.f32 0.0, %v4607
        %v4609 = vpop.f32.mrf.mxu0
        %4610 = vmatprep.mubr.f32.mxu0 0.0
        %4611 = vmatmul.mubr.f32.gmra.mxu0 %v4301
        %v4612 = vpop.f32.mrf.mxu0
        %v4613 = vadd.f32 0.0, %v4612
        %v4614 = vpop.f32.mrf.mxu0
        %4615 = vmatprep.mubr.f32.mxu0 0.0
        %4616 = vmatmul.mubr.f32.gmra.mxu0 %v4304
        %v4617 = vpop.f32.mrf.mxu0
        %v4618 = vadd.f32 0.0, %v4617
        %v4619 = vpop.f32.mrf.mxu0
        %4620 = vmatprep.mubr.f32.mxu0 0.0
        %4621 = vmatmul.mubr.f32.gmra.mxu0 %v4307
        %v4622 = vpop.f32.mrf.mxu0
        %v4623 = vadd.f32 0.0, %v4622
        %v4624 = vpop.f32.mrf.mxu0
        %4625 = vmatprep.mubr.f32.mxu0 0.0
        %4626 = vmatmul.mubr.f32.gmra.mxu0 %v4310
        %v4627 = vpop.f32.mrf.mxu0
        %v4628 = vadd.f32 0.0, %v4627
        %v4629 = vpop.f32.mrf.mxu0
        %4630 = vmatprep.mubr.f32.mxu0 0.0
        %4631 = vmatmul.mubr.f32.gmra.mxu0 %v4313
        %v4632 = vpop.f32.mrf.mxu0
        %v4633 = vadd.f32 0.0, %v4632
        %v4634 = vpop.f32.mrf.mxu0
        %4635 = vmatprep.mubr.f32.mxu0 0.0
        %4636 = vmatmul.mubr.f32.gmra.mxu0 %v4316
        %v4637 = vpop.f32.mrf.mxu0
        %v4638 = vadd.f32 0.0, %v4637
        %v4639 = vpop.f32.mrf.mxu0
        %4640 = vmatprep.mubr.f32.mxu0 0.0
        %4641 = vmatmul.mubr.f32.gmra.mxu0 %v4319
        %v4642 = vpop.f32.mrf.mxu0
        %v4643 = vadd.f32 0.0, %v4642
        %v4644 = vpop.f32.mrf.mxu0
        %4645 = vmatprep.mubr.f32.mxu0 0.0
        %4646 = vmatmul.mubr.f32.gmra.mxu0 %v4322
        %v4647 = vpop.f32.mrf.mxu0
        %v4648 = vadd.f32 0.0, %v4647
        %v4649 = vpop.f32.mrf.mxu0
        %4650 = vmatprep.mubr.f32.mxu0 0.0
        %4651 = vmatmul.mubr.f32.gmra.mxu0 %v4325
        %v4652 = vpop.f32.mrf.mxu0
        %v4653 = vadd.f32 0.0, %v4652
        %v4654 = vpop.f32.mrf.mxu0
        %4655 = vmatprep.mubr.f32.mxu0 0.0
        %4656 = vmatmul.mubr.f32.gmra.mxu0 %v4328
        %v4657 = vpop.f32.mrf.mxu0
        %v4658 = vadd.f32 0.0, %v4657
        %v4659 = vpop.f32.mrf.mxu0
        %4660 = vmatprep.mubr.f32.mxu0 0.0
        %4661 = vmatmul.mubr.f32.gmra.mxu0 %v4331
        %v4662 = vpop.f32.mrf.mxu0
        %v4663 = vadd.f32 0.0, %v4662
        %v4664 = vpop.f32.mrf.mxu0
        %4665 = vmatprep.mubr.f32.mxu0 0.0
        %4666 = vmatmul.mubr.f32.gmra.mxu0 %v4334
        %v4667 = vpop.f32.mrf.mxu0
        %v4668 = vadd.f32 0.0, %v4667
        %v4669 = vpop.f32.mrf.mxu0
        %4670 = vmatprep.mubr.f32.mxu0 0.0
        %4671 = vmatmul.mubr.f32.gmra.mxu0 %v4337
        %v4672 = vpop.f32.mrf.mxu0
        %v4673 = vadd.f32 0.0, %v4672
        %v4674 = vpop.f32.mrf.mxu0
        %4675 = vmatprep.mubr.f32.mxu0 0.0
        %4676 = vmatmul.mubr.f32.gmra.mxu0 %v4340
        %v4677 = vpop.f32.mrf.mxu0
        %v4678 = vadd.f32 0.0, %v4677
        %v4679 = vpop.f32.mrf.mxu0
        %4680 = vmatprep.mubr.f32.mxu0 0.0
        %4681 = vmatmul.mubr.f32.gmra.mxu0 %v4343
        %v4682 = vpop.f32.mrf.mxu0
        %v4683 = vadd.f32 0.0, %v4682
        %v4684 = vpop.f32.mrf.mxu0
        %4685 = vmatprep.mubr.f32.mxu0 0.0
        %4686 = vmatmul.mubr.f32.gmra.mxu0 %v4346
        %v4687 = vpop.f32.mrf.mxu0
        %v4688 = vadd.f32 0.0, %v4687
        %v4689 = vpop.f32.mrf.mxu0
        %4690 = vmatprep.mubr.f32.mxu0 0.0
        %4691 = vmatmul.mubr.f32.gmra.mxu0 %v4349
        %v4692 = vpop.f32.mrf.mxu0
        %v4693 = vadd.f32 0.0, %v4692
        %v4694 = vpop.f32.mrf.mxu0
        %4695 = vmatprep.mubr.f32.mxu0 0.0
        %4696 = vmatmul.mubr.f32.gmra.mxu0 %v4352
        %v4697 = vpop.f32.mrf.mxu0
        %v4698 = vadd.f32 0.0, %v4697
        %v4699 = vpop.f32.mrf.mxu0
        %4700 = vmatprep.mubr.f32.mxu0 0.0
        %4701 = vmatmul.mubr.f32.gmra.mxu0 %v4355
        %v4702 = vpop.f32.mrf.mxu0
        %v4703 = vadd.f32 0.0, %v4702
        %v4704 = vpop.f32.mrf.mxu0
        %4705 = vmatprep.mubr.f32.mxu0 0.0
        %4706 = vmatmul.mubr.f32.gmra.mxu0 %v4358
        %v4707 = vpop.f32.mrf.mxu0
        %v4708 = vadd.f32 0.0, %v4707
        %v4709 = vpop.f32.mrf.mxu0
        %4710 = vmatprep.mubr.f32.mxu0 0.0
        %4711 = vmatmul.mubr.f32.gmra.mxu0 %v4361
        %v4712 = vpop.f32.mrf.mxu0
        %v4713 = vadd.f32 0.0, %v4712
        %v4714 = vpop.f32.mrf.mxu0
        %4715 = vmatprep.mubr.f32.mxu0 0.0
        %4716 = vmatmul.mubr.f32.gmra.mxu0 %v4364
        %v4717 = vpop.f32.mrf.mxu0
        %v4718 = vadd.f32 0.0, %v4717
        %v4719 = vpop.f32.mrf.mxu0
        %4720 = vmatprep.mubr.f32.mxu0 0.0
        %4721 = vmatmul.mubr.f32.gmra.mxu0 %v4367
        %v4722 = vpop.f32.mrf.mxu0
        %v4723 = vadd.f32 0.0, %v4722
        %v4724 = vpop.f32.mrf.mxu0
        %4725 = vmatprep.mubr.f32.mxu0 0.0
        %4726 = vmatmul.mubr.f32.gmra.mxu0 %v4370
        %v4727 = vpop.f32.mrf.mxu0
        %v4728 = vadd.f32 0.0, %v4727
        %v4729 = vpop.f32.mrf.mxu0
        %4730 = vmatprep.mubr.f32.mxu0 0.0
        %4731 = vmatmul.mubr.f32.gmra.mxu0 %v4373
        %v4732 = vpop.f32.mrf.mxu0
        %v4733 = vadd.f32 0.0, %v4732
        %v4734 = vpop.f32.mrf.mxu0
        %4735 = vmatprep.mubr.f32.mxu0 0.0
        %4736 = vmatmul.mubr.f32.gmra.mxu0 %v4376
        %v4737 = vpop.f32.mrf.mxu0
        %v4738 = vadd.f32 0.0, %v4737
        %v4739 = vpop.f32.mrf.mxu0
        %4740 = vmatprep.mubr.f32.mxu0 0.0
        %4741 = vmatmul.mubr.f32.gmra.mxu0 %v4379
        %v4742 = vpop.f32.mrf.mxu0
        %v4743 = vadd.f32 0.0, %v4742
        %v4744 = vpop.f32.mrf.mxu0
        %4745 = vmatprep.mubr.f32.mxu0 0.0
        %4746 = vmatmul.mubr.f32.gmra.mxu0 %v4382
        %v4747 = vpop.f32.mrf.mxu0
        %v4748 = vadd.f32 0.0, %v4747
        %v4749 = vpop.f32.mrf.mxu0
        %4750 = vmatprep.mubr.f32.mxu0 0.0
        %4751 = vmatmul.mubr.f32.gmra.mxu0 %v4385
        %v4752 = vpop.f32.mrf.mxu0
        %v4753 = vadd.f32 0.0, %v4752
        %v4754 = vpop.f32.mrf.mxu0
        %4755 = vmatprep.mubr.f32.mxu0 0.0
        %4756 = vmatmul.mubr.f32.gmra.mxu0 %v4388
        %v4757 = vpop.f32.mrf.mxu0
        %v4758 = vadd.f32 0.0, %v4757
        %v4759 = vpop.f32.mrf.mxu0
        %4760 = vmatprep.mubr.f32.mxu0 0.0
        %4761 = vmatmul.mubr.f32.gmra.mxu0 %v4391
        %v4762 = vpop.f32.mrf.mxu0
        %v4763 = vadd.f32 0.0, %v4762
        %v4764 = vpop.f32.mrf.mxu0
        %4765 = vmatprep.mubr.f32.mxu0 0.0
        %4766 = vmatmul.mubr.f32.gmra.mxu0 %v4394
        %v4767 = vpop.f32.mrf.mxu0
        %v4768 = vadd.f32 0.0, %v4767
        %v4769 = vpop.f32.mrf.mxu0
        %4770 = vmatprep.mubr.f32.mxu0 0.0
        %4771 = vmatmul.mubr.f32.gmra.mxu0 %v4397
        %v4772 = vpop.f32.mrf.mxu0
        %v4773 = vadd.f32 0.0, %v4772
        %v4774 = vpop.f32.mrf.mxu0
        %4775 = vmatprep.mubr.f32.mxu0 0.0
        %4776 = vmatmul.mubr.f32.gmra.mxu0 %v4400
        %v4777 = vpop.f32.mrf.mxu0
        %v4778 = vadd.f32 0.0, %v4777
        %v4779 = vpop.f32.mrf.mxu0
        %4780 = vmatprep.mubr.f32.mxu0 0.0
        %4781 = vmatmul.mubr.f32.gmra.mxu0 %v4403
        %v4782 = vpop.f32.mrf.mxu0
        %v4783 = vadd.f32 0.0, %v4782
        %v4784 = vpop.f32.mrf.mxu0
        %4785 = vmatprep.mubr.f32.mxu0 0.0
        %4786 = vmatmul.mubr.f32.gmra.mxu0 %v4406
        %v4787 = vpop.f32.mrf.mxu0
        %v4788 = vadd.f32 0.0, %v4787
        %v4789 = vpop.f32.mrf.mxu0
        %4790 = vmatprep.mubr.f32.mxu0 0.0
        %4791 = vmatmul.mubr.f32.gmra.mxu0 %v4409
        %v4792 = vpop.f32.mrf.mxu0
        %v4793 = vadd.f32 0.0, %v4792
        %v4794 = vpop.f32.mrf.mxu0
        %4795 = vdwg.mxu0
        %v4796 = vadd.f32 %v3899, %v4478
        %v4797 = vadd.f32 %v3904, %v4483
        %v4798 = vadd.f32 %v3909, %v4488
        %v4799 = vadd.f32 %v3914, %v4493
        %v4800 = vadd.f32 %v3919, %v4498
        %v4801 = vadd.f32 %v3924, %v4503
        %v4802 = vadd.f32 %v3929, %v4508
        %v4803 = vadd.f32 %v3934, %v4513
        %v4804 = vadd.f32 %v3939, %v4518
        %v4805 = vadd.f32 %v3944, %v4523
        %v4806 = vadd.f32 %v3949, %v4528
        %v4807 = vadd.f32 %v3954, %v4533
        %v4808 = vadd.f32 %v3959, %v4538
        %v4809 = vadd.f32 %v3964, %v4543
        %v4810 = vadd.f32 %v3969, %v4548
        %v4811 = vadd.f32 %v3974, %v4553
        %v4812 = vadd.f32 %v3979, %v4558
        %v4813 = vadd.f32 %v3984, %v4563
        %v4814 = vadd.f32 %v3989, %v4568
        %v4815 = vadd.f32 %v3994, %v4573
        %v4816 = vadd.f32 %v3999, %v4578
        %v4817 = vadd.f32 %v4004, %v4583
        %v4818 = vadd.f32 %v4009, %v4588
        %v4819 = vadd.f32 %v4014, %v4593
        %v4820 = vadd.f32 %v4019, %v4598
        %v4821 = vadd.f32 %v4024, %v4603
        %v4822 = vadd.f32 %v4029, %v4608
        %v4823 = vadd.f32 %v4034, %v4613
        %v4824 = vadd.f32 %v4039, %v4618
        %v4825 = vadd.f32 %v4044, %v4623
        %v4826 = vadd.f32 %v4049, %v4628
        %v4827 = vadd.f32 %v4054, %v4633
        %v4828 = vadd.f32 %v4059, %v4638
        %v4829 = vadd.f32 %v4064, %v4643
        %v4830 = vadd.f32 %v4069, %v4648
        %v4831 = vadd.f32 %v4074, %v4653
        %v4832 = vadd.f32 %v4079, %v4658
        %v4833 = vadd.f32 %v4084, %v4663
        %v4834 = vadd.f32 %v4089, %v4668
        %v4835 = vadd.f32 %v4094, %v4673
        %v4836 = vadd.f32 %v4099, %v4678
        %v4837 = vadd.f32 %v4104, %v4683
        %v4838 = vadd.f32 %v4109, %v4688
        %v4839 = vadd.f32 %v4114, %v4693
        %v4840 = vadd.f32 %v4119, %v4698
        %v4841 = vadd.f32 %v4124, %v4703
        %v4842 = vadd.f32 %v4129, %v4708
        %v4843 = vadd.f32 %v4134, %v4713
        %v4844 = vadd.f32 %v4139, %v4718
        %v4845 = vadd.f32 %v4144, %v4723
        %v4846 = vadd.f32 %v4149, %v4728
        %v4847 = vadd.f32 %v4154, %v4733
        %v4848 = vadd.f32 %v4159, %v4738
        %v4849 = vadd.f32 %v4164, %v4743
        %v4850 = vadd.f32 %v4169, %v4748
        %v4851 = vadd.f32 %v4174, %v4753
        %v4852 = vadd.f32 %v4179, %v4758
        %v4853 = vadd.f32 %v4184, %v4763
        %v4854 = vadd.f32 %v4189, %v4768
        %v4855 = vadd.f32 %v4194, %v4773
        %v4856 = vadd.f32 %v4199, %v4778
        %v4857 = vadd.f32 %v4204, %v4783
        %v4858 = vadd.f32 %v4209, %v4788
        %v4859 = vadd.f32 %v4214, %v4793
        %v4860 = vld [vmem:[%s2 + $0x1] sm:$0x1]
        %v4861 = vlaneseq
        %v4862 = vshrl.u32 %v4861, 7
        %v4863 = vsub.s32 0, %v4862
        %v4864 = vrot.slane %v4860, %v4863
        %v4865 = vadd.f32 %v4796, %v4864
        %v4866 = vadd.f32 %v4797, %v4864
        %v4867 = vadd.f32 %v4798, %v4864
        %v4868 = vadd.f32 %v4799, %v4864
        %v4869 = vadd.f32 %v4800, %v4864
        %v4870 = vadd.f32 %v4801, %v4864
        %v4871 = vadd.f32 %v4802, %v4864
        %v4872 = vadd.f32 %v4803, %v4864
        %v4873 = vadd.f32 %v4804, %v4864
        %v4874 = vadd.f32 %v4805, %v4864
        %v4875 = vadd.f32 %v4806, %v4864
        %v4876 = vadd.f32 %v4807, %v4864
        %v4877 = vadd.f32 %v4808, %v4864
        %v4878 = vadd.f32 %v4809, %v4864
        %v4879 = vadd.f32 %v4810, %v4864
        %v4880 = vadd.f32 %v4811, %v4864
        %v4881 = vadd.f32 %v4812, %v4864
        %v4882 = vadd.f32 %v4813, %v4864
        %v4883 = vadd.f32 %v4814, %v4864
        %v4884 = vadd.f32 %v4815, %v4864
        %v4885 = vadd.f32 %v4816, %v4864
        %v4886 = vadd.f32 %v4817, %v4864
        %v4887 = vadd.f32 %v4818, %v4864
        %v4888 = vadd.f32 %v4819, %v4864
        %v4889 = vadd.f32 %v4820, %v4864
        %v4890 = vadd.f32 %v4821, %v4864
        %v4891 = vadd.f32 %v4822, %v4864
        %v4892 = vadd.f32 %v4823, %v4864
        %v4893 = vadd.f32 %v4824, %v4864
        %v4894 = vadd.f32 %v4825, %v4864
        %v4895 = vadd.f32 %v4826, %v4864
        %v4896 = vadd.f32 %v4827, %v4864
        %v4897 = vadd.f32 %v4828, %v4864
        %v4898 = vadd.f32 %v4829, %v4864
        %v4899 = vadd.f32 %v4830, %v4864
        %v4900 = vadd.f32 %v4831, %v4864
        %v4901 = vadd.f32 %v4832, %v4864
        %v4902 = vadd.f32 %v4833, %v4864
        %v4903 = vadd.f32 %v4834, %v4864
        %v4904 = vadd.f32 %v4835, %v4864
        %v4905 = vadd.f32 %v4836, %v4864
        %v4906 = vadd.f32 %v4837, %v4864
        %v4907 = vadd.f32 %v4838, %v4864
        %v4908 = vadd.f32 %v4839, %v4864
        %v4909 = vadd.f32 %v4840, %v4864
        %v4910 = vadd.f32 %v4841, %v4864
        %v4911 = vadd.f32 %v4842, %v4864
        %v4912 = vadd.f32 %v4843, %v4864
        %v4913 = vadd.f32 %v4844, %v4864
        %v4914 = vadd.f32 %v4845, %v4864
        %v4915 = vadd.f32 %v4846, %v4864
        %v4916 = vadd.f32 %v4847, %v4864
        %v4917 = vadd.f32 %v4848, %v4864
        %v4918 = vadd.f32 %v4849, %v4864
        %v4919 = vadd.f32 %v4850, %v4864
        %v4920 = vadd.f32 %v4851, %v4864
        %v4921 = vadd.f32 %v4852, %v4864
        %v4922 = vadd.f32 %v4853, %v4864
        %v4923 = vadd.f32 %v4854, %v4864
        %v4924 = vadd.f32 %v4855, %v4864
        %v4925 = vadd.f32 %v4856, %v4864
        %v4926 = vadd.f32 %v4857, %v4864
        %v4927 = vadd.f32 %v4858, %v4864
        %v4928 = vadd.f32 %v4859, %v4864
        %v4929 = vmul.f32 %v4865, 0.01
        %v4930 = vmul.f32 %v4866, 0.01
        %v4931 = vmul.f32 %v4867, 0.01
        %v4932 = vmul.f32 %v4868, 0.01
        %v4933 = vmul.f32 %v4869, 0.01
        %v4934 = vmul.f32 %v4870, 0.01
        %v4935 = vmul.f32 %v4871, 0.01
        %v4936 = vmul.f32 %v4872, 0.01
        %v4937 = vmul.f32 %v4873, 0.01
        %v4938 = vmul.f32 %v4874, 0.01
        %v4939 = vmul.f32 %v4875, 0.01
        %v4940 = vmul.f32 %v4876, 0.01
        %v4941 = vmul.f32 %v4877, 0.01
        %v4942 = vmul.f32 %v4878, 0.01
        %v4943 = vmul.f32 %v4879, 0.01
        %v4944 = vmul.f32 %v4880, 0.01
        %v4945 = vmul.f32 %v4881, 0.01
        %v4946 = vmul.f32 %v4882, 0.01
        %v4947 = vmul.f32 %v4883, 0.01
        %v4948 = vmul.f32 %v4884, 0.01
        %v4949 = vmul.f32 %v4885, 0.01
        %v4950 = vmul.f32 %v4886, 0.01
        %v4951 = vmul.f32 %v4887, 0.01
        %v4952 = vmul.f32 %v4888, 0.01
        %v4953 = vmul.f32 %v4889, 0.01
        %v4954 = vmul.f32 %v4890, 0.01
        %v4955 = vmul.f32 %v4891, 0.01
        %v4956 = vmul.f32 %v4892, 0.01
        %v4957 = vmul.f32 %v4893, 0.01
        %v4958 = vmul.f32 %v4894, 0.01
        %v4959 = vmul.f32 %v4895, 0.01
        %v4960 = vmul.f32 %v4896, 0.01
        %v4961 = vmul.f32 %v4897, 0.01
        %v4962 = vmul.f32 %v4898, 0.01
        %v4963 = vmul.f32 %v4899, 0.01
        %v4964 = vmul.f32 %v4900, 0.01
        %v4965 = vmul.f32 %v4901, 0.01
        %v4966 = vmul.f32 %v4902, 0.01
        %v4967 = vmul.f32 %v4903, 0.01
        %v4968 = vmul.f32 %v4904, 0.01
        %v4969 = vmul.f32 %v4905, 0.01
        %v4970 = vmul.f32 %v4906, 0.01
        %v4971 = vmul.f32 %v4907, 0.01
        %v4972 = vmul.f32 %v4908, 0.01
        %v4973 = vmul.f32 %v4909, 0.01
        %v4974 = vmul.f32 %v4910, 0.01
        %v4975 = vmul.f32 %v4911, 0.01
        %v4976 = vmul.f32 %v4912, 0.01
        %v4977 = vmul.f32 %v4913, 0.01
        %v4978 = vmul.f32 %v4914, 0.01
        %v4979 = vmul.f32 %v4915, 0.01
        %v4980 = vmul.f32 %v4916, 0.01
        %v4981 = vmul.f32 %v4917, 0.01
        %v4982 = vmul.f32 %v4918, 0.01
        %v4983 = vmul.f32 %v4919, 0.01
        %v4984 = vmul.f32 %v4920, 0.01
        %v4985 = vmul.f32 %v4921, 0.01
        %v4986 = vmul.f32 %v4922, 0.01
        %v4987 = vmul.f32 %v4923, 0.01
        %v4988 = vmul.f32 %v4924, 0.01
        %v4989 = vmul.f32 %v4925, 0.01
        %v4990 = vmul.f32 %v4926, 0.01
        %v4991 = vmul.f32 %v4927, 0.01
        %v4992 = vmul.f32 %v4928, 0.01
        %v4993 = vmax.f32 %v4865, %v4929
        %v4994 = vmax.f32 %v4866, %v4930
        %v4995 = vmax.f32 %v4867, %v4931
        %v4996 = vmax.f32 %v4868, %v4932
        %v4997 = vmax.f32 %v4869, %v4933
        %v4998 = vmax.f32 %v4870, %v4934
        %v4999 = vmax.f32 %v4871, %v4935
        %v5000 = vmax.f32 %v4872, %v4936
        %v5001 = vmax.f32 %v4873, %v4937
        %v5002 = vmax.f32 %v4874, %v4938
        %v5003 = vmax.f32 %v4875, %v4939
        %v5004 = vmax.f32 %v4876, %v4940
        %v5005 = vmax.f32 %v4877, %v4941
        %v5006 = vmax.f32 %v4878, %v4942
        %v5007 = vmax.f32 %v4879, %v4943
        %v5008 = vmax.f32 %v4880, %v4944
        %v5009 = vmax.f32 %v4881, %v4945
        %v5010 = vmax.f32 %v4882, %v4946
        %v5011 = vmax.f32 %v4883, %v4947
        %v5012 = vmax.f32 %v4884, %v4948
        %v5013 = vmax.f32 %v4885, %v4949
        %v5014 = vmax.f32 %v4886, %v4950
        %v5015 = vmax.f32 %v4887, %v4951
        %v5016 = vmax.f32 %v4888, %v4952
        %v5017 = vmax.f32 %v4889, %v4953
        %v5018 = vmax.f32 %v4890, %v4954
        %v5019 = vmax.f32 %v4891, %v4955
        %v5020 = vmax.f32 %v4892, %v4956
        %v5021 = vmax.f32 %v4893, %v4957
        %v5022 = vmax.f32 %v4894, %v4958
        %v5023 = vmax.f32 %v4895, %v4959
        %v5024 = vmax.f32 %v4896, %v4960
        %v5025 = vmax.f32 %v4897, %v4961
        %v5026 = vmax.f32 %v4898, %v4962
        %v5027 = vmax.f32 %v4899, %v4963
        %v5028 = vmax.f32 %v4900, %v4964
        %v5029 = vmax.f32 %v4901, %v4965
        %v5030 = vmax.f32 %v4902, %v4966
        %v5031 = vmax.f32 %v4903, %v4967
        %v5032 = vmax.f32 %v4904, %v4968
        %v5033 = vmax.f32 %v4905, %v4969
        %v5034 = vmax.f32 %v4906, %v4970
        %v5035 = vmax.f32 %v4907, %v4971
        %v5036 = vmax.f32 %v4908, %v4972
        %v5037 = vmax.f32 %v4909, %v4973
        %v5038 = vmax.f32 %v4910, %v4974
        %v5039 = vmax.f32 %v4911, %v4975
        %v5040 = vmax.f32 %v4912, %v4976
        %v5041 = vmax.f32 %v4913, %v4977
        %v5042 = vmax.f32 %v4914, %v4978
        %v5043 = vmax.f32 %v4915, %v4979
        %v5044 = vmax.f32 %v4916, %v4980
        %v5045 = vmax.f32 %v4917, %v4981
        %v5046 = vmax.f32 %v4918, %v4982
        %v5047 = vmax.f32 %v4919, %v4983
        %v5048 = vmax.f32 %v4920, %v4984
        %v5049 = vmax.f32 %v4921, %v4985
        %v5050 = vmax.f32 %v4922, %v4986
        %v5051 = vmax.f32 %v4923, %v4987
        %v5052 = vmax.f32 %v4924, %v4988
        %v5053 = vmax.f32 %v4925, %v4989
        %v5054 = vmax.f32 %v4926, %v4990
        %v5055 = vmax.f32 %v4927, %v4991
        %v5056 = vmax.f32 %v4928, %v4992
        %v5057 = vld [vmem:[%s1 + $0x48] sm:$0xff]
        %v5058 = vld [vmem:[%s1 + $0x50] sm:$0xff]
        %v5059 = vld [vmem:[%s1 + $0x58] sm:$0xff]
        %v5060 = vld [vmem:[%s1 + $0x60] sm:$0xff]
        %v5061 = vld [vmem:[%s1 + $0x68] sm:$0xff]
        %v5062 = vld [vmem:[%s1 + $0x70] sm:$0xff]
        %vm5063 = vcmask 261120
        %v5065 = vsel %vm5063, %v4993, 0
        %v5068 = vsel %vm5063, %v4994, 0
        %v5071 = vsel %vm5063, %v4995, 0
        %v5074 = vsel %vm5063, %v4996, 0
        %v5077 = vsel %vm5063, %v4997, 0
        %v5080 = vsel %vm5063, %v4998, 0
        %v5083 = vsel %vm5063, %v4999, 0
        %v5086 = vsel %vm5063, %v5000, 0
        %v5089 = vsel %vm5063, %v5001, 0
        %v5092 = vsel %vm5063, %v5002, 0
        %v5095 = vsel %vm5063, %v5003, 0
        %v5098 = vsel %vm5063, %v5004, 0
        %v5101 = vsel %vm5063, %v5005, 0
        %v5104 = vsel %vm5063, %v5006, 0
        %v5107 = vsel %vm5063, %v5007, 0
        %v5110 = vsel %vm5063, %v5008, 0
        %v5113 = vsel %vm5063, %v5009, 0
        %v5116 = vsel %vm5063, %v5010, 0
        %v5119 = vsel %vm5063, %v5011, 0
        %v5122 = vsel %vm5063, %v5012, 0
        %v5125 = vsel %vm5063, %v5013, 0
        %v5128 = vsel %vm5063, %v5014, 0
        %v5131 = vsel %vm5063, %v5015, 0
        %v5134 = vsel %vm5063, %v5016, 0
        %v5137 = vsel %vm5063, %v5017, 0
        %v5140 = vsel %vm5063, %v5018, 0
        %v5143 = vsel %vm5063, %v5019, 0
        %v5146 = vsel %vm5063, %v5020, 0
        %v5149 = vsel %vm5063, %v5021, 0
        %v5152 = vsel %vm5063, %v5022, 0
        %v5155 = vsel %vm5063, %v5023, 0
        %v5158 = vsel %vm5063, %v5024, 0
        %v5161 = vsel %vm5063, %v5025, 0
        %v5164 = vsel %vm5063, %v5026, 0
        %v5167 = vsel %vm5063, %v5027, 0
        %v5170 = vsel %vm5063, %v5028, 0
        %v5173 = vsel %vm5063, %v5029, 0
        %v5176 = vsel %vm5063, %v5030, 0
        %v5179 = vsel %vm5063, %v5031, 0
        %v5182 = vsel %vm5063, %v5032, 0
        %v5185 = vsel %vm5063, %v5033, 0
        %v5188 = vsel %vm5063, %v5034, 0
        %v5191 = vsel %vm5063, %v5035, 0
        %v5194 = vsel %vm5063, %v5036, 0
        %v5197 = vsel %vm5063, %v5037, 0
        %v5200 = vsel %vm5063, %v5038, 0
        %v5203 = vsel %vm5063, %v5039, 0
        %v5206 = vsel %vm5063, %v5040, 0
        %v5209 = vsel %vm5063, %v5041, 0
        %v5212 = vsel %vm5063, %v5042, 0
        %v5215 = vsel %vm5063, %v5043, 0
        %v5218 = vsel %vm5063, %v5044, 0
        %v5221 = vsel %vm5063, %v5045, 0
        %v5224 = vsel %vm5063, %v5046, 0
        %v5227 = vsel %vm5063, %v5047, 0
        %v5230 = vsel %vm5063, %v5048, 0
        %v5233 = vsel %vm5063, %v5049, 0
        %v5236 = vsel %vm5063, %v5050, 0
        %v5239 = vsel %vm5063, %v5051, 0
        %v5242 = vsel %vm5063, %v5052, 0
        %v5245 = vsel %vm5063, %v5053, 0
        %v5248 = vsel %vm5063, %v5054, 0
        %v5251 = vsel %vm5063, %v5055, 0
        %v5254 = vsel %vm5063, %v5056, 0
        %5256 = vmatprep.subr.mxu0 0.0
        %5257 = vmatpush1.msra.mxu0 0.0
        %5258 = vmatprep.subr.mxu0 0.0
        %5259 = vmatpush1.msra.mxu0 0.0
        %5260 = vmatprep.subr.mxu0 0.0
        %5261 = vmatpush1.msra.mxu0 0.0
        %5262 = vmatprep.subr.mxu0 0.0
        %5263 = vmatpush1.msra.mxu0 0.0
        %5264 = vmatprep.subr.mxu0 0.0
        %5265 = vmatpush1.msra.mxu0 0.0
        %5266 = vmatprep.subr.mxu0 0.0
        %5267 = vmatpush1.msra.mxu0 0.0
        %5268 = vmatprep.subr.mxu0 0.0
        %5269 = vmatpush1.msra.mxu0 0.0
        %5270 = vmatprep.subr.mxu0 0.0
        %5271 = vmatpush1.msra.mxu0 0.0
        %5272 = vmatprep.subr.mxu0 0.0
        %5273 = vmatpush1.msra.mxu0 0.0
        %5274 = vmatprep.subr.mxu0 0.0
        %5275 = vmatpush1.msra.mxu0 0.0
        %5276 = vmatprep.subr.mxu0 0.0
        %5277 = vmatpush1.msra.mxu0 0.0
        %5278 = vmatprep.subr.mxu0 0.0
        %5279 = vmatpush1.msra.mxu0 0.0
        %5280 = vmatprep.subr.mxu0 0.0
        %5281 = vmatpush1.msra.mxu0 %v5062
        %5282 = vmatprep.subr.mxu0 0.0
        %5283 = vmatpush1.msra.mxu0 %v5061
        %5284 = vmatprep.subr.mxu0 0.0
        %5285 = vmatpush1.msra.mxu0 %v5060
        %5286 = vmatprep.subr.mxu0 0.0
        %5287 = vmatpush1.msra.mxu0 %v5059
        %5288 = vmatprep.subr.mxu0 0.0
        %5289 = vmatpush2.msra.mxu0 0.0
        %5290 = vmatprep.subr.mxu0 0.0
        %5291 = vmatpush2.msra.mxu0 0.0
        %5292 = vmatprep.subr.mxu0 0.0
        %5293 = vmatpush2.msra.mxu0 0.0
        %5294 = vmatprep.subr.mxu0 0.0
        %5295 = vmatpush2.msra.mxu0 0.0
        %5296 = vmatprep.subr.mxu0 0.0
        %5297 = vmatpush2.msra.mxu0 0.0
        %5298 = vmatprep.subr.mxu0 0.0
        %5299 = vmatpush2.msra.mxu0 0.0
        %5300 = vmatprep.subr.mxu0 0.0
        %5301 = vmatpush2.msra.mxu0 0.0
        %5302 = vmatprep.subr.mxu0 0.0
        %5303 = vmatpush2.msra.mxu0 0.0
        %5304 = vmatprep.subr.mxu0 0.0
        %5305 = vmatpush2.msra.mxu0 0.0
        %5306 = vmatprep.subr.mxu0 0.0
        %5307 = vmatpush2.msra.mxu0 0.0
        %5308 = vmatprep.subr.mxu0 0.0
        %5309 = vmatpush2.msra.mxu0 0.0
        %5310 = vmatprep.subr.mxu0 0.0
        %5311 = vmatpush2.msra.mxu0 0.0
        %5312 = vmatprep.subr.mxu0 0.0
        %5313 = vmatpush2.msra.mxu0 0.0
        %5314 = vmatprep.subr.mxu0 0.0
        %5315 = vmatpush2.msra.mxu0 0.0
        %5316 = vmatprep.subr.mxu0 0.0
        %5317 = vmatpush2.msra.mxu0 0.0
        %5318 = vmatprep.subr.mxu0 0.0
        %5319 = vmatpush2.msra.mxu0 0.0
        %5320 = vmatprep.mubr.f32.mxu0 0.0
        %5321 = vmatmul.mubr.f32.gmra.mxu0 %v5065
        %v5322 = vpop.f32.mrf.mxu0
        %v5323 = vadd.f32 0.0, %v5322
        %v5324 = vpop.f32.mrf.mxu0
        %5325 = vmatprep.mubr.f32.mxu0 0.0
        %5326 = vmatmul.mubr.f32.gmra.mxu0 %v5068
        %v5327 = vpop.f32.mrf.mxu0
        %v5328 = vadd.f32 0.0, %v5327
        %v5329 = vpop.f32.mrf.mxu0
        %5330 = vmatprep.mubr.f32.mxu0 0.0
        %5331 = vmatmul.mubr.f32.gmra.mxu0 %v5071
        %v5332 = vpop.f32.mrf.mxu0
        %v5333 = vadd.f32 0.0, %v5332
        %v5334 = vpop.f32.mrf.mxu0
        %5335 = vmatprep.mubr.f32.mxu0 0.0
        %5336 = vmatmul.mubr.f32.gmra.mxu0 %v5074
        %v5337 = vpop.f32.mrf.mxu0
        %v5338 = vadd.f32 0.0, %v5337
        %v5339 = vpop.f32.mrf.mxu0
        %5340 = vmatprep.mubr.f32.mxu0 0.0
        %5341 = vmatmul.mubr.f32.gmra.mxu0 %v5077
        %v5342 = vpop.f32.mrf.mxu0
        %v5343 = vadd.f32 0.0, %v5342
        %v5344 = vpop.f32.mrf.mxu0
        %5345 = vmatprep.mubr.f32.mxu0 0.0
        %5346 = vmatmul.mubr.f32.gmra.mxu0 %v5080
        %v5347 = vpop.f32.mrf.mxu0
        %v5348 = vadd.f32 0.0, %v5347
        %v5349 = vpop.f32.mrf.mxu0
        %5350 = vmatprep.mubr.f32.mxu0 0.0
        %5351 = vmatmul.mubr.f32.gmra.mxu0 %v5083
        %v5352 = vpop.f32.mrf.mxu0
        %v5353 = vadd.f32 0.0, %v5352
        %v5354 = vpop.f32.mrf.mxu0
        %5355 = vmatprep.mubr.f32.mxu0 0.0
        %5356 = vmatmul.mubr.f32.gmra.mxu0 %v5086
        %v5357 = vpop.f32.mrf.mxu0
        %v5358 = vadd.f32 0.0, %v5357
        %v5359 = vpop.f32.mrf.mxu0
        %5360 = vmatprep.mubr.f32.mxu0 0.0
        %5361 = vmatmul.mubr.f32.gmra.mxu0 %v5089
        %v5362 = vpop.f32.mrf.mxu0
        %v5363 = vadd.f32 0.0, %v5362
        %v5364 = vpop.f32.mrf.mxu0
        %5365 = vmatprep.mubr.f32.mxu0 0.0
        %5366 = vmatmul.mubr.f32.gmra.mxu0 %v5092
        %v5367 = vpop.f32.mrf.mxu0
        %v5368 = vadd.f32 0.0, %v5367
        %v5369 = vpop.f32.mrf.mxu0
        %5370 = vmatprep.mubr.f32.mxu0 0.0
        %5371 = vmatmul.mubr.f32.gmra.mxu0 %v5095
        %v5372 = vpop.f32.mrf.mxu0
        %v5373 = vadd.f32 0.0, %v5372
        %v5374 = vpop.f32.mrf.mxu0
        %5375 = vmatprep.mubr.f32.mxu0 0.0
        %5376 = vmatmul.mubr.f32.gmra.mxu0 %v5098
        %v5377 = vpop.f32.mrf.mxu0
        %v5378 = vadd.f32 0.0, %v5377
        %v5379 = vpop.f32.mrf.mxu0
        %5380 = vmatprep.mubr.f32.mxu0 0.0
        %5381 = vmatmul.mubr.f32.gmra.mxu0 %v5101
        %v5382 = vpop.f32.mrf.mxu0
        %v5383 = vadd.f32 0.0, %v5382
        %v5384 = vpop.f32.mrf.mxu0
        %5385 = vmatprep.mubr.f32.mxu0 0.0
        %5386 = vmatmul.mubr.f32.gmra.mxu0 %v5104
        %v5387 = vpop.f32.mrf.mxu0
        %v5388 = vadd.f32 0.0, %v5387
        %v5389 = vpop.f32.mrf.mxu0
        %5390 = vmatprep.mubr.f32.mxu0 0.0
        %5391 = vmatmul.mubr.f32.gmra.mxu0 %v5107
        %v5392 = vpop.f32.mrf.mxu0
        %v5393 = vadd.f32 0.0, %v5392
        %v5394 = vpop.f32.mrf.mxu0
        %5395 = vmatprep.mubr.f32.mxu0 0.0
        %5396 = vmatmul.mubr.f32.gmra.mxu0 %v5110
        %v5397 = vpop.f32.mrf.mxu0
        %v5398 = vadd.f32 0.0, %v5397
        %v5399 = vpop.f32.mrf.mxu0
        %5400 = vmatprep.mubr.f32.mxu0 0.0
        %5401 = vmatmul.mubr.f32.gmra.mxu0 %v5113
        %v5402 = vpop.f32.mrf.mxu0
        %v5403 = vadd.f32 0.0, %v5402
        %v5404 = vpop.f32.mrf.mxu0
        %5405 = vmatprep.mubr.f32.mxu0 0.0
        %5406 = vmatmul.mubr.f32.gmra.mxu0 %v5116
        %v5407 = vpop.f32.mrf.mxu0
        %v5408 = vadd.f32 0.0, %v5407
        %v5409 = vpop.f32.mrf.mxu0
        %5410 = vmatprep.mubr.f32.mxu0 0.0
        %5411 = vmatmul.mubr.f32.gmra.mxu0 %v5119
        %v5412 = vpop.f32.mrf.mxu0
        %v5413 = vadd.f32 0.0, %v5412
        %v5414 = vpop.f32.mrf.mxu0
        %5415 = vmatprep.mubr.f32.mxu0 0.0
        %5416 = vmatmul.mubr.f32.gmra.mxu0 %v5122
        %v5417 = vpop.f32.mrf.mxu0
        %v5418 = vadd.f32 0.0, %v5417
        %v5419 = vpop.f32.mrf.mxu0
        %5420 = vmatprep.mubr.f32.mxu0 0.0
        %5421 = vmatmul.mubr.f32.gmra.mxu0 %v5125
        %v5422 = vpop.f32.mrf.mxu0
        %v5423 = vadd.f32 0.0, %v5422
        %v5424 = vpop.f32.mrf.mxu0
        %5425 = vmatprep.mubr.f32.mxu0 0.0
        %5426 = vmatmul.mubr.f32.gmra.mxu0 %v5128
        %v5427 = vpop.f32.mrf.mxu0
        %v5428 = vadd.f32 0.0, %v5427
        %v5429 = vpop.f32.mrf.mxu0
        %5430 = vmatprep.mubr.f32.mxu0 0.0
        %5431 = vmatmul.mubr.f32.gmra.mxu0 %v5131
        %v5432 = vpop.f32.mrf.mxu0
        %v5433 = vadd.f32 0.0, %v5432
        %v5434 = vpop.f32.mrf.mxu0
        %5435 = vmatprep.mubr.f32.mxu0 0.0
        %5436 = vmatmul.mubr.f32.gmra.mxu0 %v5134
        %v5437 = vpop.f32.mrf.mxu0
        %v5438 = vadd.f32 0.0, %v5437
        %v5439 = vpop.f32.mrf.mxu0
        %5440 = vmatprep.mubr.f32.mxu0 0.0
        %5441 = vmatmul.mubr.f32.gmra.mxu0 %v5137
        %v5442 = vpop.f32.mrf.mxu0
        %v5443 = vadd.f32 0.0, %v5442
        %v5444 = vpop.f32.mrf.mxu0
        %5445 = vmatprep.mubr.f32.mxu0 0.0
        %5446 = vmatmul.mubr.f32.gmra.mxu0 %v5140
        %v5447 = vpop.f32.mrf.mxu0
        %v5448 = vadd.f32 0.0, %v5447
        %v5449 = vpop.f32.mrf.mxu0
        %5450 = vmatprep.mubr.f32.mxu0 0.0
        %5451 = vmatmul.mubr.f32.gmra.mxu0 %v5143
        %v5452 = vpop.f32.mrf.mxu0
        %v5453 = vadd.f32 0.0, %v5452
        %v5454 = vpop.f32.mrf.mxu0
        %5455 = vmatprep.mubr.f32.mxu0 0.0
        %5456 = vmatmul.mubr.f32.gmra.mxu0 %v5146
        %v5457 = vpop.f32.mrf.mxu0
        %v5458 = vadd.f32 0.0, %v5457
        %v5459 = vpop.f32.mrf.mxu0
        %5460 = vmatprep.mubr.f32.mxu0 0.0
        %5461 = vmatmul.mubr.f32.gmra.mxu0 %v5149
        %v5462 = vpop.f32.mrf.mxu0
        %v5463 = vadd.f32 0.0, %v5462
        %v5464 = vpop.f32.mrf.mxu0
        %5465 = vmatprep.mubr.f32.mxu0 0.0
        %5466 = vmatmul.mubr.f32.gmra.mxu0 %v5152
        %v5467 = vpop.f32.mrf.mxu0
        %v5468 = vadd.f32 0.0, %v5467
        %v5469 = vpop.f32.mrf.mxu0
        %5470 = vmatprep.mubr.f32.mxu0 0.0
        %5471 = vmatmul.mubr.f32.gmra.mxu0 %v5155
        %v5472 = vpop.f32.mrf.mxu0
        %v5473 = vadd.f32 0.0, %v5472
        %v5474 = vpop.f32.mrf.mxu0
        %5475 = vmatprep.mubr.f32.mxu0 0.0
        %5476 = vmatmul.mubr.f32.gmra.mxu0 %v5158
        %v5477 = vpop.f32.mrf.mxu0
        %v5478 = vadd.f32 0.0, %v5477
        %v5479 = vpop.f32.mrf.mxu0
        %5480 = vmatprep.mubr.f32.mxu0 0.0
        %5481 = vmatmul.mubr.f32.gmra.mxu0 %v5161
        %v5482 = vpop.f32.mrf.mxu0
        %v5483 = vadd.f32 0.0, %v5482
        %v5484 = vpop.f32.mrf.mxu0
        %5485 = vmatprep.mubr.f32.mxu0 0.0
        %5486 = vmatmul.mubr.f32.gmra.mxu0 %v5164
        %v5487 = vpop.f32.mrf.mxu0
        %v5488 = vadd.f32 0.0, %v5487
        %v5489 = vpop.f32.mrf.mxu0
        %5490 = vmatprep.mubr.f32.mxu0 0.0
        %5491 = vmatmul.mubr.f32.gmra.mxu0 %v5167
        %v5492 = vpop.f32.mrf.mxu0
        %v5493 = vadd.f32 0.0, %v5492
        %v5494 = vpop.f32.mrf.mxu0
        %5495 = vmatprep.mubr.f32.mxu0 0.0
        %5496 = vmatmul.mubr.f32.gmra.mxu0 %v5170
        %v5497 = vpop.f32.mrf.mxu0
        %v5498 = vadd.f32 0.0, %v5497
        %v5499 = vpop.f32.mrf.mxu0
        %5500 = vmatprep.mubr.f32.mxu0 0.0
        %5501 = vmatmul.mubr.f32.gmra.mxu0 %v5173
        %v5502 = vpop.f32.mrf.mxu0
        %v5503 = vadd.f32 0.0, %v5502
        %v5504 = vpop.f32.mrf.mxu0
        %5505 = vmatprep.mubr.f32.mxu0 0.0
        %5506 = vmatmul.mubr.f32.gmra.mxu0 %v5176
        %v5507 = vpop.f32.mrf.mxu0
        %v5508 = vadd.f32 0.0, %v5507
        %v5509 = vpop.f32.mrf.mxu0
        %5510 = vmatprep.mubr.f32.mxu0 0.0
        %5511 = vmatmul.mubr.f32.gmra.mxu0 %v5179
        %v5512 = vpop.f32.mrf.mxu0
        %v5513 = vadd.f32 0.0, %v5512
        %v5514 = vpop.f32.mrf.mxu0
        %5515 = vmatprep.mubr.f32.mxu0 0.0
        %5516 = vmatmul.mubr.f32.gmra.mxu0 %v5182
        %v5517 = vpop.f32.mrf.mxu0
        %v5518 = vadd.f32 0.0, %v5517
        %v5519 = vpop.f32.mrf.mxu0
        %5520 = vmatprep.mubr.f32.mxu0 0.0
        %5521 = vmatmul.mubr.f32.gmra.mxu0 %v5185
        %v5522 = vpop.f32.mrf.mxu0
        %v5523 = vadd.f32 0.0, %v5522
        %v5524 = vpop.f32.mrf.mxu0
        %5525 = vmatprep.mubr.f32.mxu0 0.0
        %5526 = vmatmul.mubr.f32.gmra.mxu0 %v5188
        %v5527 = vpop.f32.mrf.mxu0
        %v5528 = vadd.f32 0.0, %v5527
        %v5529 = vpop.f32.mrf.mxu0
        %5530 = vmatprep.mubr.f32.mxu0 0.0
        %5531 = vmatmul.mubr.f32.gmra.mxu0 %v5191
        %v5532 = vpop.f32.mrf.mxu0
        %v5533 = vadd.f32 0.0, %v5532
        %v5534 = vpop.f32.mrf.mxu0
        %5535 = vmatprep.mubr.f32.mxu0 0.0
        %5536 = vmatmul.mubr.f32.gmra.mxu0 %v5194
        %v5537 = vpop.f32.mrf.mxu0
        %v5538 = vadd.f32 0.0, %v5537
        %v5539 = vpop.f32.mrf.mxu0
        %5540 = vmatprep.mubr.f32.mxu0 0.0
        %5541 = vmatmul.mubr.f32.gmra.mxu0 %v5197
        %v5542 = vpop.f32.mrf.mxu0
        %v5543 = vadd.f32 0.0, %v5542
        %v5544 = vpop.f32.mrf.mxu0
        %5545 = vmatprep.mubr.f32.mxu0 0.0
        %5546 = vmatmul.mubr.f32.gmra.mxu0 %v5200
        %v5547 = vpop.f32.mrf.mxu0
        %v5548 = vadd.f32 0.0, %v5547
        %v5549 = vpop.f32.mrf.mxu0
        %5550 = vmatprep.mubr.f32.mxu0 0.0
        %5551 = vmatmul.mubr.f32.gmra.mxu0 %v5203
        %v5552 = vpop.f32.mrf.mxu0
        %v5553 = vadd.f32 0.0, %v5552
        %v5554 = vpop.f32.mrf.mxu0
        %5555 = vmatprep.mubr.f32.mxu0 0.0
        %5556 = vmatmul.mubr.f32.gmra.mxu0 %v5206
        %v5557 = vpop.f32.mrf.mxu0
        %v5558 = vadd.f32 0.0, %v5557
        %v5559 = vpop.f32.mrf.mxu0
        %5560 = vmatprep.mubr.f32.mxu0 0.0
        %5561 = vmatmul.mubr.f32.gmra.mxu0 %v5209
        %v5562 = vpop.f32.mrf.mxu0
        %v5563 = vadd.f32 0.0, %v5562
        %v5564 = vpop.f32.mrf.mxu0
        %5565 = vmatprep.mubr.f32.mxu0 0.0
        %5566 = vmatmul.mubr.f32.gmra.mxu0 %v5212
        %v5567 = vpop.f32.mrf.mxu0
        %v5568 = vadd.f32 0.0, %v5567
        %v5569 = vpop.f32.mrf.mxu0
        %5570 = vmatprep.mubr.f32.mxu0 0.0
        %5571 = vmatmul.mubr.f32.gmra.mxu0 %v5215
        %v5572 = vpop.f32.mrf.mxu0
        %v5573 = vadd.f32 0.0, %v5572
        %v5574 = vpop.f32.mrf.mxu0
        %5575 = vmatprep.mubr.f32.mxu0 0.0
        %5576 = vmatmul.mubr.f32.gmra.mxu0 %v5218
        %v5577 = vpop.f32.mrf.mxu0
        %v5578 = vadd.f32 0.0, %v5577
        %v5579 = vpop.f32.mrf.mxu0
        %5580 = vmatprep.mubr.f32.mxu0 0.0
        %5581 = vmatmul.mubr.f32.gmra.mxu0 %v5221
        %v5582 = vpop.f32.mrf.mxu0
        %v5583 = vadd.f32 0.0, %v5582
        %v5584 = vpop.f32.mrf.mxu0
        %5585 = vmatprep.mubr.f32.mxu0 0.0
        %5586 = vmatmul.mubr.f32.gmra.mxu0 %v5224
        %v5587 = vpop.f32.mrf.mxu0
        %v5588 = vadd.f32 0.0, %v5587
        %v5589 = vpop.f32.mrf.mxu0
        %5590 = vmatprep.mubr.f32.mxu0 0.0
        %5591 = vmatmul.mubr.f32.gmra.mxu0 %v5227
        %v5592 = vpop.f32.mrf.mxu0
        %v5593 = vadd.f32 0.0, %v5592
        %v5594 = vpop.f32.mrf.mxu0
        %5595 = vmatprep.mubr.f32.mxu0 0.0
        %5596 = vmatmul.mubr.f32.gmra.mxu0 %v5230
        %v5597 = vpop.f32.mrf.mxu0
        %v5598 = vadd.f32 0.0, %v5597
        %v5599 = vpop.f32.mrf.mxu0
        %5600 = vmatprep.mubr.f32.mxu0 0.0
        %5601 = vmatmul.mubr.f32.gmra.mxu0 %v5233
        %v5602 = vpop.f32.mrf.mxu0
        %v5603 = vadd.f32 0.0, %v5602
        %v5604 = vpop.f32.mrf.mxu0
        %5605 = vmatprep.mubr.f32.mxu0 0.0
        %5606 = vmatmul.mubr.f32.gmra.mxu0 %v5236
        %v5607 = vpop.f32.mrf.mxu0
        %v5608 = vadd.f32 0.0, %v5607
        %v5609 = vpop.f32.mrf.mxu0
        %5610 = vmatprep.mubr.f32.mxu0 0.0
        %5611 = vmatmul.mubr.f32.gmra.mxu0 %v5239
        %v5612 = vpop.f32.mrf.mxu0
        %v5613 = vadd.f32 0.0, %v5612
        %v5614 = vpop.f32.mrf.mxu0
        %5615 = vmatprep.mubr.f32.mxu0 0.0
        %5616 = vmatmul.mubr.f32.gmra.mxu0 %v5242
        %v5617 = vpop.f32.mrf.mxu0
        %v5618 = vadd.f32 0.0, %v5617
        %v5619 = vpop.f32.mrf.mxu0
        %5620 = vmatprep.mubr.f32.mxu0 0.0
        %5621 = vmatmul.mubr.f32.gmra.mxu0 %v5245
        %v5622 = vpop.f32.mrf.mxu0
        %v5623 = vadd.f32 0.0, %v5622
        %v5624 = vpop.f32.mrf.mxu0
        %5625 = vmatprep.mubr.f32.mxu0 0.0
        %5626 = vmatmul.mubr.f32.gmra.mxu0 %v5248
        %v5627 = vpop.f32.mrf.mxu0
        %v5628 = vadd.f32 0.0, %v5627
        %v5629 = vpop.f32.mrf.mxu0
        %5630 = vmatprep.mubr.f32.mxu0 0.0
        %5631 = vmatmul.mubr.f32.gmra.mxu0 %v5251
        %v5632 = vpop.f32.mrf.mxu0
        %v5633 = vadd.f32 0.0, %v5632
        %v5634 = vpop.f32.mrf.mxu0
        %5635 = vmatprep.mubr.f32.mxu0 0.0
        %5636 = vmatmul.mubr.f32.gmra.mxu0 %v5254
        %v5637 = vpop.f32.mrf.mxu0
        %v5638 = vadd.f32 0.0, %v5637
        %v5639 = vpop.f32.mrf.mxu0
        %5640 = vdwg.mxu0
        %5641 = vmatprep.subr.mxu0 0.0
        %5642 = vmatpush1.msra.mxu0 0.0
        %5643 = vmatprep.subr.mxu0 0.0
        %5644 = vmatpush1.msra.mxu0 0.0
        %5645 = vmatprep.subr.mxu0 0.0
        %5646 = vmatpush1.msra.mxu0 0.0
        %5647 = vmatprep.subr.mxu0 0.0
        %5648 = vmatpush1.msra.mxu0 0.0
        %5649 = vmatprep.subr.mxu0 0.0
        %5650 = vmatpush1.msra.mxu0 0.0
        %5651 = vmatprep.subr.mxu0 0.0
        %5652 = vmatpush1.msra.mxu0 0.0
        %5653 = vmatprep.subr.mxu0 0.0
        %5654 = vmatpush1.msra.mxu0 0.0
        %5655 = vmatprep.subr.mxu0 0.0
        %5656 = vmatpush1.msra.mxu0 0.0
        %5657 = vmatprep.subr.mxu0 0.0
        %5658 = vmatpush1.msra.mxu0 0.0
        %5659 = vmatprep.subr.mxu0 0.0
        %5660 = vmatpush1.msra.mxu0 0.0
        %5661 = vmatprep.subr.mxu0 0.0
        %5662 = vmatpush1.msra.mxu0 0.0
        %5663 = vmatprep.subr.mxu0 0.0
        %5664 = vmatpush1.msra.mxu0 0.0
        %5665 = vmatprep.subr.mxu0 0.0
        %5666 = vmatpush1.msra.mxu0 0.0
        %5667 = vmatprep.subr.mxu0 0.0
        %5668 = vmatpush1.msra.mxu0 0.0
        %5669 = vmatprep.subr.mxu0 0.0
        %5670 = vmatpush1.msra.mxu0 %v5058
        %5671 = vmatprep.subr.mxu0 0.0
        %5672 = vmatpush1.msra.mxu0 %v5057
        %5673 = vmatprep.subr.mxu0 0.0
        %5674 = vmatpush2.msra.mxu0 0.0
        %5675 = vmatprep.subr.mxu0 0.0
        %5676 = vmatpush2.msra.mxu0 0.0
        %5677 = vmatprep.subr.mxu0 0.0
        %5678 = vmatpush2.msra.mxu0 0.0
        %5679 = vmatprep.subr.mxu0 0.0
        %5680 = vmatpush2.msra.mxu0 0.0
        %5681 = vmatprep.subr.mxu0 0.0
        %5682 = vmatpush2.msra.mxu0 0.0
        %5683 = vmatprep.subr.mxu0 0.0
        %5684 = vmatpush2.msra.mxu0 0.0
        %5685 = vmatprep.subr.mxu0 0.0
        %5686 = vmatpush2.msra.mxu0 0.0
        %5687 = vmatprep.subr.mxu0 0.0
        %5688 = vmatpush2.msra.mxu0 0.0
        %5689 = vmatprep.subr.mxu0 0.0
        %5690 = vmatpush2.msra.mxu0 0.0
        %5691 = vmatprep.subr.mxu0 0.0
        %5692 = vmatpush2.msra.mxu0 0.0
        %5693 = vmatprep.subr.mxu0 0.0
        %5694 = vmatpush2.msra.mxu0 0.0
        %5695 = vmatprep.subr.mxu0 0.0
        %5696 = vmatpush2.msra.mxu0 0.0
        %5697 = vmatprep.subr.mxu0 0.0
        %5698 = vmatpush2.msra.mxu0 0.0
        %5699 = vmatprep.subr.mxu0 0.0
        %5700 = vmatpush2.msra.mxu0 0.0
        %5701 = vmatprep.subr.mxu0 0.0
        %5702 = vmatpush2.msra.mxu0 0.0
        %5703 = vmatprep.subr.mxu0 0.0
        %5704 = vmatpush2.msra.mxu0 0.0
        %5705 = vmatprep.mubr.f32.mxu0 0.0
        %5706 = vmatmul.mubr.f32.gmra.mxu0 %v3064
        %v5707 = vpop.f32.mrf.mxu0
        %v5708 = vadd.f32 %v5323, %v5707
        %v5709 = vpop.f32.mrf.mxu0
        %5710 = vmatprep.mubr.f32.mxu0 0.0
        %5711 = vmatmul.mubr.f32.gmra.mxu0 %v3067
        %v5712 = vpop.f32.mrf.mxu0
        %v5713 = vadd.f32 %v5328, %v5712
        %v5714 = vpop.f32.mrf.mxu0
        %5715 = vmatprep.mubr.f32.mxu0 0.0
        %5716 = vmatmul.mubr.f32.gmra.mxu0 %v3070
        %v5717 = vpop.f32.mrf.mxu0
        %v5718 = vadd.f32 %v5333, %v5717
        %v5719 = vpop.f32.mrf.mxu0
        %5720 = vmatprep.mubr.f32.mxu0 0.0
        %5721 = vmatmul.mubr.f32.gmra.mxu0 %v3073
        %v5722 = vpop.f32.mrf.mxu0
        %v5723 = vadd.f32 %v5338, %v5722
        %v5724 = vpop.f32.mrf.mxu0
        %5725 = vmatprep.mubr.f32.mxu0 0.0
        %5726 = vmatmul.mubr.f32.gmra.mxu0 %v3076
        %v5727 = vpop.f32.mrf.mxu0
        %v5728 = vadd.f32 %v5343, %v5727
        %v5729 = vpop.f32.mrf.mxu0
        %5730 = vmatprep.mubr.f32.mxu0 0.0
        %5731 = vmatmul.mubr.f32.gmra.mxu0 %v3079
        %v5732 = vpop.f32.mrf.mxu0
        %v5733 = vadd.f32 %v5348, %v5732
        %v5734 = vpop.f32.mrf.mxu0
        %5735 = vmatprep.mubr.f32.mxu0 0.0
        %5736 = vmatmul.mubr.f32.gmra.mxu0 %v3082
        %v5737 = vpop.f32.mrf.mxu0
        %v5738 = vadd.f32 %v5353, %v5737
        %v5739 = vpop.f32.mrf.mxu0
        %5740 = vmatprep.mubr.f32.mxu0 0.0
        %5741 = vmatmul.mubr.f32.gmra.mxu0 %v3085
        %v5742 = vpop.f32.mrf.mxu0
        %v5743 = vadd.f32 %v5358, %v5742
        %v5744 = vpop.f32.mrf.mxu0
        %5745 = vmatprep.mubr.f32.mxu0 0.0
        %5746 = vmatmul.mubr.f32.gmra.mxu0 %v3088
        %v5747 = vpop.f32.mrf.mxu0
        %v5748 = vadd.f32 %v5363, %v5747
        %v5749 = vpop.f32.mrf.mxu0
        %5750 = vmatprep.mubr.f32.mxu0 0.0
        %5751 = vmatmul.mubr.f32.gmra.mxu0 %v3091
        %v5752 = vpop.f32.mrf.mxu0
        %v5753 = vadd.f32 %v5368, %v5752
        %v5754 = vpop.f32.mrf.mxu0
        %5755 = vmatprep.mubr.f32.mxu0 0.0
        %5756 = vmatmul.mubr.f32.gmra.mxu0 %v3094
        %v5757 = vpop.f32.mrf.mxu0
        %v5758 = vadd.f32 %v5373, %v5757
        %v5759 = vpop.f32.mrf.mxu0
        %5760 = vmatprep.mubr.f32.mxu0 0.0
        %5761 = vmatmul.mubr.f32.gmra.mxu0 %v3097
        %v5762 = vpop.f32.mrf.mxu0
        %v5763 = vadd.f32 %v5378, %v5762
        %v5764 = vpop.f32.mrf.mxu0
        %5765 = vmatprep.mubr.f32.mxu0 0.0
        %5766 = vmatmul.mubr.f32.gmra.mxu0 %v3100
        %v5767 = vpop.f32.mrf.mxu0
        %v5768 = vadd.f32 %v5383, %v5767
        %v5769 = vpop.f32.mrf.mxu0
        %5770 = vmatprep.mubr.f32.mxu0 0.0
        %5771 = vmatmul.mubr.f32.gmra.mxu0 %v3103
        %v5772 = vpop.f32.mrf.mxu0
        %v5773 = vadd.f32 %v5388, %v5772
        %v5774 = vpop.f32.mrf.mxu0
        %5775 = vmatprep.mubr.f32.mxu0 0.0
        %5776 = vmatmul.mubr.f32.gmra.mxu0 %v3106
        %v5777 = vpop.f32.mrf.mxu0
        %v5778 = vadd.f32 %v5393, %v5777
        %v5779 = vpop.f32.mrf.mxu0
        %5780 = vmatprep.mubr.f32.mxu0 0.0
        %5781 = vmatmul.mubr.f32.gmra.mxu0 %v3109
        %v5782 = vpop.f32.mrf.mxu0
        %v5783 = vadd.f32 %v5398, %v5782
        %v5784 = vpop.f32.mrf.mxu0
        %5785 = vmatprep.mubr.f32.mxu0 0.0
        %5786 = vmatmul.mubr.f32.gmra.mxu0 %v3112
        %v5787 = vpop.f32.mrf.mxu0
        %v5788 = vadd.f32 %v5403, %v5787
        %v5789 = vpop.f32.mrf.mxu0
        %5790 = vmatprep.mubr.f32.mxu0 0.0
        %5791 = vmatmul.mubr.f32.gmra.mxu0 %v3115
        %v5792 = vpop.f32.mrf.mxu0
        %v5793 = vadd.f32 %v5408, %v5792
        %v5794 = vpop.f32.mrf.mxu0
        %5795 = vmatprep.mubr.f32.mxu0 0.0
        %5796 = vmatmul.mubr.f32.gmra.mxu0 %v3118
        %v5797 = vpop.f32.mrf.mxu0
        %v5798 = vadd.f32 %v5413, %v5797
        %v5799 = vpop.f32.mrf.mxu0
        %5800 = vmatprep.mubr.f32.mxu0 0.0
        %5801 = vmatmul.mubr.f32.gmra.mxu0 %v3121
        %v5802 = vpop.f32.mrf.mxu0
        %v5803 = vadd.f32 %v5418, %v5802
        %v5804 = vpop.f32.mrf.mxu0
        %5805 = vmatprep.mubr.f32.mxu0 0.0
        %5806 = vmatmul.mubr.f32.gmra.mxu0 %v3124
        %v5807 = vpop.f32.mrf.mxu0
        %v5808 = vadd.f32 %v5423, %v5807
        %v5809 = vpop.f32.mrf.mxu0
        %5810 = vmatprep.mubr.f32.mxu0 0.0
        %5811 = vmatmul.mubr.f32.gmra.mxu0 %v3127
        %v5812 = vpop.f32.mrf.mxu0
        %v5813 = vadd.f32 %v5428, %v5812
        %v5814 = vpop.f32.mrf.mxu0
        %5815 = vmatprep.mubr.f32.mxu0 0.0
        %5816 = vmatmul.mubr.f32.gmra.mxu0 %v3130
        %v5817 = vpop.f32.mrf.mxu0
        %v5818 = vadd.f32 %v5433, %v5817
        %v5819 = vpop.f32.mrf.mxu0
        %5820 = vmatprep.mubr.f32.mxu0 0.0
        %5821 = vmatmul.mubr.f32.gmra.mxu0 %v3133
        %v5822 = vpop.f32.mrf.mxu0
        %v5823 = vadd.f32 %v5438, %v5822
        %v5824 = vpop.f32.mrf.mxu0
        %5825 = vmatprep.mubr.f32.mxu0 0.0
        %5826 = vmatmul.mubr.f32.gmra.mxu0 %v3136
        %v5827 = vpop.f32.mrf.mxu0
        %v5828 = vadd.f32 %v5443, %v5827
        %v5829 = vpop.f32.mrf.mxu0
        %5830 = vmatprep.mubr.f32.mxu0 0.0
        %5831 = vmatmul.mubr.f32.gmra.mxu0 %v3139
        %v5832 = vpop.f32.mrf.mxu0
        %v5833 = vadd.f32 %v5448, %v5832
        %v5834 = vpop.f32.mrf.mxu0
        %5835 = vmatprep.mubr.f32.mxu0 0.0
        %5836 = vmatmul.mubr.f32.gmra.mxu0 %v3142
        %v5837 = vpop.f32.mrf.mxu0
        %v5838 = vadd.f32 %v5453, %v5837
        %v5839 = vpop.f32.mrf.mxu0
        %5840 = vmatprep.mubr.f32.mxu0 0.0
        %5841 = vmatmul.mubr.f32.gmra.mxu0 %v3145
        %v5842 = vpop.f32.mrf.mxu0
        %v5843 = vadd.f32 %v5458, %v5842
        %v5844 = vpop.f32.mrf.mxu0
        %5845 = vmatprep.mubr.f32.mxu0 0.0
        %5846 = vmatmul.mubr.f32.gmra.mxu0 %v3148
        %v5847 = vpop.f32.mrf.mxu0
        %v5848 = vadd.f32 %v5463, %v5847
        %v5849 = vpop.f32.mrf.mxu0
        %5850 = vmatprep.mubr.f32.mxu0 0.0
        %5851 = vmatmul.mubr.f32.gmra.mxu0 %v3151
        %v5852 = vpop.f32.mrf.mxu0
        %v5853 = vadd.f32 %v5468, %v5852
        %v5854 = vpop.f32.mrf.mxu0
        %5855 = vmatprep.mubr.f32.mxu0 0.0
        %5856 = vmatmul.mubr.f32.gmra.mxu0 %v3154
        %v5857 = vpop.f32.mrf.mxu0
        %v5858 = vadd.f32 %v5473, %v5857
        %v5859 = vpop.f32.mrf.mxu0
        %5860 = vmatprep.mubr.f32.mxu0 0.0
        %5861 = vmatmul.mubr.f32.gmra.mxu0 %v3157
        %v5862 = vpop.f32.mrf.mxu0
        %v5863 = vadd.f32 %v5478, %v5862
        %v5864 = vpop.f32.mrf.mxu0
        %5865 = vmatprep.mubr.f32.mxu0 0.0
        %5866 = vmatmul.mubr.f32.gmra.mxu0 %v3160
        %v5867 = vpop.f32.mrf.mxu0
        %v5868 = vadd.f32 %v5483, %v5867
        %v5869 = vpop.f32.mrf.mxu0
        %5870 = vmatprep.mubr.f32.mxu0 0.0
        %5871 = vmatmul.mubr.f32.gmra.mxu0 %v3163
        %v5872 = vpop.f32.mrf.mxu0
        %v5873 = vadd.f32 %v5488, %v5872
        %v5874 = vpop.f32.mrf.mxu0
        %5875 = vmatprep.mubr.f32.mxu0 0.0
        %5876 = vmatmul.mubr.f32.gmra.mxu0 %v3166
        %v5877 = vpop.f32.mrf.mxu0
        %v5878 = vadd.f32 %v5493, %v5877
        %v5879 = vpop.f32.mrf.mxu0
        %5880 = vmatprep.mubr.f32.mxu0 0.0
        %5881 = vmatmul.mubr.f32.gmra.mxu0 %v3169
        %v5882 = vpop.f32.mrf.mxu0
        %v5883 = vadd.f32 %v5498, %v5882
        %v5884 = vpop.f32.mrf.mxu0
        %5885 = vmatprep.mubr.f32.mxu0 0.0
        %5886 = vmatmul.mubr.f32.gmra.mxu0 %v3172
        %v5887 = vpop.f32.mrf.mxu0
        %v5888 = vadd.f32 %v5503, %v5887
        %v5889 = vpop.f32.mrf.mxu0
        %5890 = vmatprep.mubr.f32.mxu0 0.0
        %5891 = vmatmul.mubr.f32.gmra.mxu0 %v3175
        %v5892 = vpop.f32.mrf.mxu0
        %v5893 = vadd.f32 %v5508, %v5892
        %v5894 = vpop.f32.mrf.mxu0
        %5895 = vmatprep.mubr.f32.mxu0 0.0
        %5896 = vmatmul.mubr.f32.gmra.mxu0 %v3178
        %v5897 = vpop.f32.mrf.mxu0
        %v5898 = vadd.f32 %v5513, %v5897
        %v5899 = vpop.f32.mrf.mxu0
        %5900 = vmatprep.mubr.f32.mxu0 0.0
        %5901 = vmatmul.mubr.f32.gmra.mxu0 %v3181
        %v5902 = vpop.f32.mrf.mxu0
        %v5903 = vadd.f32 %v5518, %v5902
        %v5904 = vpop.f32.mrf.mxu0
        %5905 = vmatprep.mubr.f32.mxu0 0.0
        %5906 = vmatmul.mubr.f32.gmra.mxu0 %v3184
        %v5907 = vpop.f32.mrf.mxu0
        %v5908 = vadd.f32 %v5523, %v5907
        %v5909 = vpop.f32.mrf.mxu0
        %5910 = vmatprep.mubr.f32.mxu0 0.0
        %5911 = vmatmul.mubr.f32.gmra.mxu0 %v3187
        %v5912 = vpop.f32.mrf.mxu0
        %v5913 = vadd.f32 %v5528, %v5912
        %v5914 = vpop.f32.mrf.mxu0
        %5915 = vmatprep.mubr.f32.mxu0 0.0
        %5916 = vmatmul.mubr.f32.gmra.mxu0 %v3190
        %v5917 = vpop.f32.mrf.mxu0
        %v5918 = vadd.f32 %v5533, %v5917
        %v5919 = vpop.f32.mrf.mxu0
        %5920 = vmatprep.mubr.f32.mxu0 0.0
        %5921 = vmatmul.mubr.f32.gmra.mxu0 %v3193
        %v5922 = vpop.f32.mrf.mxu0
        %v5923 = vadd.f32 %v5538, %v5922
        %v5924 = vpop.f32.mrf.mxu0
        %5925 = vmatprep.mubr.f32.mxu0 0.0
        %5926 = vmatmul.mubr.f32.gmra.mxu0 %v3196
        %v5927 = vpop.f32.mrf.mxu0
        %v5928 = vadd.f32 %v5543, %v5927
        %v5929 = vpop.f32.mrf.mxu0
        %5930 = vmatprep.mubr.f32.mxu0 0.0
        %5931 = vmatmul.mubr.f32.gmra.mxu0 %v3199
        %v5932 = vpop.f32.mrf.mxu0
        %v5933 = vadd.f32 %v5548, %v5932
        %v5934 = vpop.f32.mrf.mxu0
        %5935 = vmatprep.mubr.f32.mxu0 0.0
        %5936 = vmatmul.mubr.f32.gmra.mxu0 %v3202
        %v5937 = vpop.f32.mrf.mxu0
        %v5938 = vadd.f32 %v5553, %v5937
        %v5939 = vpop.f32.mrf.mxu0
        %5940 = vmatprep.mubr.f32.mxu0 0.0
        %5941 = vmatmul.mubr.f32.gmra.mxu0 %v3205
        %v5942 = vpop.f32.mrf.mxu0
        %v5943 = vadd.f32 %v5558, %v5942
        %v5944 = vpop.f32.mrf.mxu0
        %5945 = vmatprep.mubr.f32.mxu0 0.0
        %5946 = vmatmul.mubr.f32.gmra.mxu0 %v3208
        %v5947 = vpop.f32.mrf.mxu0
        %v5948 = vadd.f32 %v5563, %v5947
        %v5949 = vpop.f32.mrf.mxu0
        %5950 = vmatprep.mubr.f32.mxu0 0.0
        %5951 = vmatmul.mubr.f32.gmra.mxu0 %v3211
        %v5952 = vpop.f32.mrf.mxu0
        %v5953 = vadd.f32 %v5568, %v5952
        %v5954 = vpop.f32.mrf.mxu0
        %5955 = vmatprep.mubr.f32.mxu0 0.0
        %5956 = vmatmul.mubr.f32.gmra.mxu0 %v3214
        %v5957 = vpop.f32.mrf.mxu0
        %v5958 = vadd.f32 %v5573, %v5957
        %v5959 = vpop.f32.mrf.mxu0
        %5960 = vmatprep.mubr.f32.mxu0 0.0
        %5961 = vmatmul.mubr.f32.gmra.mxu0 %v3217
        %v5962 = vpop.f32.mrf.mxu0
        %v5963 = vadd.f32 %v5578, %v5962
        %v5964 = vpop.f32.mrf.mxu0
        %5965 = vmatprep.mubr.f32.mxu0 0.0
        %5966 = vmatmul.mubr.f32.gmra.mxu0 %v3220
        %v5967 = vpop.f32.mrf.mxu0
        %v5968 = vadd.f32 %v5583, %v5967
        %v5969 = vpop.f32.mrf.mxu0
        %5970 = vmatprep.mubr.f32.mxu0 0.0
        %5971 = vmatmul.mubr.f32.gmra.mxu0 %v3223
        %v5972 = vpop.f32.mrf.mxu0
        %v5973 = vadd.f32 %v5588, %v5972
        %v5974 = vpop.f32.mrf.mxu0
        %5975 = vmatprep.mubr.f32.mxu0 0.0
        %5976 = vmatmul.mubr.f32.gmra.mxu0 %v3226
        %v5977 = vpop.f32.mrf.mxu0
        %v5978 = vadd.f32 %v5593, %v5977
        %v5979 = vpop.f32.mrf.mxu0
        %5980 = vmatprep.mubr.f32.mxu0 0.0
        %5981 = vmatmul.mubr.f32.gmra.mxu0 %v3229
        %v5982 = vpop.f32.mrf.mxu0
        %v5983 = vadd.f32 %v5598, %v5982
        %v5984 = vpop.f32.mrf.mxu0
        %5985 = vmatprep.mubr.f32.mxu0 0.0
        %5986 = vmatmul.mubr.f32.gmra.mxu0 %v3232
        %v5987 = vpop.f32.mrf.mxu0
        %v5988 = vadd.f32 %v5603, %v5987
        %v5989 = vpop.f32.mrf.mxu0
        %5990 = vmatprep.mubr.f32.mxu0 0.0
        %5991 = vmatmul.mubr.f32.gmra.mxu0 %v3235
        %v5992 = vpop.f32.mrf.mxu0
        %v5993 = vadd.f32 %v5608, %v5992
        %v5994 = vpop.f32.mrf.mxu0
        %5995 = vmatprep.mubr.f32.mxu0 0.0
        %5996 = vmatmul.mubr.f32.gmra.mxu0 %v3238
        %v5997 = vpop.f32.mrf.mxu0
        %v5998 = vadd.f32 %v5613, %v5997
        %v5999 = vpop.f32.mrf.mxu0
        %6000 = vmatprep.mubr.f32.mxu0 0.0
        %6001 = vmatmul.mubr.f32.gmra.mxu0 %v3241
        %v6002 = vpop.f32.mrf.mxu0
        %v6003 = vadd.f32 %v5618, %v6002
        %v6004 = vpop.f32.mrf.mxu0
        %6005 = vmatprep.mubr.f32.mxu0 0.0
        %6006 = vmatmul.mubr.f32.gmra.mxu0 %v3244
        %v6007 = vpop.f32.mrf.mxu0
        %v6008 = vadd.f32 %v5623, %v6007
        %v6009 = vpop.f32.mrf.mxu0
        %6010 = vmatprep.mubr.f32.mxu0 0.0
        %6011 = vmatmul.mubr.f32.gmra.mxu0 %v3247
        %v6012 = vpop.f32.mrf.mxu0
        %v6013 = vadd.f32 %v5628, %v6012
        %v6014 = vpop.f32.mrf.mxu0
        %6015 = vmatprep.mubr.f32.mxu0 0.0
        %6016 = vmatmul.mubr.f32.gmra.mxu0 %v3250
        %v6017 = vpop.f32.mrf.mxu0
        %v6018 = vadd.f32 %v5633, %v6017
        %v6019 = vpop.f32.mrf.mxu0
        %6020 = vmatprep.mubr.f32.mxu0 0.0
        %6021 = vmatmul.mubr.f32.gmra.mxu0 %v3253
        %v6022 = vpop.f32.mrf.mxu0
        %v6023 = vadd.f32 %v5638, %v6022
        %v6024 = vpop.f32.mrf.mxu0
        %6025 = vdwg.mxu0
        %v6026 = vld [vmem:[%s2 + $0x2] sm:$0x1]
        %v6027 = vlaneseq
        %v6028 = vshrl.u32 %v6027, 7
        %v6029 = vsub.s32 0, %v6028
        %v6030 = vrot.slane %v6026, %v6029
        %v6031 = vadd.f32 %v5708, %v6030
        %v6032 = vadd.f32 %v5713, %v6030
        %v6033 = vadd.f32 %v5718, %v6030
        %v6034 = vadd.f32 %v5723, %v6030
        %v6035 = vadd.f32 %v5728, %v6030
        %v6036 = vadd.f32 %v5733, %v6030
        %v6037 = vadd.f32 %v5738, %v6030
        %v6038 = vadd.f32 %v5743, %v6030
        %v6039 = vadd.f32 %v5748, %v6030
        %v6040 = vadd.f32 %v5753, %v6030
        %v6041 = vadd.f32 %v5758, %v6030
        %v6042 = vadd.f32 %v5763, %v6030
        %v6043 = vadd.f32 %v5768, %v6030
        %v6044 = vadd.f32 %v5773, %v6030
        %v6045 = vadd.f32 %v5778, %v6030
        %v6046 = vadd.f32 %v5783, %v6030
        %v6047 = vadd.f32 %v5788, %v6030
        %v6048 = vadd.f32 %v5793, %v6030
        %v6049 = vadd.f32 %v5798, %v6030
        %v6050 = vadd.f32 %v5803, %v6030
        %v6051 = vadd.f32 %v5808, %v6030
        %v6052 = vadd.f32 %v5813, %v6030
        %v6053 = vadd.f32 %v5818, %v6030
        %v6054 = vadd.f32 %v5823, %v6030
        %v6055 = vadd.f32 %v5828, %v6030
        %v6056 = vadd.f32 %v5833, %v6030
        %v6057 = vadd.f32 %v5838, %v6030
        %v6058 = vadd.f32 %v5843, %v6030
        %v6059 = vadd.f32 %v5848, %v6030
        %v6060 = vadd.f32 %v5853, %v6030
        %v6061 = vadd.f32 %v5858, %v6030
        %v6062 = vadd.f32 %v5863, %v6030
        %v6063 = vadd.f32 %v5868, %v6030
        %v6064 = vadd.f32 %v5873, %v6030
        %v6065 = vadd.f32 %v5878, %v6030
        %v6066 = vadd.f32 %v5883, %v6030
        %v6067 = vadd.f32 %v5888, %v6030
        %v6068 = vadd.f32 %v5893, %v6030
        %v6069 = vadd.f32 %v5898, %v6030
        %v6070 = vadd.f32 %v5903, %v6030
        %v6071 = vadd.f32 %v5908, %v6030
        %v6072 = vadd.f32 %v5913, %v6030
        %v6073 = vadd.f32 %v5918, %v6030
        %v6074 = vadd.f32 %v5923, %v6030
        %v6075 = vadd.f32 %v5928, %v6030
        %v6076 = vadd.f32 %v5933, %v6030
        %v6077 = vadd.f32 %v5938, %v6030
        %v6078 = vadd.f32 %v5943, %v6030
        %v6079 = vadd.f32 %v5948, %v6030
        %v6080 = vadd.f32 %v5953, %v6030
        %v6081 = vadd.f32 %v5958, %v6030
        %v6082 = vadd.f32 %v5963, %v6030
        %v6083 = vadd.f32 %v5968, %v6030
        %v6084 = vadd.f32 %v5973, %v6030
        %v6085 = vadd.f32 %v5978, %v6030
        %v6086 = vadd.f32 %v5983, %v6030
        %v6087 = vadd.f32 %v5988, %v6030
        %v6088 = vadd.f32 %v5993, %v6030
        %v6089 = vadd.f32 %v5998, %v6030
        %v6090 = vadd.f32 %v6003, %v6030
        %v6091 = vadd.f32 %v6008, %v6030
        %v6092 = vadd.f32 %v6013, %v6030
        %v6093 = vadd.f32 %v6018, %v6030
        %v6094 = vadd.f32 %v6023, %v6030
        %v6095 = vmul.f32 %v6031, 0.01
        %v6096 = vmul.f32 %v6032, 0.01
        %v6097 = vmul.f32 %v6033, 0.01
        %v6098 = vmul.f32 %v6034, 0.01
        %v6099 = vmul.f32 %v6035, 0.01
        %v6100 = vmul.f32 %v6036, 0.01
        %v6101 = vmul.f32 %v6037, 0.01
        %v6102 = vmul.f32 %v6038, 0.01
        %v6103 = vmul.f32 %v6039, 0.01
        %v6104 = vmul.f32 %v6040, 0.01
        %v6105 = vmul.f32 %v6041, 0.01
        %v6106 = vmul.f32 %v6042, 0.01
        %v6107 = vmul.f32 %v6043, 0.01
        %v6108 = vmul.f32 %v6044, 0.01
        %v6109 = vmul.f32 %v6045, 0.01
        %v6110 = vmul.f32 %v6046, 0.01
        %v6111 = vmul.f32 %v6047, 0.01
        %v6112 = vmul.f32 %v6048, 0.01
        %v6113 = vmul.f32 %v6049, 0.01
        %v6114 = vmul.f32 %v6050, 0.01
        %v6115 = vmul.f32 %v6051, 0.01
        %v6116 = vmul.f32 %v6052, 0.01
        %v6117 = vmul.f32 %v6053, 0.01
        %v6118 = vmul.f32 %v6054, 0.01
        %v6119 = vmul.f32 %v6055, 0.01
        %v6120 = vmul.f32 %v6056, 0.01
        %v6121 = vmul.f32 %v6057, 0.01
        %v6122 = vmul.f32 %v6058, 0.01
        %v6123 = vmul.f32 %v6059, 0.01
        %v6124 = vmul.f32 %v6060, 0.01
        %v6125 = vmul.f32 %v6061, 0.01
        %v6126 = vmul.f32 %v6062, 0.01
        %v6127 = vmul.f32 %v6063, 0.01
        %v6128 = vmul.f32 %v6064, 0.01
        %v6129 = vmul.f32 %v6065, 0.01
        %v6130 = vmul.f32 %v6066, 0.01
        %v6131 = vmul.f32 %v6067, 0.01
        %v6132 = vmul.f32 %v6068, 0.01
        %v6133 = vmul.f32 %v6069, 0.01
        %v6134 = vmul.f32 %v6070, 0.01
        %v6135 = vmul.f32 %v6071, 0.01
        %v6136 = vmul.f32 %v6072, 0.01
        %v6137 = vmul.f32 %v6073, 0.01
        %v6138 = vmul.f32 %v6074, 0.01
        %v6139 = vmul.f32 %v6075, 0.01
        %v6140 = vmul.f32 %v6076, 0.01
        %v6141 = vmul.f32 %v6077, 0.01
        %v6142 = vmul.f32 %v6078, 0.01
        %v6143 = vmul.f32 %v6079, 0.01
        %v6144 = vmul.f32 %v6080, 0.01
        %v6145 = vmul.f32 %v6081, 0.01
        %v6146 = vmul.f32 %v6082, 0.01
        %v6147 = vmul.f32 %v6083, 0.01
        %v6148 = vmul.f32 %v6084, 0.01
        %v6149 = vmul.f32 %v6085, 0.01
        %v6150 = vmul.f32 %v6086, 0.01
        %v6151 = vmul.f32 %v6087, 0.01
        %v6152 = vmul.f32 %v6088, 0.01
        %v6153 = vmul.f32 %v6089, 0.01
        %v6154 = vmul.f32 %v6090, 0.01
        %v6155 = vmul.f32 %v6091, 0.01
        %v6156 = vmul.f32 %v6092, 0.01
        %v6157 = vmul.f32 %v6093, 0.01
        %v6158 = vmul.f32 %v6094, 0.01
        %v6159 = vmax.f32 %v6031, %v6095
        %v6160 = vmax.f32 %v6032, %v6096
        %v6161 = vmax.f32 %v6033, %v6097
        %v6162 = vmax.f32 %v6034, %v6098
        %v6163 = vmax.f32 %v6035, %v6099
        %v6164 = vmax.f32 %v6036, %v6100
        %v6165 = vmax.f32 %v6037, %v6101
        %v6166 = vmax.f32 %v6038, %v6102
        %v6167 = vmax.f32 %v6039, %v6103
        %v6168 = vmax.f32 %v6040, %v6104
        %v6169 = vmax.f32 %v6041, %v6105
        %v6170 = vmax.f32 %v6042, %v6106
        %v6171 = vmax.f32 %v6043, %v6107
        %v6172 = vmax.f32 %v6044, %v6108
        %v6173 = vmax.f32 %v6045, %v6109
        %v6174 = vmax.f32 %v6046, %v6110
        %v6175 = vmax.f32 %v6047, %v6111
        %v6176 = vmax.f32 %v6048, %v6112
        %v6177 = vmax.f32 %v6049, %v6113
        %v6178 = vmax.f32 %v6050, %v6114
        %v6179 = vmax.f32 %v6051, %v6115
        %v6180 = vmax.f32 %v6052, %v6116
        %v6181 = vmax.f32 %v6053, %v6117
        %v6182 = vmax.f32 %v6054, %v6118
        %v6183 = vmax.f32 %v6055, %v6119
        %v6184 = vmax.f32 %v6056, %v6120
        %v6185 = vmax.f32 %v6057, %v6121
        %v6186 = vmax.f32 %v6058, %v6122
        %v6187 = vmax.f32 %v6059, %v6123
        %v6188 = vmax.f32 %v6060, %v6124
        %v6189 = vmax.f32 %v6061, %v6125
        %v6190 = vmax.f32 %v6062, %v6126
        %v6191 = vmax.f32 %v6063, %v6127
        %v6192 = vmax.f32 %v6064, %v6128
        %v6193 = vmax.f32 %v6065, %v6129
        %v6194 = vmax.f32 %v6066, %v6130
        %v6195 = vmax.f32 %v6067, %v6131
        %v6196 = vmax.f32 %v6068, %v6132
        %v6197 = vmax.f32 %v6069, %v6133
        %v6198 = vmax.f32 %v6070, %v6134
        %v6199 = vmax.f32 %v6071, %v6135
        %v6200 = vmax.f32 %v6072, %v6136
        %v6201 = vmax.f32 %v6073, %v6137
        %v6202 = vmax.f32 %v6074, %v6138
        %v6203 = vmax.f32 %v6075, %v6139
        %v6204 = vmax.f32 %v6076, %v6140
        %v6205 = vmax.f32 %v6077, %v6141
        %v6206 = vmax.f32 %v6078, %v6142
        %v6207 = vmax.f32 %v6079, %v6143
        %v6208 = vmax.f32 %v6080, %v6144
        %v6209 = vmax.f32 %v6081, %v6145
        %v6210 = vmax.f32 %v6082, %v6146
        %v6211 = vmax.f32 %v6083, %v6147
        %v6212 = vmax.f32 %v6084, %v6148
        %v6213 = vmax.f32 %v6085, %v6149
        %v6214 = vmax.f32 %v6086, %v6150
        %v6215 = vmax.f32 %v6087, %v6151
        %v6216 = vmax.f32 %v6088, %v6152
        %v6217 = vmax.f32 %v6089, %v6153
        %v6218 = vmax.f32 %v6090, %v6154
        %v6219 = vmax.f32 %v6091, %v6155
        %v6220 = vmax.f32 %v6092, %v6156
        %v6221 = vmax.f32 %v6093, %v6157
        %v6222 = vmax.f32 %v6094, %v6158
        %v6223 = vsel %vm5063, %v6159, 0.0
        %v6224 = vsel %vm5063, %v6160, 0.0
        %v6225 = vadd.f32 %v6223, %v6224
        %v6226 = vsel %vm5063, %v6161, 0.0
        %v6227 = vadd.f32 %v6225, %v6226
        %v6228 = vsel %vm5063, %v6162, 0.0
        %v6229 = vadd.f32 %v6227, %v6228
        %v6230 = vsel %vm5063, %v6163, 0.0
        %v6231 = vadd.f32 %v6229, %v6230
        %v6232 = vsel %vm5063, %v6164, 0.0
        %v6233 = vadd.f32 %v6231, %v6232
        %v6234 = vsel %vm5063, %v6165, 0.0
        %v6235 = vadd.f32 %v6233, %v6234
        %v6236 = vsel %vm5063, %v6166, 0.0
        %v6237 = vadd.f32 %v6235, %v6236
        %v6238 = vrot.slane %v6237, 4
        %v6239 = vadd.f32 %v6237, %v6238
        %v6240 = vrot.slane %v6239, 2
        %v6241 = vadd.f32 %v6239, %v6240
        %v6242 = vrot.slane %v6241, 1
        %v6243 = vadd.f32 %v6241, %v6242
        %v6244 = vsel %vm5063, %v6167, 0.0
        %v6245 = vsel %vm5063, %v6168, 0.0
        %v6246 = vadd.f32 %v6244, %v6245
        %v6247 = vsel %vm5063, %v6169, 0.0
        %v6248 = vadd.f32 %v6246, %v6247
        %v6249 = vsel %vm5063, %v6170, 0.0
        %v6250 = vadd.f32 %v6248, %v6249
        %v6251 = vsel %vm5063, %v6171, 0.0
        %v6252 = vadd.f32 %v6250, %v6251
        %v6253 = vsel %vm5063, %v6172, 0.0
        %v6254 = vadd.f32 %v6252, %v6253
        %v6255 = vsel %vm5063, %v6173, 0.0
        %v6256 = vadd.f32 %v6254, %v6255
        %v6257 = vsel %vm5063, %v6174, 0.0
        %v6258 = vadd.f32 %v6256, %v6257
        %v6259 = vrot.slane %v6258, 4
        %v6260 = vadd.f32 %v6258, %v6259
        %v6261 = vrot.slane %v6260, 2
        %v6262 = vadd.f32 %v6260, %v6261
        %v6263 = vrot.slane %v6262, 1
        %v6264 = vadd.f32 %v6262, %v6263
        %v6265 = vsel %vm5063, %v6175, 0.0
        %v6266 = vsel %vm5063, %v6176, 0.0
        %v6267 = vadd.f32 %v6265, %v6266
        %v6268 = vsel %vm5063, %v6177, 0.0
        %v6269 = vadd.f32 %v6267, %v6268
        %v6270 = vsel %vm5063, %v6178, 0.0
        %v6271 = vadd.f32 %v6269, %v6270
        %v6272 = vsel %vm5063, %v6179, 0.0
        %v6273 = vadd.f32 %v6271, %v6272
        %v6274 = vsel %vm5063, %v6180, 0.0
        %v6275 = vadd.f32 %v6273, %v6274
        %v6276 = vsel %vm5063, %v6181, 0.0
        %v6277 = vadd.f32 %v6275, %v6276
        %v6278 = vsel %vm5063, %v6182, 0.0
        %v6279 = vadd.f32 %v6277, %v6278
        %v6280 = vrot.slane %v6279, 4
        %v6281 = vadd.f32 %v6279, %v6280
        %v6282 = vrot.slane %v6281, 2
        %v6283 = vadd.f32 %v6281, %v6282
        %v6284 = vrot.slane %v6283, 1
        %v6285 = vadd.f32 %v6283, %v6284
        %v6286 = vsel %vm5063, %v6183, 0.0
        %v6287 = vsel %vm5063, %v6184, 0.0
        %v6288 = vadd.f32 %v6286, %v6287
        %v6289 = vsel %vm5063, %v6185, 0.0
        %v6290 = vadd.f32 %v6288, %v6289
        %v6291 = vsel %vm5063, %v6186, 0.0
        %v6292 = vadd.f32 %v6290, %v6291
        %v6293 = vsel %vm5063, %v6187, 0.0
        %v6294 = vadd.f32 %v6292, %v6293
        %v6295 = vsel %vm5063, %v6188, 0.0
        %v6296 = vadd.f32 %v6294, %v6295
        %v6297 = vsel %vm5063, %v6189, 0.0
        %v6298 = vadd.f32 %v6296, %v6297
        %v6299 = vsel %vm5063, %v6190, 0.0
        %v6300 = vadd.f32 %v6298, %v6299
        %v6301 = vrot.slane %v6300, 4
        %v6302 = vadd.f32 %v6300, %v6301
        %v6303 = vrot.slane %v6302, 2
        %v6304 = vadd.f32 %v6302, %v6303
        %v6305 = vrot.slane %v6304, 1
        %v6306 = vadd.f32 %v6304, %v6305
        %v6307 = vsel %vm5063, %v6191, 0.0
        %v6308 = vsel %vm5063, %v6192, 0.0
        %v6309 = vadd.f32 %v6307, %v6308
        %v6310 = vsel %vm5063, %v6193, 0.0
        %v6311 = vadd.f32 %v6309, %v6310
        %v6312 = vsel %vm5063, %v6194, 0.0
        %v6313 = vadd.f32 %v6311, %v6312
        %v6314 = vsel %vm5063, %v6195, 0.0
        %v6315 = vadd.f32 %v6313, %v6314
        %v6316 = vsel %vm5063, %v6196, 0.0
        %v6317 = vadd.f32 %v6315, %v6316
        %v6318 = vsel %vm5063, %v6197, 0.0
        %v6319 = vadd.f32 %v6317, %v6318
        %v6320 = vsel %vm5063, %v6198, 0.0
        %v6321 = vadd.f32 %v6319, %v6320
        %v6322 = vrot.slane %v6321, 4
        %v6323 = vadd.f32 %v6321, %v6322
        %v6324 = vrot.slane %v6323, 2
        %v6325 = vadd.f32 %v6323, %v6324
        %v6326 = vrot.slane %v6325, 1
        %v6327 = vadd.f32 %v6325, %v6326
        %v6328 = vsel %vm5063, %v6199, 0.0
        %v6329 = vsel %vm5063, %v6200, 0.0
        %v6330 = vadd.f32 %v6328, %v6329
        %v6331 = vsel %vm5063, %v6201, 0.0
        %v6332 = vadd.f32 %v6330, %v6331
        %v6333 = vsel %vm5063, %v6202, 0.0
        %v6334 = vadd.f32 %v6332, %v6333
        %v6335 = vsel %vm5063, %v6203, 0.0
        %v6336 = vadd.f32 %v6334, %v6335
        %v6337 = vsel %vm5063, %v6204, 0.0
        %v6338 = vadd.f32 %v6336, %v6337
        %v6339 = vsel %vm5063, %v6205, 0.0
        %v6340 = vadd.f32 %v6338, %v6339
        %v6341 = vsel %vm5063, %v6206, 0.0
        %v6342 = vadd.f32 %v6340, %v6341
        %v6343 = vrot.slane %v6342, 4
        %v6344 = vadd.f32 %v6342, %v6343
        %v6345 = vrot.slane %v6344, 2
        %v6346 = vadd.f32 %v6344, %v6345
        %v6347 = vrot.slane %v6346, 1
        %v6348 = vadd.f32 %v6346, %v6347
        %v6349 = vsel %vm5063, %v6207, 0.0
        %v6350 = vsel %vm5063, %v6208, 0.0
        %v6351 = vadd.f32 %v6349, %v6350
        %v6352 = vsel %vm5063, %v6209, 0.0
        %v6353 = vadd.f32 %v6351, %v6352
        %v6354 = vsel %vm5063, %v6210, 0.0
        %v6355 = vadd.f32 %v6353, %v6354
        %v6356 = vsel %vm5063, %v6211, 0.0
        %v6357 = vadd.f32 %v6355, %v6356
        %v6358 = vsel %vm5063, %v6212, 0.0
        %v6359 = vadd.f32 %v6357, %v6358
        %v6360 = vsel %vm5063, %v6213, 0.0
        %v6361 = vadd.f32 %v6359, %v6360
        %v6362 = vsel %vm5063, %v6214, 0.0
        %v6363 = vadd.f32 %v6361, %v6362
        %v6364 = vrot.slane %v6363, 4
        %v6365 = vadd.f32 %v6363, %v6364
        %v6366 = vrot.slane %v6365, 2
        %v6367 = vadd.f32 %v6365, %v6366
        %v6368 = vrot.slane %v6367, 1
        %v6369 = vadd.f32 %v6367, %v6368
        %v6370 = vsel %vm5063, %v6215, 0.0
        %v6371 = vsel %vm5063, %v6216, 0.0
        %v6372 = vadd.f32 %v6370, %v6371
        %v6373 = vsel %vm5063, %v6217, 0.0
        %v6374 = vadd.f32 %v6372, %v6373
        %v6375 = vsel %vm5063, %v6218, 0.0
        %v6376 = vadd.f32 %v6374, %v6375
        %v6377 = vsel %vm5063, %v6219, 0.0
        %v6378 = vadd.f32 %v6376, %v6377
        %v6379 = vsel %vm5063, %v6220, 0.0
        %v6380 = vadd.f32 %v6378, %v6379
        %v6381 = vsel %vm5063, %v6221, 0.0
        %v6382 = vadd.f32 %v6380, %v6381
        %v6383 = vsel %vm5063, %v6222, 0.0
        %v6384 = vadd.f32 %v6382, %v6383
        %v6385 = vrot.slane %v6384, 4
        %v6386 = vadd.f32 %v6384, %v6385
        %v6387 = vrot.slane %v6386, 2
        %v6388 = vadd.f32 %v6386, %v6387
        %v6389 = vrot.slane %v6388, 1
        %v6390 = vadd.f32 %v6388, %v6389
        %v6391 = vrcp.pop 64.0
        %v6392 = vmul.f32 %v6243, %v6391
        %v6393 = vmul.f32 %v6264, %v6391
        %v6394 = vmul.f32 %v6285, %v6391
        %v6395 = vmul.f32 %v6306, %v6391
        %v6396 = vmul.f32 %v6327, %v6391
        %v6397 = vmul.f32 %v6348, %v6391
        %v6398 = vmul.f32 %v6369, %v6391
        %v6399 = vmul.f32 %v6390, %v6391
        %v6400 = vld [vmem:[%s1 + $0x78] sm:$0xff]
        %v6401 = vld [vmem:[%s1 + $0x80] sm:$0xff]
        %v6402 = vld [vmem:[%s1 + $0x88] sm:$0xff]
        %v6403 = vld [vmem:[%s1 + $0x90] sm:$0xff]
        %v6404 = vld [vmem:[%s2 + $0x3] sm:$0x1]
        %v6405 = vlaneseq
        %v6406 = vshrl.u32 %v6405, 7
        %v6407 = vsub.s32 0, %v6406
        %v6408 = vrot.slane %v6404, %v6407
        %vm6417 = vcmask 1041409
        %v6418 = vsel %vm6417, %v6393, %v6392
        %vm6419 = vcmask 1042434
        %v6420 = vsel %vm6419, %v6394, %v6418
        %vm6421 = vcmask 1043459
        %v6422 = vsel %vm6421, %v6395, %v6420
        %vm6423 = vcmask 1044484
        %v6424 = vsel %vm6423, %v6396, %v6422
        %vm6425 = vcmask 1045509
        %v6426 = vsel %vm6425, %v6397, %v6424
        %vm6427 = vcmask 1046534
        %v6428 = vsel %vm6427, %v6398, %v6426
        %vm6429 = vcmask 1047559
        %v6430 = vsel %vm6429, %v6399, %v6428
        %v6431 = vsel %vm5063, %v6430, 0
        %6433 = vmatprep.subr.mxu0 0.0
        %6434 = vmatpush1.msra.mxu0 0.0
        %6435 = vmatprep.subr.mxu0 0.0
        %6436 = vmatpush1.msra.mxu0 0.0
        %6437 = vmatprep.subr.mxu0 0.0
        %6438 = vmatpush1.msra.mxu0 0.0
        %6439 = vmatprep.subr.mxu0 0.0
        %6440 = vmatpush1.msra.mxu0 0.0
        %6441 = vmatprep.subr.mxu0 0.0
        %6442 = vmatpush1.msra.mxu0 0.0
        %6443 = vmatprep.subr.mxu0 0.0
        %6444 = vmatpush1.msra.mxu0 0.0
        %6445 = vmatprep.subr.mxu0 0.0
        %6446 = vmatpush1.msra.mxu0 0.0
        %6447 = vmatprep.subr.mxu0 0.0
        %6448 = vmatpush1.msra.mxu0 0.0
        %6449 = vmatprep.subr.mxu0 0.0
        %6450 = vmatpush1.msra.mxu0 0.0
        %6451 = vmatprep.subr.mxu0 0.0
        %6452 = vmatpush1.msra.mxu0 0.0
        %6453 = vmatprep.subr.mxu0 0.0
        %6454 = vmatpush1.msra.mxu0 0.0
        %6455 = vmatprep.subr.mxu0 0.0
        %6456 = vmatpush1.msra.mxu0 0.0
        %6457 = vmatprep.subr.mxu0 0.0
        %6458 = vmatpush1.msra.mxu0 %v6403
        %6459 = vmatprep.subr.mxu0 0.0
        %6460 = vmatpush1.msra.mxu0 %v6402
        %6461 = vmatprep.subr.mxu0 0.0
        %6462 = vmatpush1.msra.mxu0 %v6401
        %6463 = vmatprep.subr.mxu0 0.0
        %6464 = vmatpush1.msra.mxu0 %v6400
        %6465 = vmatprep.subr.mxu0 0.0
        %6466 = vmatpush2.msra.mxu0 0.0
        %6467 = vmatprep.subr.mxu0 0.0
        %6468 = vmatpush2.msra.mxu0 0.0
        %6469 = vmatprep.subr.mxu0 0.0
        %6470 = vmatpush2.msra.mxu0 0.0
        %6471 = vmatprep.subr.mxu0 0.0
        %6472 = vmatpush2.msra.mxu0 0.0
        %6473 = vmatprep.subr.mxu0 0.0
        %6474 = vmatpush2.msra.mxu0 0.0
        %6475 = vmatprep.subr.mxu0 0.0
        %6476 = vmatpush2.msra.mxu0 0.0
        %6477 = vmatprep.subr.mxu0 0.0
        %6478 = vmatpush2.msra.mxu0 0.0
        %6479 = vmatprep.subr.mxu0 0.0
        %6480 = vmatpush2.msra.mxu0 0.0
        %6481 = vmatprep.subr.mxu0 0.0
        %6482 = vmatpush2.msra.mxu0 0.0
        %6483 = vmatprep.subr.mxu0 0.0
        %6484 = vmatpush2.msra.mxu0 0.0
        %6485 = vmatprep.subr.mxu0 0.0
        %6486 = vmatpush2.msra.mxu0 0.0
        %6487 = vmatprep.subr.mxu0 0.0
        %6488 = vmatpush2.msra.mxu0 0.0
        %6489 = vmatprep.subr.mxu0 0.0
        %6490 = vmatpush2.msra.mxu0 0.0
        %6491 = vmatprep.subr.mxu0 0.0
        %6492 = vmatpush2.msra.mxu0 0.0
        %6493 = vmatprep.subr.mxu0 0.0
        %6494 = vmatpush2.msra.mxu0 0.0
        %6495 = vmatprep.subr.mxu0 0.0
        %6496 = vmatpush2.msra.mxu0 0.0
        %6497 = vmatprep.mubr.f32.mxu0 0.0
        %6498 = vmatmul.mubr.f32.gmra.mxu0 %v6431
        %v6499 = vpop.f32.mrf.mxu0
        %v6500 = vadd.f32 %v6408, %v6499
        %v6501 = vpop.f32.mrf.mxu0
        %6502 = vdwg.mxu0
        %v6503 = vmul.f32 %v6500, 0.01
        %v6504 = vmax.f32 %v6500, %v6503
        %v6505 = vld [vmem:[%s1 + $0x98] sm:$0xff]
        %v6506 = vld [vmem:[%s1 + $0xa0] sm:$0xff]
        %v6507 = vld [vmem:[%s1 + $0xa8] sm:$0xff]
        %v6508 = vld [vmem:[%s1 + $0xb0] sm:$0xff]
        %v6509 = vld [vmem:[%s2 + $0x4] sm:$0x1]
        %v6510 = vlaneseq
        %v6511 = vshrl.u32 %v6510, 7
        %v6512 = vsub.s32 0, %v6511
        %v6513 = vrot.slane %v6509, %v6512
        %v6515 = vsel %vm5063, %v6504, 0
        %6517 = vmatprep.subr.mxu0 0.0
        %6518 = vmatpush1.msra.mxu0 0.0
        %6519 = vmatprep.subr.mxu0 0.0
        %6520 = vmatpush1.msra.mxu0 0.0
        %6521 = vmatprep.subr.mxu0 0.0
        %6522 = vmatpush1.msra.mxu0 0.0
        %6523 = vmatprep.subr.mxu0 0.0
        %6524 = vmatpush1.msra.mxu0 0.0
        %6525 = vmatprep.subr.mxu0 0.0
        %6526 = vmatpush1.msra.mxu0 0.0
        %6527 = vmatprep.subr.mxu0 0.0
        %6528 = vmatpush1.msra.mxu0 0.0
        %6529 = vmatprep.subr.mxu0 0.0
        %6530 = vmatpush1.msra.mxu0 0.0
        %6531 = vmatprep.subr.mxu0 0.0
        %6532 = vmatpush1.msra.mxu0 0.0
        %6533 = vmatprep.subr.mxu0 0.0
        %6534 = vmatpush1.msra.mxu0 0.0
        %6535 = vmatprep.subr.mxu0 0.0
        %6536 = vmatpush1.msra.mxu0 0.0
        %6537 = vmatprep.subr.mxu0 0.0
        %6538 = vmatpush1.msra.mxu0 0.0
        %6539 = vmatprep.subr.mxu0 0.0
        %6540 = vmatpush1.msra.mxu0 0.0
        %6541 = vmatprep.subr.mxu0 0.0
        %6542 = vmatpush1.msra.mxu0 %v6508
        %6543 = vmatprep.subr.mxu0 0.0
        %6544 = vmatpush1.msra.mxu0 %v6507
        %6545 = vmatprep.subr.mxu0 0.0
        %6546 = vmatpush1.msra.mxu0 %v6506
        %6547 = vmatprep.subr.mxu0 0.0
        %6548 = vmatpush1.msra.mxu0 %v6505
        %6549 = vmatprep.subr.mxu0 0.0
        %6550 = vmatpush2.msra.mxu0 0.0
        %6551 = vmatprep.subr.mxu0 0.0
        %6552 = vmatpush2.msra.mxu0 0.0
        %6553 = vmatprep.subr.mxu0 0.0
        %6554 = vmatpush2.msra.mxu0 0.0
        %6555 = vmatprep.subr.mxu0 0.0
        %6556 = vmatpush2.msra.mxu0 0.0
        %6557 = vmatprep.subr.mxu0 0.0
        %6558 = vmatpush2.msra.mxu0 0.0
        %6559 = vmatprep.subr.mxu0 0.0
        %6560 = vmatpush2.msra.mxu0 0.0
        %6561 = vmatprep.subr.mxu0 0.0
        %6562 = vmatpush2.msra.mxu0 0.0
        %6563 = vmatprep.subr.mxu0 0.0
        %6564 = vmatpush2.msra.mxu0 0.0
        %6565 = vmatprep.subr.mxu0 0.0
        %6566 = vmatpush2.msra.mxu0 0.0
        %6567 = vmatprep.subr.mxu0 0.0
        %6568 = vmatpush2.msra.mxu0 0.0
        %6569 = vmatprep.subr.mxu0 0.0
        %6570 = vmatpush2.msra.mxu0 0.0
        %6571 = vmatprep.subr.mxu0 0.0
        %6572 = vmatpush2.msra.mxu0 0.0
        %6573 = vmatprep.subr.mxu0 0.0
        %6574 = vmatpush2.msra.mxu0 0.0
        %6575 = vmatprep.subr.mxu0 0.0
        %6576 = vmatpush2.msra.mxu0 0.0
        %6577 = vmatprep.subr.mxu0 0.0
        %6578 = vmatpush2.msra.mxu0 0.0
        %6579 = vmatprep.subr.mxu0 0.0
        %6580 = vmatpush2.msra.mxu0 0.0
        %6581 = vmatprep.mubr.f32.mxu0 0.0
        %6582 = vmatmul.mubr.f32.gmra.mxu0 %v6515
        %v6583 = vpop.f32.mrf.mxu0
        %v6584 = vadd.f32 %v6513, %v6583
        %v6585 = vpop.f32.mrf.mxu0
        %6586 = vdwg.mxu0
        %6587 = vst [vmem:[%s164] sm:$0xff] %v6584
        %s6588 = sand.u32 %s93, 1
        %s6589 = scalar_lea.sflag [#allocation3], %s6588
        %s6590 = sand.u32 %s93, 1
        %s6591 = smul.addr %s6590, 8
        %s6592 = scalar_lea.vmem [#allocation2], %s6591
        // Predicated region
        $region33: #{tpu_custom_call.1} parent=31 // pred_check
          %p6593 = pneg %p103
        $region34: #{tpu_custom_call.1} parent=31 // pred_check_branch
          %6595 = sbr.rel (%p6593) target = $region36
        $region35: #{tpu_custom_call.1} parent=31 // pred_region
          %s6597 = ssub.s32 128, 128
          %6598 = vsyncadd %s6589, %s6597
          %s6599 = smul.addr %s17, 128
          %s6600 = scalar_lea.hbm %s3, %s6599
          %s6602 = sshll.u32 %s6592, 4
          %s6603 = int_to_ptr.vmem [resolvable:$true] %s6602
          %6605 = dma.vmem_to_hbm [thread:$0]  %s6603, 128, %s6600, %s6589
        $region36: #{tpu_custom_call.1} parent=31 // pred_fallthru
          _
      $region32: #{tpu_custom_call.1} parent=5 // pred_fallthru
        _
      %p6606 = scmp.le.s32.totalorder 2, %s12
      // Predicated region
      $region37: #{tpu_custom_call.1} parent=5 // pred_check
        %p6607 = pneg %p6606
      $region38: #{tpu_custom_call.1} parent=5 // pred_check_branch
        %6609 = sbr.rel (%p6607) target = $region40
      $region39: #{tpu_custom_call.1} parent=5 // pred_region
        %s6610 = ssub.s32 %s12, 2
        // Predicated region
        $region41: #{tpu_custom_call.1} parent=39 // pred_check
          %p6611 = pneg %p109
        $region42: #{tpu_custom_call.1} parent=39 // pred_check_branch
          %6613 = sbr.rel (%p6611) target = $region44
        $region43: #{tpu_custom_call.1} parent=39 // pred_region
          %s6614 = sand.u32 %s94, 1
          %s6615 = scalar_lea.sflag [#allocation3], %s6614
          %s6616 = sand.u32 %s94, 1
          %s6617 = smul.addr %s6616, 8
          %s6618 = scalar_lea.vmem [#allocation2], %s6617
          %6619 = dma.done %s6615, 128
        $region44: #{tpu_custom_call.1} parent=39 // pred_fallthru
          _
      $region40: #{tpu_custom_call.1} parent=5 // pred_fallthru
        _
    $region6: #{tpu_custom_call.1} parent=1 // loop_footer
      %s16 = sadd.s32 1, %s12
    $region7: #{tpu_custom_call.1} parent=1 // loop_footer_branch
      %11 = sbr.rel target = $region3
    $region8: #{tpu_custom_call.1} parent=1 // loop_exit
      _
    %6620 = vsyncpa [#allocation3], 1
    %s6621 = scalar_lea.sflag [#allocation3], 1
    %6622 = vsyncpa %s6621, 1

</llo_original>
